<compile_context>
chip_gen: v5e
topology: v5e:2x2
jax: 0.10.0
libtpu: 0.0.40
codegen_flags: <defaults>
</compile_context>

<pallas_src>
import functools

import jax
import jax.numpy as jnp
import numpy as np
from jax.experimental import pallas as pl
from jax.experimental.pallas import tpu as pltpu

BN_EPS = 1e-5  # PyTorch BatchNorm2d default


# ----------------------------- small helpers -------------------------------

@functools.lru_cache(maxsize=None)
def _vmem_limit():
    """Scoped VMEM limit: ~3/4 of physical (<=96 MiB). 48 MiB fallback keeps
    headroom under v7x's 64 MiB while still raising the 32 MiB default."""
    try:
        cap = pltpu.get_tpu_info().vmem_capacity_bytes
        return int(min(96 * 2 ** 20, (cap * 3) // 4))
    except Exception:
        return 48 * 2 ** 20


def _copy_probe_kernel(x_ref, o_ref):
    o_ref[...] = x_ref[...]


@functools.lru_cache(maxsize=None)
def _single_buffer_ok():
    """Probe whether pipeline_mode=pl.Buffered(1) (single-buffering of
    grid-constant operands) is supported by the running JAX/Mosaic."""
    try:
        spec = pl.BlockSpec((8, 128), lambda i: (0, 0),
                            pipeline_mode=pl.Buffered(1))
        fn = pl.pallas_call(
            _copy_probe_kernel,
            out_shape=jax.ShapeDtypeStruct((8, 128), jnp.float32),
            grid=(2,),
            in_specs=[spec],
            out_specs=pl.BlockSpec((8, 128), lambda i: (0, 0)))
        jax.block_until_ready(fn(jnp.zeros((8, 128), jnp.float32)))
        return True
    except Exception:
        return False


def _const_spec(shape, index_map):
    """BlockSpec for grid-constant operands (weights / BN scale+shift / bias):
    single-buffered when supported so large parameter blocks are not allocated
    twice in VMEM."""
    if _single_buffer_ok():
        return pl.BlockSpec(shape, index_map, pipeline_mode=pl.Buffered(1))
    return pl.BlockSpec(shape, index_map)


def _pick_row_tile(H, pool):
    """Largest divisor of H that is <= 16 (and even when a 2x2 pool is fused)."""
    step = 2 if pool else 1
    best = step if H % step == 0 else H
    r = step
    while r <= min(H, 16):
        if H % r == 0:
            best = r
        r += step
    return best


def _pick_k_tile(K, max_tile=4096):
    """Largest multiple-of-128 divisor of K that is <= max_tile (else K)."""
    if K <= max_tile:
        return K
    best = K
    t = 128
    while t <= max_tile:
        if K % t == 0:
            best = t
        t += 128
    return best


# ----------------------------- Pallas kernels ------------------------------

def _bn_relu_pool_store(acc, scale_ref, shift_ref, o_ref, hp_ref,
                        rt, R, W, Cout, pool):
    """Shared conv epilogue for one row tile.

    acc : (R*W, Cout) f32 raw conv result for output rows [rt*R, rt*R+R).
    BN scale/shift applied in f32, fused ReLU, optional fused 2x2 max-pool,
    single store of the tile.
    """
    y = jnp.maximum(acc * scale_ref[...] + shift_ref[...], 0.0)   # (R*W, Cout)

    if not pool:
        o_ref[pl.ds(rt * R, R), :, :] = y.reshape(R, W, Cout).astype(o_ref.dtype)
        return

    # Fused nn.MaxPool2d(kernel_size=2, stride=2), per row tile.
    Ro, Wo = R // 2, W // 2
    # H direction directly on the register tile (leading-dim reshape + max).
    hp_ref[...] = jnp.max(y.reshape(Ro, 2, W, Cout), axis=1)      # (Ro, W, Cout)
    # W direction via stride-2 reads of the small per-tile scratch.
    even = hp_ref[:, pl.ds(0, Wo, 2), :]
    odd = hp_ref[:, pl.ds(1, Wo, 2), :]
    o_ref[pl.ds(rt * Ro, Ro), :, :] = jnp.maximum(even, odd).astype(o_ref.dtype)


def _conv_bn_relu_kernel(x_ref, w_ref, scale_ref, shift_ref, o_ref, xp_ref,
                         hp_ref=None, *, H, W, Cin, Cout, pool, R):
    """3x3 'SAME' conv + BatchNorm(eval) + ReLU [+ fused 2x2 max-pool].

    x_ref    : (H, W, Cin)     bf16  one image (NHWC)
    w_ref    : (9, Cin, Cout)  bf16  conv taps (raw, BN applied in epilogue)
    scale_ref: (1, Cout)       f32   gamma / sqrt(var + eps)
    shift_ref: (1, Cout)       f32   (bias - mean) * scale + beta
    o_ref    : (H, W, Cout) or (H//2, W//2, Cout)  bf16
    xp_ref   : (H+2, W+2, Cin) bf16  VMEM scratch (zero-padded image)
    hp_ref   : (R//2, W, Cout) f32   VMEM scratch (per-tile H-pooled rows)
    """
    # Zero only the halo (the interior is overwritten right below): saves a
    # full (H+2)(W+2)*Cin store pass per image per layer.
    zrow = jnp.zeros((1, W + 2, Cin), xp_ref.dtype)
    xp_ref[pl.ds(0, 1), :, :] = zrow
    xp_ref[pl.ds(H + 1, 1), :, :] = zrow
    zcol = jnp.zeros((H + 2, 1, Cin), xp_ref.dtype)
    xp_ref[:, pl.ds(0, 1), :] = zcol
    xp_ref[:, pl.ds(W + 1, 1), :] = zcol
    xp_ref[pl.ds(1, H), pl.ds(1, W), :] = x_ref[...]

    # Row-tiled conv: for each tile, the 9 shifted MXU matmuls are summed as a
    # single register-level expression (no accumulator scratch read-modify-
    # write), then the tile is written once by the epilogue.
    for rt in range(H // R):
        acc = None
        for dx in range(3):
            # dx (W) shift hoisted: 3 band loads per row tile instead of 9.
            band = xp_ref[pl.ds(rt * R, R + 2), pl.ds(dx, W), :]  # (R+2, W, Cin)
            for dy in range(3):
                patch = band[dy:dy + R].reshape(R * W, Cin)
                d = jnp.dot(patch, w_ref[dy * 3 + dx],
                            preferred_element_type=jnp.float32)
                acc = d if acc is None else acc + d
        _bn_relu_pool_store(acc, scale_ref, shift_ref, o_ref, hp_ref,
                            rt, R, W, Cout, pool)


def conv3x3_bn_relu(x, w9, scale, shift, *, pool):
    """x: (N, H, W, Cin) bf16. 'SAME' 3x3 conv + BN(eval) + ReLU [+ 2x2 pool]."""
    N, H, W, Cin = x.shape
    Cout = w9.shape[-1]
    R = _pick_row_tile(H, pool)
    Ho, Wo = (H // 2, W // 2) if pool else (H, W)
    kernel = functools.partial(_conv_bn_relu_kernel,
                               H=H, W=W, Cin=Cin, Cout=Cout, pool=pool, R=R)
    scratch = [pltpu.VMEM((H + 2, W + 2, Cin), jnp.bfloat16)]   # padded image
    if pool:
        scratch.append(pltpu.VMEM((R // 2, W, Cout), jnp.float32))
    return pl.pallas_call(
        kernel,
        out_shape=jax.ShapeDtypeStruct((N, Ho, Wo, Cout), jnp.bfloat16),
        grid=(N,),
        in_specs=[
            pl.BlockSpec((pl.Squeezed(), H, W, Cin), lambda n: (n, 0, 0, 0)),
            _const_spec((9, Cin, Cout), lambda n: (0, 0, 0)),
            _const_spec((1, Cout), lambda n: (0, 0)),
            _const_spec((1, Cout), lambda n: (0, 0)),
        ],
        out_specs=pl.BlockSpec((pl.Squeezed(), Ho, Wo, Cout),
                               lambda n: (n, 0, 0, 0)),
        scratch_shapes=scratch,
        compiler_params=pltpu.CompilerParams(
            # batch axis is megacore-parallel on v7x (even batch keeps both
            # TensorCores busy)
            dimension_semantics=("parallel",),
            vmem_limit_bytes=_vmem_limit()),
    )(x, w9, scale, shift)


def _conv_im2col_kernel(p_ref, w_ref, scale_ref, shift_ref, o_ref,
                        hp_ref=None, *, H, W, K, Cout, pool, R):
    """First (RGB) conv layer on host-side im2col patches: one dense matmul
    per row tile instead of 9 K=3 matmuls on a lane-padded buffer.

    p_ref : (H, W, K)  bf16  im2col patches (K = 9*Cin padded to 32 lanes)
    w_ref : (K, Cout)  bf16
    """
    w = w_ref[...]
    for rt in range(H // R):
        patch = p_ref[pl.ds(rt * R, R), :, :].reshape(R * W, K)
        acc = jnp.dot(patch, w, preferred_element_type=jnp.float32)
        _bn_relu_pool_store(acc, scale_ref, shift_ref, o_ref, hp_ref,
                            rt, R, W, Cout, pool)


def conv_im2col_bn_relu(p, w_col, scale, shift, *, pool):
    """p: (N, H, W, Kp) bf16 im2col patches of the RGB input."""
    N, H, W, Kp = p.shape
    Cout = w_col.shape[-1]
    R = _pick_row_tile(H, pool)
    Ho, Wo = (H // 2, W // 2) if pool else (H, W)
    kernel = functools.partial(_conv_im2col_kernel,
                               H=H, W=W, K=Kp, Cout=Cout, pool=pool, R=R)
    scratch = []
    if pool:
        scratch.append(pltpu.VMEM((R // 2, W, Cout), jnp.float32))
    return pl.pallas_call(
        kernel,
        out_shape=jax.ShapeDtypeStruct((N, Ho, Wo, Cout), jnp.bfloat16),
        grid=(N,),
        in_specs=[
            pl.BlockSpec((pl.Squeezed(), H, W, Kp), lambda n: (n, 0, 0, 0)),
            _const_spec((Kp, Cout), lambda n: (0, 0)),
            _const_spec((1, Cout), lambda n: (0, 0)),
            _const_spec((1, Cout), lambda n: (0, 0)),
        ],
        out_specs=pl.BlockSpec((pl.Squeezed(), Ho, Wo, Cout),
                               lambda n: (n, 0, 0, 0)),
        scratch_shapes=scratch,
        compiler_params=pltpu.CompilerParams(
            dimension_semantics=("parallel",),
            vmem_limit_bytes=_vmem_limit()),
    )(p, w_col, scale, shift)


def _maxpool_kernel(x_ref, o_ref, hp_ref, *, H, W, C):
    Ho, Wo = H // 2, W // 2
    hp_ref[...] = jnp.max(x_ref[...].reshape(Ho, 2, W, C), axis=1)
    even = hp_ref[:, pl.ds(0, Wo, 2), :]
    odd = hp_ref[:, pl.ds(1, Wo, 2), :]
    o_ref[...] = jnp.maximum(even, odd)


def maxpool2x2(x):
    """Standalone nn.MaxPool2d(2,2); only used if a pool cannot be fused."""
    N, H, W, C = x.shape
    Ho, Wo = H // 2, W // 2
    kernel = functools.partial(_maxpool_kernel, H=H, W=W, C=C)
    return pl.pallas_call(
        kernel,
        out_shape=jax.ShapeDtypeStruct((N, Ho, Wo, C), x.dtype),
        grid=(N,),
        in_specs=[pl.BlockSpec((pl.Squeezed(), H, W, C), lambda n: (n, 0, 0, 0))],
        out_specs=pl.BlockSpec((pl.Squeezed(), Ho, Wo, C), lambda n: (n, 0, 0, 0)),
        scratch_shapes=[pltpu.VMEM((Ho, W, C), x.dtype)],
        compiler_params=pltpu.CompilerParams(
            dimension_semantics=("parallel",), vmem_limit_bytes=_vmem_limit()),
    )(x)


def _relu_linear_kernel(x_ref, w_ref, b_ref, o_ref, acc_ref):
    k = pl.program_id(1)

    @pl.when(k == 0)
    def _():
        acc_ref[...] = jnp.zeros_like(acc_ref)

    # classifier nn.ReLU (elementwise, so it distributes over the K split).
    # TODO(synk): nn.Dropout is implemented with eval-mode (identity) semantics.
    x = jnp.maximum(x_ref[...], 0.0)
    acc_ref[...] += jnp.dot(x, w_ref[...], preferred_element_type=jnp.float32)

    @pl.when(k == pl.num_programs(1) - 1)
    def _():
        o_ref[...] = acc_ref[...] + b_ref[...]


def relu_dropout_linear(x, w, b):
    """x: (N, K) bf16 NHWC-flattened features; w: (K, Mp) bf16 (rows permuted
    to NHWC order, columns lane-padded to Mp); b: (1, Mp) f32.  Out: (N, Mp) f32.

    K is split over an 'arbitrary' grid axis with a VMEM accumulator so the
    multi-MB weight DMA overlaps compute; the M tile is the whole batch (up to
    256 rows) instead of 8 to feed more MXU rows."""
    N, K = x.shape
    Mp = w.shape[1]
    if N <= 256:
        tn = N
    elif N % 256 == 0:
        tn = 256
    elif N % 128 == 0:
        tn = 128
    else:
        tn = N
    tk = _pick_k_tile(K)
    return pl.pallas_call(
        _relu_linear_kernel,
        out_shape=jax.ShapeDtypeStruct((N, Mp), jnp.float32),
        grid=(N // tn, K // tk),
        in_specs=[
            pl.BlockSpec((tn, tk), lambda i, k: (i, k)),
            pl.BlockSpec((tk, Mp), lambda i, k: (k, 0)),   # pipelined over K
            _const_spec((1, Mp), lambda i, k: (0, 0)),
        ],
        out_specs=pl.BlockSpec((tn, Mp), lambda i, k: (i, 0)),
        scratch_shapes=[pltpu.VMEM((tn, Mp), jnp.float32)],
        compiler_params=pltpu.CompilerParams(
            dimension_semantics=("parallel", "arbitrary"),
            vmem_limit_bytes=_vmem_limit()),
    )(x, w, b)


# --------------------------- params & forward ------------------------------

def _im2col_3x3(x, k_pad):
    """Host/XLA-side im2col for the RGB layer: (N,H,W,C) -> (N,H,W,k_pad) with
    the 9*C tap channels in (dy, dx, c) order, zero-padded on the lane dim."""
    N, H, W, C = x.shape
    xp = jnp.pad(x, ((0, 0), (1, 1), (1, 1), (0, 0)))
    taps = [xp[:, dy:dy + H, dx:dx + W, :] for dy in range(3) for dx in range(3)]
    p = jnp.concatenate(taps, axis=-1)                       # (N, H, W, 9*C)
    return jnp.pad(p, ((0, 0), (0, 0), (0, 0), (0, k_pad - 9 * C)))


def init_params(key, cfg, image_size, in_ch=3, num_classes=10):
    """Deterministic synthetic parameters matching make_layers(cfg, batch_norm=True)."""
    feats = []
    c, h, w = in_ch, image_size, image_size
    for l in cfg:
        if l == "M":
            feats.append({"type": "pool"})
            h //= 2
            w //= 2
            continue
        key, kw, kb, kg, kbt, km, kv = jax.random.split(key, 7)
        fan_in = 9 * c
        wgt = jax.random.normal(kw, (3, 3, c, l), jnp.float32) * jnp.sqrt(2.0 / fan_in)
        b = 0.01 * jax.random.normal(kb, (l,), jnp.float32)
        gamma = 1.0 + 0.1 * jax.random.normal(kg, (l,), jnp.float32)
        beta = 0.1 * jax.random.normal(kbt, (l,), jnp.float32)
        mean = 0.1 * jax.random.normal(km, (l,), jnp.float32)
        var = 1.0 + 0.5 * jax.random.uniform(kv, (l,), jnp.float32)
        scale = gamma / jnp.sqrt(var + BN_EPS)               # eval-mode BN
        shift = (b - mean) * scale + beta                    # conv bias folded in
        layer = {
            "type": "conv",
            # raw bf16 conv weights; BN scale applied in the f32 epilogue
            "w9": wgt.reshape(9, c, l).astype(jnp.bfloat16),
            "scale": scale.reshape(1, l),
            "shift": shift.reshape(1, l),
            # raw f32 params kept only for the pure-JAX reference check
            "w_hwio": wgt, "b": b, "gamma": gamma, "beta": beta,
            "mean": mean, "var": var,
        }
        if c <= 4:
            # RGB first layer: weights packed for the host-side im2col matmul.
            kcol = 9 * c
            kp = ((kcol + 31) // 32) * 32
            layer["w_col"] = jnp.pad(wgt.reshape(kcol, l),
                                     ((0, kp - kcol), (0, 0))).astype(jnp.bfloat16)
            layer["k_pad"] = kp
        feats.append(layer)
        c = l
    fc_in = c * h * w
    key, kw, kb = jax.random.split(key, 3)
    fc_w = jax.random.normal(kw, (fc_in, num_classes), jnp.float32) / jnp.sqrt(fc_in)
    fc_b = 0.01 * jax.random.normal(kb, (1, num_classes), jnp.float32)

    # One-time host-side prep: permute Linear rows so the kernel consumes the
    # NHWC flatten directly (no NHWC->NCHW HBM transpose per forward), and pad
    # the output lane dim to 128 so the classifier store is lane-dense.
    perm = np.arange(fc_in).reshape(c, h, w).transpose(1, 2, 0).reshape(-1)
    m_pad = max(128, ((num_classes + 127) // 128) * 128)
    fc_w_nhwc = jnp.pad(fc_w[perm], ((0, 0), (0, m_pad - num_classes))
                        ).astype(jnp.bfloat16)
    fc_b_pad = jnp.pad(fc_b, ((0, 0), (0, m_pad - num_classes)))
    return {"features": feats, "fc_w": fc_w, "fc_b": fc_b,
            "fc_w_nhwc": fc_w_nhwc, "fc_b_pad": fc_b_pad,
            "num_classes": num_classes}


def vgg_forward(params, x_nchw):
    """VGG.forward: features -> view(N, -1) -> ReLU -> Dropout -> Linear."""
    x = jnp.transpose(x_nchw, (0, 2, 3, 1)).astype(jnp.bfloat16)   # NCHW -> NHWC
    feats = params["features"]
    i = 0
    while i < len(feats):
        layer = feats[i]
        if layer["type"] == "conv":
            fuse_pool = i + 1 < len(feats) and feats[i + 1]["type"] == "pool"
            if "w_col" in layer:
                patches = _im2col_3x3(x, layer["k_pad"])
                x = conv_im2col_bn_relu(patches, layer["w_col"], layer["scale"],
                                        layer["shift"], pool=fuse_pool)
            else:
                x = conv3x3_bn_relu(x, layer["w9"], layer["scale"],
                                    layer["shift"], pool=fuse_pool)
            i += 2 if fuse_pool else 1
        else:
            x = maxpool2x2(x)
            i += 1
    n = x.shape[0]
    x_flat = x.reshape(n, -1)   # NHWC flatten; Linear rows are pre-permuted to match
    logits = relu_dropout_linear(x_flat, params["fc_w_nhwc"], params["fc_b_pad"])
    return logits[:, :params["num_classes"]]


def vgg_reference(params, x_nchw):
    """Pure-JAX f32 reference with identical semantics, for a correctness check."""
    x = jnp.transpose(x_nchw, (0, 2, 3, 1))
    for layer in params["features"]:
        if layer["type"] == "conv":
            z = jax.lax.conv_general_dilated(
                x, layer["w_hwio"], (1, 1), "SAME",
                dimension_numbers=("NHWC", "HWIO", "NHWC"),
                precision=jax.lax.Precision.HIGHEST)
            z = z + layer["b"]
            z = (z - layer["mean"]) / jnp.sqrt(layer["var"] + BN_EPS) \
                * layer["gamma"] + layer["beta"]
            x = jnp.maximum(z, 0.0)
        else:
            N, H, W, C = x.shape
            x = x.reshape(N, H // 2, 2, W // 2, 2, C).max(axis=(2, 4))
    x = jnp.transpose(x, (0, 3, 1, 2)).reshape(x.shape[0], -1)
    x = jnp.maximum(x, 0.0)
    return x @ params["fc_w"] + params["fc_b"]


if __name__ == "__main__":
    # Small, shape-consistent instantiation of the VGG template.  The original
    # model (cfg['F'] on 96x96 STL10 images) ends with 512*6*6 = 18432 features
    # feeding Linear(18432, num_classes).  Here a reduced cfg [32, 32, 'M',
    # 128, 'M'] on 48x48 inputs yields 128*12*12 = 18432, so Linear(18432, 10)
    # is exercised exactly as in the module, and all conv-kernel variants
    # (im2col RGB layer, plain and pool-fused 3x3 layers) are used.
    cfg_small = [32, 32, "M", 128, "M"]

    key = jax.random.PRNGKey(0)
    pkey, xkey = jax.random.split(key)
    params = init_params(pkey, cfg_small, image_size=48, in_ch=3, num_classes=10)
    x = jax.random.normal(xkey, (2, 3, 48, 48), jnp.float32)   # NCHW like torch

    out = jax.block_until_ready(vgg_forward(params, x))
    assert out.shape == (2, 10) and out.dtype == jnp.float32

    ref = jax.block_until_ready(vgg_reference(params, x))
    np.testing.assert_allclose(np.asarray(out), np.asarray(ref),
                               rtol=5e-2, atol=1e-1)   # bf16 matmul path
    print("KERNEL_OK")
</pallas_src>

<mosaic_0001>
module attributes {stable_mosaic.version = 11 : i64} {
  func.func @_copy_probe_kernel(%arg0: i32, %arg1: memref<8x128xf32, #tpu.memory_space<vmem>>, %arg2: memref<8x128xf32, #tpu.memory_space<vmem>>) attributes {dimension_semantics = [#tpu.dimension_semantics<arbitrary>], iteration_bounds = array<i64: 2>, scalar_prefetch = 0 : i64, scratch_operands = 0 : i64, tpu.core_type = #tpu.core_type<tc>, window_params = [{pipeline_mode = #tpu.pipeline_mode<synchronous>, transform_indices = @transform_0, window_bounds = array<i64: 8, 128>}, {pipeline_mode = #tpu.pipeline_mode<synchronous>, transform_indices = @transform_1, window_bounds = array<i64: 8, 128>}]} {
    %c0 = arith.constant 0 : index
    %c0_0 = arith.constant 0 : index
    %0 = vector.load %arg1[%c0, %c0_0] : memref<8x128xf32, #tpu.memory_space<vmem>>, vector<8x128xf32>
    %c0_1 = arith.constant 0 : index
    %c0_2 = arith.constant 0 : index
    %1 = vector.load %arg2[%c0_1, %c0_2] : memref<8x128xf32, #tpu.memory_space<vmem>>, vector<8x128xf32>
    tpu.vector_store %arg2[%c0_1, %c0_2], %0 {strides = array<i32>} : memref<8x128xf32, #tpu.memory_space<vmem>>, vector<8x128xf32>,
    return
  }
  func.func @transform_0(%arg0: i32) -> (i32, i32) {
    %c0_i32 = arith.constant 0 : i32
    %c0_i32_0 = arith.constant 0 : i32
    %c0_i32_1 = arith.constant 0 : i32
    return %c0_i32, %c0_i32_0 : i32, i32
  }
  func.func @transform_1(%arg0: i32) -> (i32, i32) {
    %c0_i32 = arith.constant 0 : i32
    %c0_i32_0 = arith.constant 0 : i32
    %c0_i32_1 = arith.constant 0 : i32
    return %c0_i32, %c0_i32_0 : i32, i32
  }
}

module attributes {stable_mosaic.version = 11 : i64} {
  func.func @_conv_im2col_kernel(%arg0: i32, %arg1: memref<1x48x48x32xbf16, #tpu.memory_space<vmem>>, %arg2: memref<32x32xbf16, #tpu.memory_space<vmem>>, %arg3: memref<1x32xf32, #tpu.memory_space<vmem>>, %arg4: memref<1x32xf32, #tpu.memory_space<vmem>>, %arg5: memref<1x48x48x32xbf16, #tpu.memory_space<vmem>>) attributes {dimension_semantics = [#tpu.dimension_semantics<parallel>], iteration_bounds = array<i64: 2>, scalar_prefetch = 0 : i64, scratch_operands = 0 : i64, tpu.core_type = #tpu.core_type<tc>, window_params = [{transform_indices = @transform_0, window_bounds = array<i64: 1, 48, 48, 32>}, {pipeline_mode = #tpu.pipeline_mode<synchronous>, transform_indices = @transform_1, window_bounds = array<i64: 32, 32>}, {pipeline_mode = #tpu.pipeline_mode<synchronous>, transform_indices = @transform_2, window_bounds = array<i64: 1, 32>}, {pipeline_mode = #tpu.pipeline_mode<synchronous>, transform_indices = @transform_3, window_bounds = array<i64: 1, 32>}, {transform_indices = @transform_4, window_bounds = array<i64: 1, 48, 48, 32>}]} {
    %c0 = arith.constant 0 : index
    %c0_0 = arith.constant 0 : index
    %0 = vector.load %arg2[%c0, %c0_0] : memref<32x32xbf16, #tpu.memory_space<vmem>>, vector<32x32xbf16>
    %c0_1 = arith.constant 0 : index
    %c0_2 = arith.constant 0 : index
    %c0_3 = arith.constant 0 : index
    %c0_4 = arith.constant 0 : index
    %1 = vector.load %arg1[%c0_1, %c0_2, %c0_3, %c0_4] : memref<1x48x48x32xbf16, #tpu.memory_space<vmem>>, vector<1x16x48x32xbf16>
    %2 = vector.shape_cast %1 : vector<1x16x48x32xbf16> to vector<16x48x32xbf16>
    %3 = vector.shape_cast %2 : vector<16x48x32xbf16> to vector<768x32xbf16>
    %cst = arith.constant dense<0.000000e+00> : vector<768x32xf32>
    %4 = tpu.matmul %3, %0, %cst {dimension_numbers = #tpu.dot_dimension_numbers<[1], [0], [0], [1], [0, 0, 1, 1], [], []>} : vector<768x32xbf16>, vector<32x32xbf16>, vector<768x32xf32> -> vector<768x32xf32>
    %c0_5 = arith.constant 0 : index
    %c0_6 = arith.constant 0 : index
    %5 = vector.load %arg3[%c0_5, %c0_6] : memref<1x32xf32, #tpu.memory_space<vmem>>, vector<1x32xf32>
    %6 = vector.broadcast %5 : vector<1x32xf32> to vector<768x32xf32>
    %7 = arith.mulf %4, %6 : vector<768x32xf32>
    %c0_7 = arith.constant 0 : index
    %c0_8 = arith.constant 0 : index
    %8 = vector.load %arg4[%c0_7, %c0_8] : memref<1x32xf32, #tpu.memory_space<vmem>>, vector<1x32xf32>
    %9 = vector.broadcast %8 : vector<1x32xf32> to vector<768x32xf32>
    %10 = arith.addf %7, %9 : vector<768x32xf32>
    %cst_9 = arith.constant 0.000000e+00 : f32
    %11 = vector.broadcast %cst_9 : f32 to vector<768x32xf32>
    %12 = arith.maximumf %10, %11 : vector<768x32xf32>
    %13 = vector.shape_cast %12 : vector<768x32xf32> to vector<16x48x32xf32>
    %14 = arith.truncf %13 : vector<16x48x32xf32> to vector<16x48x32xbf16>
    %c0_10 = arith.constant 0 : index
    %c0_11 = arith.constant 0 : index
    %c0_12 = arith.constant 0 : index
    %c0_13 = arith.constant 0 : index
    %15 = vector.load %arg5[%c0_10, %c0_11, %c0_12, %c0_13] : memref<1x48x48x32xbf16, #tpu.memory_space<vmem>>, vector<1x16x48x32xbf16>
    %16 = vector.shape_cast %15 : vector<1x16x48x32xbf16> to vector<16x48x32xbf16>
    %17 = vector.shape_cast %14 : vector<16x48x32xbf16> to vector<1x16x48x32xbf16>
    tpu.vector_store %arg5[%c0_10, %c0_11, %c0_12, %c0_13], %17 {strides = array<i32>} : memref<1x48x48x32xbf16, #tpu.memory_space<vmem>>, vector<1x16x48x32xbf16>,
    %c0_14 = arith.constant 0 : index
    %c16 = arith.constant 16 : index
    %c0_15 = arith.constant 0 : index
    %c0_16 = arith.constant 0 : index
    %18 = vector.load %arg1[%c0_14, %c16, %c0_15, %c0_16] : memref<1x48x48x32xbf16, #tpu.memory_space<vmem>>, vector<1x16x48x32xbf16>
    %19 = vector.shape_cast %18 : vector<1x16x48x32xbf16> to vector<16x48x32xbf16>
    %20 = vector.shape_cast %19 : vector<16x48x32xbf16> to vector<768x32xbf16>
    %cst_17 = arith.constant dense<0.000000e+00> : vector<768x32xf32>
    %21 = tpu.matmul %20, %0, %cst_17 {dimension_numbers = #tpu.dot_dimension_numbers<[1], [0], [0], [1], [0, 0, 1, 1], [], []>} : vector<768x32xbf16>, vector<32x32xbf16>, vector<768x32xf32> -> vector<768x32xf32>
    %c0_18 = arith.constant 0 : index
    %c0_19 = arith.constant 0 : index
    %22 = vector.load %arg3[%c0_18, %c0_19] : memref<1x32xf32, #tpu.memory_space<vmem>>, vector<1x32xf32>
    %23 = vector.broadcast %22 : vector<1x32xf32> to vector<768x32xf32>
    %24 = arith.mulf %21, %23 : vector<768x32xf32>
    %c0_20 = arith.constant 0 : index
    %c0_21 = arith.constant 0 : index
    %25 = vector.load %arg4[%c0_20, %c0_21] : memref<1x32xf32, #tpu.memory_space<vmem>>, vector<1x32xf32>
    %26 = vector.broadcast %25 : vector<1x32xf32> to vector<768x32xf32>
    %27 = arith.addf %24, %26 : vector<768x32xf32>
    %cst_22 = arith.constant 0.000000e+00 : f32
    %28 = vector.broadcast %cst_22 : f32 to vector<768x32xf32>
    %29 = arith.maximumf %27, %28 : vector<768x32xf32>
    %30 = vector.shape_cast %29 : vector<768x32xf32> to vector<16x48x32xf32>
    %31 = arith.truncf %30 : vector<16x48x32xf32> to vector<16x48x32xbf16>
    %c0_23 = arith.constant 0 : index
    %c16_24 = arith.constant 16 : index
    %c0_25 = arith.constant 0 : index
    %c0_26 = arith.constant 0 : index
    %32 = vector.load %arg5[%c0_23, %c16_24, %c0_25, %c0_26] : memref<1x48x48x32xbf16, #tpu.memory_space<vmem>>, vector<1x16x48x32xbf16>
    %33 = vector.shape_cast %32 : vector<1x16x48x32xbf16> to vector<16x48x32xbf16>
    %34 = vector.shape_cast %31 : vector<16x48x32xbf16> to vector<1x16x48x32xbf16>
    tpu.vector_store %arg5[%c0_23, %c16_24, %c0_25, %c0_26], %34 {strides = array<i32>} : memref<1x48x48x32xbf16, #tpu.memory_space<vmem>>, vector<1x16x48x32xbf16>,
    %c0_27 = arith.constant 0 : index
    %c32 = arith.constant 32 : index
    %c0_28 = arith.constant 0 : index
    %c0_29 = arith.constant 0 : index
    %35 = vector.load %arg1[%c0_27, %c32, %c0_28, %c0_29] : memref<1x48x48x32xbf16, #tpu.memory_space<vmem>>, vector<1x16x48x32xbf16>
    %36 = vector.shape_cast %35 : vector<1x16x48x32xbf16> to vector<16x48x32xbf16>
    %37 = vector.shape_cast %36 : vector<16x48x32xbf16> to vector<768x32xbf16>
    %cst_30 = arith.constant dense<0.000000e+00> : vector<768x32xf32>
    %38 = tpu.matmul %37, %0, %cst_30 {dimension_numbers = #tpu.dot_dimension_numbers<[1], [0], [0], [1], [0, 0, 1, 1], [], []>} : vector<768x32xbf16>, vector<32x32xbf16>, vector<768x32xf32> -> vector<768x32xf32>
    %c0_31 = arith.constant 0 : index
    %c0_32 = arith.constant 0 : index
    %39 = vector.load %arg3[%c0_31, %c0_32] : memref<1x32xf32, #tpu.memory_space<vmem>>, vector<1x32xf32>
    %40 = vector.broadcast %39 : vector<1x32xf32> to vector<768x32xf32>
    %41 = arith.mulf %38, %40 : vector<768x32xf32>
    %c0_33 = arith.constant 0 : index
    %c0_34 = arith.constant 0 : index
    %42 = vector.load %arg4[%c0_33, %c0_34] : memref<1x32xf32, #tpu.memory_space<vmem>>, vector<1x32xf32>
    %43 = vector.broadcast %42 : vector<1x32xf32> to vector<768x32xf32>
    %44 = arith.addf %41, %43 : vector<768x32xf32>
    %cst_35 = arith.constant 0.000000e+00 : f32
    %45 = vector.broadcast %cst_35 : f32 to vector<768x32xf32>
    %46 = arith.maximumf %44, %45 : vector<768x32xf32>
    %47 = vector.shape_cast %46 : vector<768x32xf32> to vector<16x48x32xf32>
    %48 = arith.truncf %47 : vector<16x48x32xf32> to vector<16x48x32xbf16>
    %c0_36 = arith.constant 0 : index
    %c32_37 = arith.constant 32 : index
    %c0_38 = arith.constant 0 : index
    %c0_39 = arith.constant 0 : index
    %49 = vector.load %arg5[%c0_36, %c32_37, %c0_38, %c0_39] : memref<1x48x48x32xbf16, #tpu.memory_space<vmem>>, vector<1x16x48x32xbf16>
    %50 = vector.shape_cast %49 : vector<1x16x48x32xbf16> to vector<16x48x32xbf16>
    %51 = vector.shape_cast %48 : vector<16x48x32xbf16> to vector<1x16x48x32xbf16>
    tpu.vector_store %arg5[%c0_36, %c32_37, %c0_38, %c0_39], %51 {strides = array<i32>} : memref<1x48x48x32xbf16, #tpu.memory_space<vmem>>, vector<1x16x48x32xbf16>,
    return
  }
  func.func @transform_0(%arg0: i32) -> (i32, i32, i32, i32) {
    %c0_i32 = arith.constant 0 : i32
    %c0_i32_0 = arith.constant 0 : i32
    %c0_i32_1 = arith.constant 0 : i32
    %c0_i32_2 = arith.constant 0 : i32
    return %arg0, %c0_i32, %c0_i32_0, %c0_i32_1 : i32, i32, i32, i32
  }
  func.func @transform_1(%arg0: i32) -> (i32, i32) {
    %c0_i32 = arith.constant 0 : i32
    %c0_i32_0 = arith.constant 0 : i32
    %c0_i32_1 = arith.constant 0 : i32
    return %c0_i32, %c0_i32_0 : i32, i32
  }
  func.func @transform_2(%arg0: i32) -> (i32, i32) {
    %c0_i32 = arith.constant 0 : i32
    %c0_i32_0 = arith.constant 0 : i32
    %c0_i32_1 = arith.constant 0 : i32
    return %c0_i32, %c0_i32_0 : i32, i32
  }
  func.func @transform_3(%arg0: i32) -> (i32, i32) {
    %c0_i32 = arith.constant 0 : i32
    %c0_i32_0 = arith.constant 0 : i32
    %c0_i32_1 = arith.constant 0 : i32
    return %c0_i32, %c0_i32_0 : i32, i32
  }
  func.func @transform_4(%arg0: i32) -> (i32, i32, i32, i32) {
    %c0_i32 = arith.constant 0 : i32
    %c0_i32_0 = arith.constant 0 : i32
    %c0_i32_1 = arith.constant 0 : i32
    %c0_i32_2 = arith.constant 0 : i32
    return %arg0, %c0_i32, %c0_i32_0, %c0_i32_1 : i32, i32, i32, i32
  }
}

</mosaic_0001>

<llo_original>
// kernel: tpu_custom_call.1
$region0: #{tpu_custom_call.1}
  #allocation0 [shape = 'u32[]', space=smem, size = 0x4, offset = 0x4, fixed_abs, tag = 'smem constant byte address 0x4 - core index']
  #allocation1 [shape = 'u32[72,128]{1,0:T(1,128)}', space=vmem, size = 0x9000, scoped, tag = 'internal scratch']
  %s0 = inlined_call_operand.hbm [shape: f32[8,128], index: 0, kind: input, shape index: {}]
  %s1 = inlined_call_operand.hbm [shape: f32[8,128], index: 1, kind: output, shape index: {}]
  %s2 = sld [smem:[#allocation0]]
  $region41: #{tpu_custom_call.1} parent=0
    _
  %s4 = ssub.s32 1, %s2
  %s5 = scalar_select 0, %s4, %s2
  $region1: #{tpu_custom_call.1} parent=0
    #allocation2 [shape = 'u8[4096]{0}', space=vmem, size = 0x1000, scoped, tag = 'input window, operand 0, single buffered']
    #allocation3 [shape = 's32[2]{0}', space=sflag, size = 0x8, scoped, tag = 'scoped memory for tpu_custom_call.1']
    #allocation4 [shape = 's32[2]{0}', space=sflag, size = 0x8, scoped, tag = 'scoped memory for tpu_custom_call.1']
    #allocation5 [shape = 'u8[4096]{0}', space=vmem, size = 0x1000, scoped, tag = 'output window, operand 0, single buffered']
    %6 = vsyncpa [#allocation3], 0
    %7 = vsyncpa [#allocation4], 0
    loop: start=0, step=1, limit=4
    $region2: #{tpu_custom_call.1} parent=1 // loop_pre_header
      _
    $region3: #{tpu_custom_call.1} parent=1 // loop_header
      %s9 = sphi 0, %s13
      %p10 = scmp.ge.s32.totalorder %s9, 4
      %s17 = sphi 0, %s17
      %s19 = sphi 0, %s17
      %s20 = sphi 0, %s19
      %s34 = sphi 0, %s20
      %s38 = sphi 0, %s38
      %s40 = sphi 0, %s38
      %s41 = sphi 0, %s40
      %s55 = sphi 0, %s41
    $region4: #{tpu_custom_call.1} parent=1 // loop_header_branch
      %12 = sbr.rel (%p10) target = $region8
    $region5: #{tpu_custom_call.1} parent=1 // loop_body
      %s14 = ssub.s32 %s9, 1
      %s15 = ssub.s32 %s9, 2
      %s16 = sadd.s32 %s9, 1
      %s18 = sadd.s32 %s17, 1
      %p21 = scmp.eq.s32.totalorder %s9, 1
      %p22 = scmp.ne.s32.totalorder %s17, %s19
      %p23 = scmp.eq.s32.totalorder %s9, 0
      %p24 = por %p22, %p23
      %p25 = scmp.ne.s32.totalorder %s17, %s19
      %p26 = scmp.eq.s32.totalorder %s14, 1
      %p27 = por %p25, %p26
      %p28 = scmp.ne.s32.totalorder %s19, %s20
      %p29 = scmp.eq.s32.totalorder %s14, 0
      %p30 = por %p28, %p29
      %p31 = scmp.ne.s32.totalorder %s19, %s20
      %p32 = scmp.eq.s32.totalorder %s15, 1
      %p33 = por %p31, %p32
      %p35 = scmp.ne.s32.totalorder %s20, %s34
      %p36 = scmp.eq.s32.totalorder %s15, 0
      %p37 = por %p35, %p36
      %s39 = sadd.s32 %s38, 1
      %p42 = scmp.eq.s32.totalorder %s9, 1
      %p43 = scmp.ne.s32.totalorder %s38, %s40
      %p44 = scmp.eq.s32.totalorder %s9, 0
      %p45 = por %p43, %p44
      %p46 = scmp.ne.s32.totalorder %s38, %s40
      %p47 = scmp.eq.s32.totalorder %s14, 1
      %p48 = por %p46, %p47
      %p49 = scmp.ne.s32.totalorder %s40, %s41
      %p50 = scmp.eq.s32.totalorder %s14, 0
      %p51 = por %p49, %p50
      %p52 = scmp.ne.s32.totalorder %s40, %s41
      %p53 = scmp.eq.s32.totalorder %s15, 1
      %p54 = por %p52, %p53
      %p56 = scmp.ne.s32.totalorder %s41, %s55
      %p57 = scmp.eq.s32.totalorder %s15, 0
      %p58 = por %p56, %p57
      %p59 = scmp.le.s32.totalorder 1, %s9
      %p60 = scmp.lt.s32.totalorder %s9, 3
      %p61 = pnand %p59, %p60
      %p62 = pneg %p61
      // Predicated region
      $region9: #{tpu_custom_call.1} parent=5 // pred_check
        _
      $region10: #{tpu_custom_call.1} parent=5 // pred_check_branch
        %64 = sbr.rel (%p61) target = $region12
      $region11: #{tpu_custom_call.1} parent=5 // pred_region
        %s65 = ssub.s32 %s9, 1
        // Predicated region
        $region13: #{tpu_custom_call.1} parent=11 // pred_check
          %p66 = pneg %p30
        $region14: #{tpu_custom_call.1} parent=11 // pred_check_branch
          %68 = sbr.rel (%p66) target = $region16
        $region15: #{tpu_custom_call.1} parent=11 // pred_region
          %70 = vsyncadd [#allocation3], 0
          %s72 = sshll.u32 %s0, 4
          %s73 = int_to_ptr.hbm [resolvable:$true] %s72
          %s74 = sshll.u32 [#allocation2], 4
          %s75 = int_to_ptr.vmem [resolvable:$true] %s74
          %77 = dma.hbm_to_vmem [thread:$0]  %s73, 128, %s75, [#allocation3]
        $region16: #{tpu_custom_call.1} parent=11 // pred_fallthru
          _
      $region12: #{tpu_custom_call.1} parent=5 // pred_fallthru
        _
      %p78 = scmp.lt.s32.totalorder %s9, 2
      // Predicated region
      $region17: #{tpu_custom_call.1} parent=5 // pred_check
        %p79 = pneg %p78
      $region18: #{tpu_custom_call.1} parent=5 // pred_check_branch
        %81 = sbr.rel (%p79) target = $region20
      $region19: #{tpu_custom_call.1} parent=5 // pred_region
        _
      $region20: #{tpu_custom_call.1} parent=5 // pred_fallthru
        _
      %p82 = scmp.le.s32.totalorder 1, %s9
      %p83 = scmp.lt.s32.totalorder %s9, 3
      %p84 = pnand %p82, %p83
      %p85 = pneg %p84
      // Predicated region
      $region21: #{tpu_custom_call.1} parent=5 // pred_check
        _
      $region22: #{tpu_custom_call.1} parent=5 // pred_check_branch
        %87 = sbr.rel (%p84) target = $region24
      $region23: #{tpu_custom_call.1} parent=5 // pred_region
        %s88 = ssub.s32 %s9, 1
        // Predicated region
        $region25: #{tpu_custom_call.1} parent=23 // pred_check
          %p89 = pneg %p30
        $region26: #{tpu_custom_call.1} parent=23 // pred_check_branch
          %91 = sbr.rel (%p89) target = $region28
        $region27: #{tpu_custom_call.1} parent=23 // pred_region
          %93 = dma.done [#allocation3], 128
        $region28: #{tpu_custom_call.1} parent=23 // pred_fallthru
          _
        %p94 = pneg %p30
        %p95 = pneg %p27
        %p96 = pneg %p51
        %p97 = pneg %p48
        %v98 = vld [vmem:[#allocation2] sm:$0xff]
        %99 = vst [vmem:[#allocation5] sm:$0xff] %v98
        // Predicated region
        $region29: #{tpu_custom_call.1} parent=23 // pred_check
          %p100 = pneg %p48
        $region30: #{tpu_custom_call.1} parent=23 // pred_check_branch
          %102 = sbr.rel (%p100) target = $region32
        $region31: #{tpu_custom_call.1} parent=23 // pred_region
          %104 = vsyncadd [#allocation4], 0
          %s106 = sshll.u32 [#allocation5], 4
          %s107 = int_to_ptr.vmem [resolvable:$true] %s106
          %s108 = sshll.u32 %s1, 4
          %s109 = int_to_ptr.hbm [resolvable:$true] %s108
          %111 = dma.vmem_to_hbm [thread:$0]  %s107, 128, %s109, [#allocation4]
        $region32: #{tpu_custom_call.1} parent=23 // pred_fallthru
          _
        // Predicated region
        $region33: #{tpu_custom_call.1} parent=23 // pred_check
          %p112 = pneg %p48
        $region34: #{tpu_custom_call.1} parent=23 // pred_check_branch
          %114 = sbr.rel (%p112) target = $region36
        $region35: #{tpu_custom_call.1} parent=23 // pred_region
          %116 = dma.done [#allocation4], 128
        $region36: #{tpu_custom_call.1} parent=23 // pred_fallthru
          _
      $region24: #{tpu_custom_call.1} parent=5 // pred_fallthru
        _
      %p117 = scmp.le.s32.totalorder 2, %s9
      // Predicated region
      $region37: #{tpu_custom_call.1} parent=5 // pred_check
        %p118 = pneg %p117
      $region38: #{tpu_custom_call.1} parent=5 // pred_check_branch
        %120 = sbr.rel (%p118) target = $region40
      $region39: #{tpu_custom_call.1} parent=5 // pred_region
        %s121 = ssub.s32 %s9, 2
      $region40: #{tpu_custom_call.1} parent=5 // pred_fallthru
        _
    $region6: #{tpu_custom_call.1} parent=1 // loop_footer
      %s13 = sadd.s32 1, %s9
    $region7: #{tpu_custom_call.1} parent=1 // loop_footer_branch
      %8 = sbr.rel target = $region3
    $region8: #{tpu_custom_call.1} parent=1 // loop_exit
      _
    %122 = vsyncpa [#allocation3], 1
    %s123 = scalar_lea.sflag [#allocation3], 1
    %124 = vsyncpa %s123, 1
    %125 = vsyncpa [#allocation4], 1
    %s126 = scalar_lea.sflag [#allocation4], 1
    %127 = vsyncpa %s126, 1

// kernel: tpu_custom_call.1
$region0: #{tpu_custom_call.1}
  #allocation0 [shape = 'u32[]', space=smem, size = 0x4, offset = 0x4, fixed_abs, tag = 'smem constant byte address 0x4 - core index']
  #allocation1 [shape = 'u32[72,128]{1,0:T(1,128)}', space=vmem, size = 0x9000, scoped, tag = 'internal scratch']
  %s0 = inlined_call_operand.vmem [shape: bf16[2,48,48,32], index: 0, kind: input, shape index: {}]
  %s1 = inlined_call_operand.vmem [shape: bf16[32,32], index: 1, kind: input, shape index: {}]
  %s2 = inlined_call_operand.vmem [shape: f32[1,32], index: 2, kind: input, shape index: {}]
  %s3 = inlined_call_operand.vmem [shape: f32[1,32], index: 3, kind: input, shape index: {}]
  %s4 = inlined_call_operand.vmem [shape: bf16[2,48,48,32], index: 4, kind: output, shape index: {}]
  %s5 = sld [smem:[#allocation0]]
  $region49: #{tpu_custom_call.1} parent=0
    _
  %s7 = ssub.s32 1, %s5
  %s8 = scalar_select 0, %s7, %s5
  loop: start=0, step=1, limit=4
  $region2: #{tpu_custom_call.1} parent=0 // loop_pre_header
    _
  $region3: #{tpu_custom_call.1} parent=0 // loop_header
    %s10 = sphi 0, %s14
    %p11 = scmp.ge.s32.totalorder %s10, 4
    %s20 = sphi 0, %s22
    %s23 = sphi 0, %s20
    %s24 = sphi 0, %s23
    %s40 = sphi 0, %s24
    %s44 = sphi 0, %s44
    %s46 = sphi 0, %s44
    %s47 = sphi 0, %s46
    %s61 = sphi 0, %s47
    %s65 = sphi 0, %s65
    %s67 = sphi 0, %s65
    %s68 = sphi 0, %s67
    %s82 = sphi 0, %s68
    %s86 = sphi 0, %s86
    %s88 = sphi 0, %s86
    %s89 = sphi 0, %s88
    %s103 = sphi 0, %s89
    %s109 = sphi 0, %s111
    %s112 = sphi 0, %s109
    %s113 = sphi 0, %s112
    %s129 = sphi 0, %s113
  $region4: #{tpu_custom_call.1} parent=0 // loop_header_branch
    %13 = sbr.rel (%p11) target = $region8
  $region5: #{tpu_custom_call.1} parent=0 // loop_body
    %s15 = ssub.s32 %s10, 1
    %s16 = ssub.s32 %s10, 2
    %s17 = sadd.s32 %s10, 1
    %s18 = ssub.s32 %s10, %s17
    %p19 = scmp.eq.s32.totalorder %s18, 0
    %s21 = sadd.s32 %s20, 1
    %s22 = scalar_select %p19, %s20, %s21
    %p25 = pneg %p19
    %p26 = scmp.eq.s32.totalorder %s10, 1
    %p27 = por %p25, %p26
    %p28 = scmp.ne.s32.totalorder %s20, %s23
    %p29 = scmp.eq.s32.totalorder %s10, 0
    %p30 = por %p28, %p29
    %p31 = scmp.ne.s32.totalorder %s20, %s23
    %p32 = scmp.eq.s32.totalorder %s15, 1
    %p33 = por %p31, %p32
    %p34 = scmp.ne.s32.totalorder %s23, %s24
    %p35 = scmp.eq.s32.totalorder %s15, 0
    %p36 = por %p34, %p35
    %p37 = scmp.ne.s32.totalorder %s23, %s24
    %p38 = scmp.eq.s32.totalorder %s16, 1
    %p39 = por %p37, %p38
    %p41 = scmp.ne.s32.totalorder %s24, %s40
    %p42 = scmp.eq.s32.totalorder %s16, 0
    %p43 = por %p41, %p42
    %s45 = sadd.s32 %s44, 1
    %p48 = scmp.eq.s32.totalorder %s10, 1
    %p49 = scmp.ne.s32.totalorder %s44, %s46
    %p50 = scmp.eq.s32.totalorder %s10, 0
    %p51 = por %p49, %p50
    %p52 = scmp.ne.s32.totalorder %s44, %s46
    %p53 = scmp.eq.s32.totalorder %s15, 1
    %p54 = por %p52, %p53
    %p55 = scmp.ne.s32.totalorder %s46, %s47
    %p56 = scmp.eq.s32.totalorder %s15, 0
    %p57 = por %p55, %p56
    %p58 = scmp.ne.s32.totalorder %s46, %s47
    %p59 = scmp.eq.s32.totalorder %s16, 1
    %p60 = por %p58, %p59
    %p62 = scmp.ne.s32.totalorder %s47, %s61
    %p63 = scmp.eq.s32.totalorder %s16, 0
    %p64 = por %p62, %p63
    %s66 = sadd.s32 %s65, 1
    %p69 = scmp.eq.s32.totalorder %s10, 1
    %p70 = scmp.ne.s32.totalorder %s65, %s67
    %p71 = scmp.eq.s32.totalorder %s10, 0
    %p72 = por %p70, %p71
    %p73 = scmp.ne.s32.totalorder %s65, %s67
    %p74 = scmp.eq.s32.totalorder %s15, 1
    %p75 = por %p73, %p74
    %p76 = scmp.ne.s32.totalorder %s67, %s68
    %p77 = scmp.eq.s32.totalorder %s15, 0
    %p78 = por %p76, %p77
    %p79 = scmp.ne.s32.totalorder %s67, %s68
    %p80 = scmp.eq.s32.totalorder %s16, 1
    %p81 = por %p79, %p80
    %p83 = scmp.ne.s32.totalorder %s68, %s82
    %p84 = scmp.eq.s32.totalorder %s16, 0
    %p85 = por %p83, %p84
    %s87 = sadd.s32 %s86, 1
    %p90 = scmp.eq.s32.totalorder %s10, 1
    %p91 = scmp.ne.s32.totalorder %s86, %s88
    %p92 = scmp.eq.s32.totalorder %s10, 0
    %p93 = por %p91, %p92
    %p94 = scmp.ne.s32.totalorder %s86, %s88
    %p95 = scmp.eq.s32.totalorder %s15, 1
    %p96 = por %p94, %p95
    %p97 = scmp.ne.s32.totalorder %s88, %s89
    %p98 = scmp.eq.s32.totalorder %s15, 0
    %p99 = por %p97, %p98
    %p100 = scmp.ne.s32.totalorder %s88, %s89
    %p101 = scmp.eq.s32.totalorder %s16, 1
    %p102 = por %p100, %p101
    %p104 = scmp.ne.s32.totalorder %s89, %s103
    %p105 = scmp.eq.s32.totalorder %s16, 0
    %p106 = por %p104, %p105
    %s107 = ssub.s32 %s10, %s17
    %p108 = scmp.eq.s32.totalorder %s107, 0
    %s110 = sadd.s32 %s109, 1
    %s111 = scalar_select %p108, %s109, %s110
    %p114 = pneg %p108
    %p115 = scmp.eq.s32.totalorder %s10, 1
    %p116 = por %p114, %p115
    %p117 = scmp.ne.s32.totalorder %s109, %s112
    %p118 = scmp.eq.s32.totalorder %s10, 0
    %p119 = por %p117, %p118
    %p120 = scmp.ne.s32.totalorder %s109, %s112
    %p121 = scmp.eq.s32.totalorder %s15, 1
    %p122 = por %p120, %p121
    %p123 = scmp.ne.s32.totalorder %s112, %s113
    %p124 = scmp.eq.s32.totalorder %s15, 0
    %p125 = por %p123, %p124
    %p126 = scmp.ne.s32.totalorder %s112, %s113
    %p127 = scmp.eq.s32.totalorder %s16, 1
    %p128 = por %p126, %p127
    %p130 = scmp.ne.s32.totalorder %s113, %s129
    %p131 = scmp.eq.s32.totalorder %s16, 0
    %p132 = por %p130, %p131
    %p133 = scmp.le.s32.totalorder 1, %s10
    %p134 = scmp.lt.s32.totalorder %s10, 3
    %p135 = pnand %p133, %p134
    %p136 = pneg %p135
    // Predicated region
    $region9: #{tpu_custom_call.1} parent=5 // pred_check
      _
    $region10: #{tpu_custom_call.1} parent=5 // pred_check_branch
      %138 = sbr.rel (%p135) target = $region12
    $region11: #{tpu_custom_call.1} parent=5 // pred_region
      %s139 = ssub.s32 %s10, 1
      // Predicated region
      $region13: #{tpu_custom_call.1} parent=11 // pred_check
        %p140 = pneg %p57
      $region14: #{tpu_custom_call.1} parent=11 // pred_check_branch
        %142 = sbr.rel (%p140) target = $region16
      $region15: #{tpu_custom_call.1} parent=11 // pred_region
        _
      $region16: #{tpu_custom_call.1} parent=11 // pred_fallthru
        _
      // Predicated region
      $region17: #{tpu_custom_call.1} parent=11 // pred_check
        %p143 = pneg %p78
      $region18: #{tpu_custom_call.1} parent=11 // pred_check_branch
        %145 = sbr.rel (%p143) target = $region20
      $region19: #{tpu_custom_call.1} parent=11 // pred_region
        _
      $region20: #{tpu_custom_call.1} parent=11 // pred_fallthru
        _
      // Predicated region
      $region21: #{tpu_custom_call.1} parent=11 // pred_check
        %p146 = pneg %p99
      $region22: #{tpu_custom_call.1} parent=11 // pred_check_branch
        %148 = sbr.rel (%p146) target = $region24
      $region23: #{tpu_custom_call.1} parent=11 // pred_region
        _
      $region24: #{tpu_custom_call.1} parent=11 // pred_fallthru
        _
    $region12: #{tpu_custom_call.1} parent=5 // pred_fallthru
      _
    %p149 = scmp.lt.s32.totalorder %s10, 2
    // Predicated region
    $region25: #{tpu_custom_call.1} parent=5 // pred_check
      %p150 = pneg %p149
    $region26: #{tpu_custom_call.1} parent=5 // pred_check_branch
      %152 = sbr.rel (%p150) target = $region28
    $region27: #{tpu_custom_call.1} parent=5 // pred_region
      // Predicated region
      $region29: #{tpu_custom_call.1} parent=27 // pred_check
        %p153 = pneg %p30
      $region30: #{tpu_custom_call.1} parent=27 // pred_check_branch
        %155 = sbr.rel (%p153) target = $region32
      $region31: #{tpu_custom_call.1} parent=27 // pred_region
        %p156 = scmp.lt.s32.totalorder %s10, 1
        %s157 = scalar_select %p156, %s10, 1
        %s158 = smul.addr %s157, 288
        %s159 = smul.addr %s158, 4
        %s160 = scalar_lea.vmem %s0, %s159
      $region32: #{tpu_custom_call.1} parent=27 // pred_fallthru
        _
    $region28: #{tpu_custom_call.1} parent=5 // pred_fallthru
      _
    %p161 = scmp.le.s32.totalorder 1, %s10
    %p162 = scmp.lt.s32.totalorder %s10, 3
    %p163 = pnand %p161, %p162
    %p164 = pneg %p163
    // Predicated region
    $region33: #{tpu_custom_call.1} parent=5 // pred_check
      _
    $region34: #{tpu_custom_call.1} parent=5 // pred_check_branch
      %166 = sbr.rel (%p163) target = $region36
    $region35: #{tpu_custom_call.1} parent=5 // pred_region
      %s167 = ssub.s32 %s10, 1
      %p168 = scmp.lt.s32.totalorder %s15, 1
      %s169 = scalar_select %p168, %s15, 1
      %s170 = smul.addr %s169, 288
      %s171 = smul.addr %s170, 4
      %s172 = scalar_lea.vmem %s0, %s171
      %p173 = pneg %p36
      %p174 = pneg %p33
      %p175 = pneg %p57
      %p176 = pneg %p54
      %p177 = pneg %p78
      %p178 = pneg %p75
      %p179 = pneg %p99
      %p180 = pneg %p96
      %p181 = pneg %p125
      %p182 = pneg %p122
      %p183 = scmp.lt.s32.totalorder %s15, 1
      %s184 = scalar_select %p183, %s15, 1
      %s185 = smul.addr %s184, 288
      %s186 = smul.addr %s185, 4
      %s187 = scalar_lea.vmem %s4, %s186
      %p188 = scmp.lt.s32.totalorder %s15, 1
      %s189 = scalar_select %p188, %s15, 1
      %s190 = smul.addr %s189, 288
      %s191 = smul.addr %s190, 4
      %s192 = scalar_lea.vmem %s0, %s191
      %p193 = scmp.lt.s32.totalorder %s15, 1
      %s194 = scalar_select %p193, %s15, 1
      %s195 = smul.addr %s194, 288
      %s196 = smul.addr %s195, 4
      %s197 = scalar_lea.vmem %s4, %s196
      %v199 = vld [vmem:[%s1] sm:$0xf]
      %v200 = vld [vmem:[%s1 + $0x4] sm:$0xf]
      %v201 = vld [vmem:[%s1 + $0x8] sm:$0xf]
      %v202 = vld [vmem:[%s1 + $0xc] sm:$0xf]
      %v203 = vld [vmem:[%s192] sm:$0xf]
      %v204 = vld [vmem:[%s192 + $0x4] sm:$0xf]
      %v205 = vld [vmem:[%s192 + $0x8] sm:$0xf]
      %v206 = vld [vmem:[%s192 + $0xc] sm:$0xf]
      %v207 = vld [vmem:[%s192 + $0x10] sm:$0xf]
      %v208 = vld [vmem:[%s192 + $0x14] sm:$0xf]
      %v209 = vld [vmem:[%s192 + $0x18] sm:$0xf]
      %v210 = vld [vmem:[%s192 + $0x1c] sm:$0xf]
      %v211 = vld [vmem:[%s192 + $0x20] sm:$0xf]
      %v212 = vld [vmem:[%s192 + $0x24] sm:$0xf]
      %v213 = vld [vmem:[%s192 + $0x28] sm:$0xf]
      %v214 = vld [vmem:[%s192 + $0x2c] sm:$0xf]
      %v215 = vld [vmem:[%s192 + $0x30] sm:$0xf]
      %v216 = vld [vmem:[%s192 + $0x34] sm:$0xf]
      %v217 = vld [vmem:[%s192 + $0x38] sm:$0xf]
      %v218 = vld [vmem:[%s192 + $0x3c] sm:$0xf]
      %v219 = vld [vmem:[%s192 + $0x40] sm:$0xf]
      %v220 = vld [vmem:[%s192 + $0x44] sm:$0xf]
      %v221 = vld [vmem:[%s192 + $0x48] sm:$0xf]
      %v222 = vld [vmem:[%s192 + $0x4c] sm:$0xf]
      %v223 = vld [vmem:[%s192 + $0x50] sm:$0xf]
      %v224 = vld [vmem:[%s192 + $0x54] sm:$0xf]
      %v225 = vld [vmem:[%s192 + $0x58] sm:$0xf]
      %v226 = vld [vmem:[%s192 + $0x5c] sm:$0xf]
      %v227 = vld [vmem:[%s192 + $0x60] sm:$0xf]
      %v228 = vld [vmem:[%s192 + $0x64] sm:$0xf]
      %v229 = vld [vmem:[%s192 + $0x68] sm:$0xf]
      %v230 = vld [vmem:[%s192 + $0x6c] sm:$0xf]
      %v231 = vld [vmem:[%s192 + $0x70] sm:$0xf]
      %v232 = vld [vmem:[%s192 + $0x74] sm:$0xf]
      %v233 = vld [vmem:[%s192 + $0x78] sm:$0xf]
      %v234 = vld [vmem:[%s192 + $0x7c] sm:$0xf]
      %v235 = vld [vmem:[%s192 + $0x80] sm:$0xf]
      %v236 = vld [vmem:[%s192 + $0x84] sm:$0xf]
      %v237 = vld [vmem:[%s192 + $0x88] sm:$0xf]
      %v238 = vld [vmem:[%s192 + $0x8c] sm:$0xf]
      %v239 = vld [vmem:[%s192 + $0x90] sm:$0xf]
      %v240 = vld [vmem:[%s192 + $0x94] sm:$0xf]
      %v241 = vld [vmem:[%s192 + $0x98] sm:$0xf]
      %v242 = vld [vmem:[%s192 + $0x9c] sm:$0xf]
      %v243 = vld [vmem:[%s192 + $0xa0] sm:$0xf]
      %v244 = vld [vmem:[%s192 + $0xa4] sm:$0xf]
      %v245 = vld [vmem:[%s192 + $0xa8] sm:$0xf]
      %v246 = vld [vmem:[%s192 + $0xac] sm:$0xf]
      %v247 = vld [vmem:[%s192 + $0xb0] sm:$0xf]
      %v248 = vld [vmem:[%s192 + $0xb4] sm:$0xf]
      %v249 = vld [vmem:[%s192 + $0xb8] sm:$0xf]
      %v250 = vld [vmem:[%s192 + $0xbc] sm:$0xf]
      %v251 = vld [vmem:[%s192 + $0xc0] sm:$0xf]
      %v252 = vld [vmem:[%s192 + $0xc4] sm:$0xf]
      %v253 = vld [vmem:[%s192 + $0xc8] sm:$0xf]
      %v254 = vld [vmem:[%s192 + $0xcc] sm:$0xf]
      %v255 = vld [vmem:[%s192 + $0xd0] sm:$0xf]
      %v256 = vld [vmem:[%s192 + $0xd4] sm:$0xf]
      %v257 = vld [vmem:[%s192 + $0xd8] sm:$0xf]
      %v258 = vld [vmem:[%s192 + $0xdc] sm:$0xf]
      %v259 = vld [vmem:[%s192 + $0xe0] sm:$0xf]
      %v260 = vld [vmem:[%s192 + $0xe4] sm:$0xf]
      %v261 = vld [vmem:[%s192 + $0xe8] sm:$0xf]
      %v262 = vld [vmem:[%s192 + $0xec] sm:$0xf]
      %v263 = vld [vmem:[%s192 + $0xf0] sm:$0xf]
      %v264 = vld [vmem:[%s192 + $0xf4] sm:$0xf]
      %v265 = vld [vmem:[%s192 + $0xf8] sm:$0xf]
      %v266 = vld [vmem:[%s192 + $0xfc] sm:$0xf]
      %v267 = vld [vmem:[%s192 + $0x100] sm:$0xf]
      %v268 = vld [vmem:[%s192 + $0x104] sm:$0xf]
      %v269 = vld [vmem:[%s192 + $0x108] sm:$0xf]
      %v270 = vld [vmem:[%s192 + $0x10c] sm:$0xf]
      %v271 = vld [vmem:[%s192 + $0x110] sm:$0xf]
      %v272 = vld [vmem:[%s192 + $0x114] sm:$0xf]
      %v273 = vld [vmem:[%s192 + $0x118] sm:$0xf]
      %v274 = vld [vmem:[%s192 + $0x11c] sm:$0xf]
      %v275 = vld [vmem:[%s192 + $0x120] sm:$0xf]
      %v276 = vld [vmem:[%s192 + $0x124] sm:$0xf]
      %v277 = vld [vmem:[%s192 + $0x128] sm:$0xf]
      %v278 = vld [vmem:[%s192 + $0x12c] sm:$0xf]
      %v279 = vld [vmem:[%s192 + $0x130] sm:$0xf]
      %v280 = vld [vmem:[%s192 + $0x134] sm:$0xf]
      %v281 = vld [vmem:[%s192 + $0x138] sm:$0xf]
      %v282 = vld [vmem:[%s192 + $0x13c] sm:$0xf]
      %v283 = vld [vmem:[%s192 + $0x140] sm:$0xf]
      %v284 = vld [vmem:[%s192 + $0x144] sm:$0xf]
      %v285 = vld [vmem:[%s192 + $0x148] sm:$0xf]
      %v286 = vld [vmem:[%s192 + $0x14c] sm:$0xf]
      %v287 = vld [vmem:[%s192 + $0x150] sm:$0xf]
      %v288 = vld [vmem:[%s192 + $0x154] sm:$0xf]
      %v289 = vld [vmem:[%s192 + $0x158] sm:$0xf]
      %v290 = vld [vmem:[%s192 + $0x15c] sm:$0xf]
      %v291 = vld [vmem:[%s192 + $0x160] sm:$0xf]
      %v292 = vld [vmem:[%s192 + $0x164] sm:$0xf]
      %v293 = vld [vmem:[%s192 + $0x168] sm:$0xf]
      %v294 = vld [vmem:[%s192 + $0x16c] sm:$0xf]
      %v295 = vld [vmem:[%s192 + $0x170] sm:$0xf]
      %v296 = vld [vmem:[%s192 + $0x174] sm:$0xf]
      %v297 = vld [vmem:[%s192 + $0x178] sm:$0xf]
      %v298 = vld [vmem:[%s192 + $0x17c] sm:$0xf]
      %v395 = vunpack.c.l.b16 %v203
      %v396 = vunpack.c.l.b16 %v204
      %v397 = vunpack.c.l.b16 %v205
      %v398 = vunpack.c.l.b16 %v206
      %v399 = vunpack.c.l.b16 %v207
      %v400 = vunpack.c.l.b16 %v208
      %v401 = vunpack.c.l.b16 %v209
      %v402 = vunpack.c.l.b16 %v210
      %v403 = vunpack.c.l.b16 %v211
      %v404 = vunpack.c.l.b16 %v212
      %v405 = vunpack.c.l.b16 %v213
      %v406 = vunpack.c.l.b16 %v214
      %v407 = vunpack.c.l.b16 %v215
      %v408 = vunpack.c.l.b16 %v216
      %v409 = vunpack.c.l.b16 %v217
      %v410 = vunpack.c.l.b16 %v218
      %v411 = vunpack.c.l.b16 %v219
      %v412 = vunpack.c.l.b16 %v220
      %v413 = vunpack.c.l.b16 %v221
      %v414 = vunpack.c.l.b16 %v222
      %v415 = vunpack.c.l.b16 %v223
      %v416 = vunpack.c.l.b16 %v224
      %v417 = vunpack.c.l.b16 %v225
      %v418 = vunpack.c.l.b16 %v226
      %v419 = vunpack.c.l.b16 %v227
      %v420 = vunpack.c.l.b16 %v228
      %v421 = vunpack.c.l.b16 %v229
      %v422 = vunpack.c.l.b16 %v230
      %v423 = vunpack.c.l.b16 %v231
      %v424 = vunpack.c.l.b16 %v232
      %v425 = vunpack.c.l.b16 %v233
      %v426 = vunpack.c.l.b16 %v234
      %v427 = vunpack.c.l.b16 %v235
      %v428 = vunpack.c.l.b16 %v236
      %v429 = vunpack.c.l.b16 %v237
      %v430 = vunpack.c.l.b16 %v238
      %v431 = vunpack.c.l.b16 %v239
      %v432 = vunpack.c.l.b16 %v240
      %v433 = vunpack.c.l.b16 %v241
      %v434 = vunpack.c.l.b16 %v242
      %v435 = vunpack.c.l.b16 %v243
      %v436 = vunpack.c.l.b16 %v244
      %v437 = vunpack.c.l.b16 %v245
      %v438 = vunpack.c.l.b16 %v246
      %v439 = vunpack.c.l.b16 %v247
      %v440 = vunpack.c.l.b16 %v248
      %v441 = vunpack.c.l.b16 %v249
      %v442 = vunpack.c.l.b16 %v250
      %v443 = vunpack.c.l.b16 %v251
      %v444 = vunpack.c.l.b16 %v252
      %v445 = vunpack.c.l.b16 %v253
      %v446 = vunpack.c.l.b16 %v254
      %v447 = vunpack.c.l.b16 %v255
      %v448 = vunpack.c.l.b16 %v256
      %v449 = vunpack.c.l.b16 %v257
      %v450 = vunpack.c.l.b16 %v258
      %v451 = vunpack.c.l.b16 %v259
      %v452 = vunpack.c.l.b16 %v260
      %v453 = vunpack.c.l.b16 %v261
      %v454 = vunpack.c.l.b16 %v262
      %v455 = vunpack.c.l.b16 %v263
      %v456 = vunpack.c.l.b16 %v264
      %v457 = vunpack.c.l.b16 %v265
      %v458 = vunpack.c.l.b16 %v266
      %v459 = vunpack.c.l.b16 %v267
      %v460 = vunpack.c.l.b16 %v268
      %v461 = vunpack.c.l.b16 %v269
      %v462 = vunpack.c.l.b16 %v270
      %v463 = vunpack.c.l.b16 %v271
      %v464 = vunpack.c.l.b16 %v272
      %v465 = vunpack.c.l.b16 %v273
      %v466 = vunpack.c.l.b16 %v274
      %v467 = vunpack.c.l.b16 %v275
      %v468 = vunpack.c.l.b16 %v276
      %v469 = vunpack.c.l.b16 %v277
      %v470 = vunpack.c.l.b16 %v278
      %v471 = vunpack.c.l.b16 %v279
      %v472 = vunpack.c.l.b16 %v280
      %v473 = vunpack.c.l.b16 %v281
      %v474 = vunpack.c.l.b16 %v282
      %v475 = vunpack.c.l.b16 %v283
      %v476 = vunpack.c.l.b16 %v284
      %v477 = vunpack.c.l.b16 %v285
      %v478 = vunpack.c.l.b16 %v286
      %v479 = vunpack.c.l.b16 %v287
      %v480 = vunpack.c.l.b16 %v288
      %v481 = vunpack.c.l.b16 %v289
      %v482 = vunpack.c.l.b16 %v290
      %v483 = vunpack.c.l.b16 %v291
      %v484 = vunpack.c.l.b16 %v292
      %v485 = vunpack.c.l.b16 %v293
      %v486 = vunpack.c.l.b16 %v294
      %v487 = vunpack.c.l.b16 %v295
      %v488 = vunpack.c.l.b16 %v296
      %v489 = vunpack.c.l.b16 %v297
      %v490 = vunpack.c.l.b16 %v298
      %v491 = vpack.c.b16 %v396, %v395
      %v492 = vpack.c.b16 %v398, %v397
      %v493 = vpack.c.b16 %v400, %v399
      %v494 = vpack.c.b16 %v402, %v401
      %v495 = vpack.c.b16 %v404, %v403
      %v496 = vpack.c.b16 %v406, %v405
      %v497 = vpack.c.b16 %v408, %v407
      %v498 = vpack.c.b16 %v410, %v409
      %v499 = vpack.c.b16 %v412, %v411
      %v500 = vpack.c.b16 %v414, %v413
      %v501 = vpack.c.b16 %v416, %v415
      %v502 = vpack.c.b16 %v418, %v417
      %v503 = vpack.c.b16 %v420, %v419
      %v504 = vpack.c.b16 %v422, %v421
      %v505 = vpack.c.b16 %v424, %v423
      %v506 = vpack.c.b16 %v426, %v425
      %v507 = vpack.c.b16 %v428, %v427
      %v508 = vpack.c.b16 %v430, %v429
      %v509 = vpack.c.b16 %v432, %v431
      %v510 = vpack.c.b16 %v434, %v433
      %v511 = vpack.c.b16 %v436, %v435
      %v512 = vpack.c.b16 %v438, %v437
      %v513 = vpack.c.b16 %v440, %v439
      %v514 = vpack.c.b16 %v442, %v441
      %v515 = vpack.c.b16 %v444, %v443
      %v516 = vpack.c.b16 %v446, %v445
      %v517 = vpack.c.b16 %v448, %v447
      %v518 = vpack.c.b16 %v450, %v449
      %v519 = vpack.c.b16 %v452, %v451
      %v520 = vpack.c.b16 %v454, %v453
      %v521 = vpack.c.b16 %v456, %v455
      %v522 = vpack.c.b16 %v458, %v457
      %v523 = vpack.c.b16 %v460, %v459
      %v524 = vpack.c.b16 %v462, %v461
      %v525 = vpack.c.b16 %v464, %v463
      %v526 = vpack.c.b16 %v466, %v465
      %v527 = vpack.c.b16 %v468, %v467
      %v528 = vpack.c.b16 %v470, %v469
      %v529 = vpack.c.b16 %v472, %v471
      %v530 = vpack.c.b16 %v474, %v473
      %v531 = vpack.c.b16 %v476, %v475
      %v532 = vpack.c.b16 %v478, %v477
      %v533 = vpack.c.b16 %v480, %v479
      %v534 = vpack.c.b16 %v482, %v481
      %v535 = vpack.c.b16 %v484, %v483
      %v536 = vpack.c.b16 %v486, %v485
      %v537 = vpack.c.b16 %v488, %v487
      %v538 = vpack.c.b16 %v490, %v489
      %v543 = vunpack.c.l.b16 %v199
      %v544 = vunpack.c.l.b16 %v200
      %v545 = vunpack.c.l.b16 %v201
      %v546 = vunpack.c.l.b16 %v202
      %v547 = vpack.c.b16 %v544, %v543
      %v548 = vpack.c.b16 %v546, %v545
      %vm551 = vcmask 261120
      %v553 = vsel %vm551, %v491, 0
      %v556 = vsel %vm551, %v492, 0
      %v559 = vsel %vm551, %v493, 0
      %v562 = vsel %vm551, %v494, 0
      %v565 = vsel %vm551, %v495, 0
      %v568 = vsel %vm551, %v496, 0
      %v571 = vsel %vm551, %v497, 0
      %v574 = vsel %vm551, %v498, 0
      %v577 = vsel %vm551, %v499, 0
      %v580 = vsel %vm551, %v500, 0
      %v583 = vsel %vm551, %v501, 0
      %v586 = vsel %vm551, %v502, 0
      %v589 = vsel %vm551, %v503, 0
      %v592 = vsel %vm551, %v504, 0
      %v595 = vsel %vm551, %v505, 0
      %v598 = vsel %vm551, %v506, 0
      %v601 = vsel %vm551, %v507, 0
      %v604 = vsel %vm551, %v508, 0
      %v607 = vsel %vm551, %v509, 0
      %v610 = vsel %vm551, %v510, 0
      %v613 = vsel %vm551, %v511, 0
      %v616 = vsel %vm551, %v512, 0
      %v619 = vsel %vm551, %v513, 0
      %v622 = vsel %vm551, %v514, 0
      %v625 = vsel %vm551, %v515, 0
      %v628 = vsel %vm551, %v516, 0
      %v631 = vsel %vm551, %v517, 0
      %v634 = vsel %vm551, %v518, 0
      %v637 = vsel %vm551, %v519, 0
      %v640 = vsel %vm551, %v520, 0
      %v643 = vsel %vm551, %v521, 0
      %v646 = vsel %vm551, %v522, 0
      %v649 = vsel %vm551, %v523, 0
      %v652 = vsel %vm551, %v524, 0
      %v655 = vsel %vm551, %v525, 0
      %v658 = vsel %vm551, %v526, 0
      %v661 = vsel %vm551, %v527, 0
      %v664 = vsel %vm551, %v528, 0
      %v667 = vsel %vm551, %v529, 0
      %v670 = vsel %vm551, %v530, 0
      %v673 = vsel %vm551, %v531, 0
      %v676 = vsel %vm551, %v532, 0
      %v679 = vsel %vm551, %v533, 0
      %v682 = vsel %vm551, %v534, 0
      %v685 = vsel %vm551, %v535, 0
      %v688 = vsel %vm551, %v536, 0
      %v691 = vsel %vm551, %v537, 0
      %v694 = vsel %vm551, %v538, 0
      %696 = vmatpush.bf16.msra.mxu0 0
      %697 = vmatpush.bf16.msra.mxu0 0
      %698 = vmatpush.bf16.msra.mxu0 0
      %699 = vmatpush.bf16.msra.mxu0 0
      %700 = vmatpush.bf16.msra.mxu0 0
      %701 = vmatpush.bf16.msra.mxu0 0
      %702 = vmatpush.bf16.msra.mxu0 %v548
      %703 = vmatpush.bf16.msra.mxu0 %v547
      %704 = vmatmul.bf16.gmra.mxu0 %v553
      %v705 = vpop.f32.mrf.mxu0
      %v706 = vadd.f32 0.0, %v705
      %v707 = vpop.f32.mrf.mxu0
      %v708 = vadd.f32 0.0, %v707
      %709 = vmatmul.bf16.gmra.mxu0 %v556
      %v710 = vpop.f32.mrf.mxu0
      %v711 = vadd.f32 0.0, %v710
      %v712 = vpop.f32.mrf.mxu0
      %v713 = vadd.f32 0.0, %v712
      %714 = vmatmul.bf16.gmra.mxu0 %v559
      %v715 = vpop.f32.mrf.mxu0
      %v716 = vadd.f32 0.0, %v715
      %v717 = vpop.f32.mrf.mxu0
      %v718 = vadd.f32 0.0, %v717
      %719 = vmatmul.bf16.gmra.mxu0 %v562
      %v720 = vpop.f32.mrf.mxu0
      %v721 = vadd.f32 0.0, %v720
      %v722 = vpop.f32.mrf.mxu0
      %v723 = vadd.f32 0.0, %v722
      %724 = vmatmul.bf16.gmra.mxu0 %v565
      %v725 = vpop.f32.mrf.mxu0
      %v726 = vadd.f32 0.0, %v725
      %v727 = vpop.f32.mrf.mxu0
      %v728 = vadd.f32 0.0, %v727
      %729 = vmatmul.bf16.gmra.mxu0 %v568
      %v730 = vpop.f32.mrf.mxu0
      %v731 = vadd.f32 0.0, %v730
      %v732 = vpop.f32.mrf.mxu0
      %v733 = vadd.f32 0.0, %v732
      %734 = vmatmul.bf16.gmra.mxu0 %v571
      %v735 = vpop.f32.mrf.mxu0
      %v736 = vadd.f32 0.0, %v735
      %v737 = vpop.f32.mrf.mxu0
      %v738 = vadd.f32 0.0, %v737
      %739 = vmatmul.bf16.gmra.mxu0 %v574
      %v740 = vpop.f32.mrf.mxu0
      %v741 = vadd.f32 0.0, %v740
      %v742 = vpop.f32.mrf.mxu0
      %v743 = vadd.f32 0.0, %v742
      %744 = vmatmul.bf16.gmra.mxu0 %v577
      %v745 = vpop.f32.mrf.mxu0
      %v746 = vadd.f32 0.0, %v745
      %v747 = vpop.f32.mrf.mxu0
      %v748 = vadd.f32 0.0, %v747
      %749 = vmatmul.bf16.gmra.mxu0 %v580
      %v750 = vpop.f32.mrf.mxu0
      %v751 = vadd.f32 0.0, %v750
      %v752 = vpop.f32.mrf.mxu0
      %v753 = vadd.f32 0.0, %v752
      %754 = vmatmul.bf16.gmra.mxu0 %v583
      %v755 = vpop.f32.mrf.mxu0
      %v756 = vadd.f32 0.0, %v755
      %v757 = vpop.f32.mrf.mxu0
      %v758 = vadd.f32 0.0, %v757
      %759 = vmatmul.bf16.gmra.mxu0 %v586
      %v760 = vpop.f32.mrf.mxu0
      %v761 = vadd.f32 0.0, %v760
      %v762 = vpop.f32.mrf.mxu0
      %v763 = vadd.f32 0.0, %v762
      %764 = vmatmul.bf16.gmra.mxu0 %v589
      %v765 = vpop.f32.mrf.mxu0
      %v766 = vadd.f32 0.0, %v765
      %v767 = vpop.f32.mrf.mxu0
      %v768 = vadd.f32 0.0, %v767
      %769 = vmatmul.bf16.gmra.mxu0 %v592
      %v770 = vpop.f32.mrf.mxu0
      %v771 = vadd.f32 0.0, %v770
      %v772 = vpop.f32.mrf.mxu0
      %v773 = vadd.f32 0.0, %v772
      %774 = vmatmul.bf16.gmra.mxu0 %v595
      %v775 = vpop.f32.mrf.mxu0
      %v776 = vadd.f32 0.0, %v775
      %v777 = vpop.f32.mrf.mxu0
      %v778 = vadd.f32 0.0, %v777
      %779 = vmatmul.bf16.gmra.mxu0 %v598
      %v780 = vpop.f32.mrf.mxu0
      %v781 = vadd.f32 0.0, %v780
      %v782 = vpop.f32.mrf.mxu0
      %v783 = vadd.f32 0.0, %v782
      %784 = vmatmul.bf16.gmra.mxu0 %v601
      %v785 = vpop.f32.mrf.mxu0
      %v786 = vadd.f32 0.0, %v785
      %v787 = vpop.f32.mrf.mxu0
      %v788 = vadd.f32 0.0, %v787
      %789 = vmatmul.bf16.gmra.mxu0 %v604
      %v790 = vpop.f32.mrf.mxu0
      %v791 = vadd.f32 0.0, %v790
      %v792 = vpop.f32.mrf.mxu0
      %v793 = vadd.f32 0.0, %v792
      %794 = vmatmul.bf16.gmra.mxu0 %v607
      %v795 = vpop.f32.mrf.mxu0
      %v796 = vadd.f32 0.0, %v795
      %v797 = vpop.f32.mrf.mxu0
      %v798 = vadd.f32 0.0, %v797
      %799 = vmatmul.bf16.gmra.mxu0 %v610
      %v800 = vpop.f32.mrf.mxu0
      %v801 = vadd.f32 0.0, %v800
      %v802 = vpop.f32.mrf.mxu0
      %v803 = vadd.f32 0.0, %v802
      %804 = vmatmul.bf16.gmra.mxu0 %v613
      %v805 = vpop.f32.mrf.mxu0
      %v806 = vadd.f32 0.0, %v805
      %v807 = vpop.f32.mrf.mxu0
      %v808 = vadd.f32 0.0, %v807
      %809 = vmatmul.bf16.gmra.mxu0 %v616
      %v810 = vpop.f32.mrf.mxu0
      %v811 = vadd.f32 0.0, %v810
      %v812 = vpop.f32.mrf.mxu0
      %v813 = vadd.f32 0.0, %v812
      %814 = vmatmul.bf16.gmra.mxu0 %v619
      %v815 = vpop.f32.mrf.mxu0
      %v816 = vadd.f32 0.0, %v815
      %v817 = vpop.f32.mrf.mxu0
      %v818 = vadd.f32 0.0, %v817
      %819 = vmatmul.bf16.gmra.mxu0 %v622
      %v820 = vpop.f32.mrf.mxu0
      %v821 = vadd.f32 0.0, %v820
      %v822 = vpop.f32.mrf.mxu0
      %v823 = vadd.f32 0.0, %v822
      %824 = vmatmul.bf16.gmra.mxu0 %v625
      %v825 = vpop.f32.mrf.mxu0
      %v826 = vadd.f32 0.0, %v825
      %v827 = vpop.f32.mrf.mxu0
      %v828 = vadd.f32 0.0, %v827
      %829 = vmatmul.bf16.gmra.mxu0 %v628
      %v830 = vpop.f32.mrf.mxu0
      %v831 = vadd.f32 0.0, %v830
      %v832 = vpop.f32.mrf.mxu0
      %v833 = vadd.f32 0.0, %v832
      %834 = vmatmul.bf16.gmra.mxu0 %v631
      %v835 = vpop.f32.mrf.mxu0
      %v836 = vadd.f32 0.0, %v835
      %v837 = vpop.f32.mrf.mxu0
      %v838 = vadd.f32 0.0, %v837
      %839 = vmatmul.bf16.gmra.mxu0 %v634
      %v840 = vpop.f32.mrf.mxu0
      %v841 = vadd.f32 0.0, %v840
      %v842 = vpop.f32.mrf.mxu0
      %v843 = vadd.f32 0.0, %v842
      %844 = vmatmul.bf16.gmra.mxu0 %v637
      %v845 = vpop.f32.mrf.mxu0
      %v846 = vadd.f32 0.0, %v845
      %v847 = vpop.f32.mrf.mxu0
      %v848 = vadd.f32 0.0, %v847
      %849 = vmatmul.bf16.gmra.mxu0 %v640
      %v850 = vpop.f32.mrf.mxu0
      %v851 = vadd.f32 0.0, %v850
      %v852 = vpop.f32.mrf.mxu0
      %v853 = vadd.f32 0.0, %v852
      %854 = vmatmul.bf16.gmra.mxu0 %v643
      %v855 = vpop.f32.mrf.mxu0
      %v856 = vadd.f32 0.0, %v855
      %v857 = vpop.f32.mrf.mxu0
      %v858 = vadd.f32 0.0, %v857
      %859 = vmatmul.bf16.gmra.mxu0 %v646
      %v860 = vpop.f32.mrf.mxu0
      %v861 = vadd.f32 0.0, %v860
      %v862 = vpop.f32.mrf.mxu0
      %v863 = vadd.f32 0.0, %v862
      %864 = vmatmul.bf16.gmra.mxu0 %v649
      %v865 = vpop.f32.mrf.mxu0
      %v866 = vadd.f32 0.0, %v865
      %v867 = vpop.f32.mrf.mxu0
      %v868 = vadd.f32 0.0, %v867
      %869 = vmatmul.bf16.gmra.mxu0 %v652
      %v870 = vpop.f32.mrf.mxu0
      %v871 = vadd.f32 0.0, %v870
      %v872 = vpop.f32.mrf.mxu0
      %v873 = vadd.f32 0.0, %v872
      %874 = vmatmul.bf16.gmra.mxu0 %v655
      %v875 = vpop.f32.mrf.mxu0
      %v876 = vadd.f32 0.0, %v875
      %v877 = vpop.f32.mrf.mxu0
      %v878 = vadd.f32 0.0, %v877
      %879 = vmatmul.bf16.gmra.mxu0 %v658
      %v880 = vpop.f32.mrf.mxu0
      %v881 = vadd.f32 0.0, %v880
      %v882 = vpop.f32.mrf.mxu0
      %v883 = vadd.f32 0.0, %v882
      %884 = vmatmul.bf16.gmra.mxu0 %v661
      %v885 = vpop.f32.mrf.mxu0
      %v886 = vadd.f32 0.0, %v885
      %v887 = vpop.f32.mrf.mxu0
      %v888 = vadd.f32 0.0, %v887
      %889 = vmatmul.bf16.gmra.mxu0 %v664
      %v890 = vpop.f32.mrf.mxu0
      %v891 = vadd.f32 0.0, %v890
      %v892 = vpop.f32.mrf.mxu0
      %v893 = vadd.f32 0.0, %v892
      %894 = vmatmul.bf16.gmra.mxu0 %v667
      %v895 = vpop.f32.mrf.mxu0
      %v896 = vadd.f32 0.0, %v895
      %v897 = vpop.f32.mrf.mxu0
      %v898 = vadd.f32 0.0, %v897
      %899 = vmatmul.bf16.gmra.mxu0 %v670
      %v900 = vpop.f32.mrf.mxu0
      %v901 = vadd.f32 0.0, %v900
      %v902 = vpop.f32.mrf.mxu0
      %v903 = vadd.f32 0.0, %v902
      %904 = vmatmul.bf16.gmra.mxu0 %v673
      %v905 = vpop.f32.mrf.mxu0
      %v906 = vadd.f32 0.0, %v905
      %v907 = vpop.f32.mrf.mxu0
      %v908 = vadd.f32 0.0, %v907
      %909 = vmatmul.bf16.gmra.mxu0 %v676
      %v910 = vpop.f32.mrf.mxu0
      %v911 = vadd.f32 0.0, %v910
      %v912 = vpop.f32.mrf.mxu0
      %v913 = vadd.f32 0.0, %v912
      %914 = vmatmul.bf16.gmra.mxu0 %v679
      %v915 = vpop.f32.mrf.mxu0
      %v916 = vadd.f32 0.0, %v915
      %v917 = vpop.f32.mrf.mxu0
      %v918 = vadd.f32 0.0, %v917
      %919 = vmatmul.bf16.gmra.mxu0 %v682
      %v920 = vpop.f32.mrf.mxu0
      %v921 = vadd.f32 0.0, %v920
      %v922 = vpop.f32.mrf.mxu0
      %v923 = vadd.f32 0.0, %v922
      %924 = vmatmul.bf16.gmra.mxu0 %v685
      %v925 = vpop.f32.mrf.mxu0
      %v926 = vadd.f32 0.0, %v925
      %v927 = vpop.f32.mrf.mxu0
      %v928 = vadd.f32 0.0, %v927
      %929 = vmatmul.bf16.gmra.mxu0 %v688
      %v930 = vpop.f32.mrf.mxu0
      %v931 = vadd.f32 0.0, %v930
      %v932 = vpop.f32.mrf.mxu0
      %v933 = vadd.f32 0.0, %v932
      %934 = vmatmul.bf16.gmra.mxu0 %v691
      %v935 = vpop.f32.mrf.mxu0
      %v936 = vadd.f32 0.0, %v935
      %v937 = vpop.f32.mrf.mxu0
      %v938 = vadd.f32 0.0, %v937
      %939 = vmatmul.bf16.gmra.mxu0 %v694
      %v940 = vpop.f32.mrf.mxu0
      %v941 = vadd.f32 0.0, %v940
      %v942 = vpop.f32.mrf.mxu0
      %v943 = vadd.f32 0.0, %v942
      %944 = vdwg.mxu0
      %v945 = vld [vmem:[%s2] sm:$0x1]
      %v947 = vperm.slane %v945, 0
      %v949 = vmul.f32 %v706, %v947
      %v950 = vmul.f32 %v708, %v947
      %v951 = vmul.f32 %v711, %v947
      %v952 = vmul.f32 %v713, %v947
      %v953 = vmul.f32 %v716, %v947
      %v954 = vmul.f32 %v718, %v947
      %v955 = vmul.f32 %v721, %v947
      %v956 = vmul.f32 %v723, %v947
      %v957 = vmul.f32 %v726, %v947
      %v958 = vmul.f32 %v728, %v947
      %v959 = vmul.f32 %v731, %v947
      %v960 = vmul.f32 %v733, %v947
      %v961 = vmul.f32 %v736, %v947
      %v962 = vmul.f32 %v738, %v947
      %v963 = vmul.f32 %v741, %v947
      %v964 = vmul.f32 %v743, %v947
      %v965 = vmul.f32 %v746, %v947
      %v966 = vmul.f32 %v748, %v947
      %v967 = vmul.f32 %v751, %v947
      %v968 = vmul.f32 %v753, %v947
      %v969 = vmul.f32 %v756, %v947
      %v970 = vmul.f32 %v758, %v947
      %v971 = vmul.f32 %v761, %v947
      %v972 = vmul.f32 %v763, %v947
      %v973 = vmul.f32 %v766, %v947
      %v974 = vmul.f32 %v768, %v947
      %v975 = vmul.f32 %v771, %v947
      %v976 = vmul.f32 %v773, %v947
      %v977 = vmul.f32 %v776, %v947
      %v978 = vmul.f32 %v778, %v947
      %v979 = vmul.f32 %v781, %v947
      %v980 = vmul.f32 %v783, %v947
      %v981 = vmul.f32 %v786, %v947
      %v982 = vmul.f32 %v788, %v947
      %v983 = vmul.f32 %v791, %v947
      %v984 = vmul.f32 %v793, %v947
      %v985 = vmul.f32 %v796, %v947
      %v986 = vmul.f32 %v798, %v947
      %v987 = vmul.f32 %v801, %v947
      %v988 = vmul.f32 %v803, %v947
      %v989 = vmul.f32 %v806, %v947
      %v990 = vmul.f32 %v808, %v947
      %v991 = vmul.f32 %v811, %v947
      %v992 = vmul.f32 %v813, %v947
      %v993 = vmul.f32 %v816, %v947
      %v994 = vmul.f32 %v818, %v947
      %v995 = vmul.f32 %v821, %v947
      %v996 = vmul.f32 %v823, %v947
      %v997 = vmul.f32 %v826, %v947
      %v998 = vmul.f32 %v828, %v947
      %v999 = vmul.f32 %v831, %v947
      %v1000 = vmul.f32 %v833, %v947
      %v1001 = vmul.f32 %v836, %v947
      %v1002 = vmul.f32 %v838, %v947
      %v1003 = vmul.f32 %v841, %v947
      %v1004 = vmul.f32 %v843, %v947
      %v1005 = vmul.f32 %v846, %v947
      %v1006 = vmul.f32 %v848, %v947
      %v1007 = vmul.f32 %v851, %v947
      %v1008 = vmul.f32 %v853, %v947
      %v1009 = vmul.f32 %v856, %v947
      %v1010 = vmul.f32 %v858, %v947
      %v1011 = vmul.f32 %v861, %v947
      %v1012 = vmul.f32 %v863, %v947
      %v1013 = vmul.f32 %v866, %v947
      %v1014 = vmul.f32 %v868, %v947
      %v1015 = vmul.f32 %v871, %v947
      %v1016 = vmul.f32 %v873, %v947
      %v1017 = vmul.f32 %v876, %v947
      %v1018 = vmul.f32 %v878, %v947
      %v1019 = vmul.f32 %v881, %v947
      %v1020 = vmul.f32 %v883, %v947
      %v1021 = vmul.f32 %v886, %v947
      %v1022 = vmul.f32 %v888, %v947
      %v1023 = vmul.f32 %v891, %v947
      %v1024 = vmul.f32 %v893, %v947
      %v1025 = vmul.f32 %v896, %v947
      %v1026 = vmul.f32 %v898, %v947
      %v1027 = vmul.f32 %v901, %v947
      %v1028 = vmul.f32 %v903, %v947
      %v1029 = vmul.f32 %v906, %v947
      %v1030 = vmul.f32 %v908, %v947
      %v1031 = vmul.f32 %v911, %v947
      %v1032 = vmul.f32 %v913, %v947
      %v1033 = vmul.f32 %v916, %v947
      %v1034 = vmul.f32 %v918, %v947
      %v1035 = vmul.f32 %v921, %v947
      %v1036 = vmul.f32 %v923, %v947
      %v1037 = vmul.f32 %v926, %v947
      %v1038 = vmul.f32 %v928, %v947
      %v1039 = vmul.f32 %v931, %v947
      %v1040 = vmul.f32 %v933, %v947
      %v1041 = vmul.f32 %v936, %v947
      %v1042 = vmul.f32 %v938, %v947
      %v1043 = vmul.f32 %v941, %v947
      %v1044 = vmul.f32 %v943, %v947
      %v1045 = vld [vmem:[%s3] sm:$0x1]
      %v1047 = vperm.slane %v1045, 0
      %v1049 = vadd.f32 %v949, %v1047
      %v1050 = vadd.f32 %v950, %v1047
      %v1051 = vadd.f32 %v951, %v1047
      %v1052 = vadd.f32 %v952, %v1047
      %v1053 = vadd.f32 %v953, %v1047
      %v1054 = vadd.f32 %v954, %v1047
      %v1055 = vadd.f32 %v955, %v1047
      %v1056 = vadd.f32 %v956, %v1047
      %v1057 = vadd.f32 %v957, %v1047
      %v1058 = vadd.f32 %v958, %v1047
      %v1059 = vadd.f32 %v959, %v1047
      %v1060 = vadd.f32 %v960, %v1047
      %v1061 = vadd.f32 %v961, %v1047
      %v1062 = vadd.f32 %v962, %v1047
      %v1063 = vadd.f32 %v963, %v1047
      %v1064 = vadd.f32 %v964, %v1047
      %v1065 = vadd.f32 %v965, %v1047
      %v1066 = vadd.f32 %v966, %v1047
      %v1067 = vadd.f32 %v967, %v1047
      %v1068 = vadd.f32 %v968, %v1047
      %v1069 = vadd.f32 %v969, %v1047
      %v1070 = vadd.f32 %v970, %v1047
      %v1071 = vadd.f32 %v971, %v1047
      %v1072 = vadd.f32 %v972, %v1047
      %v1073 = vadd.f32 %v973, %v1047
      %v1074 = vadd.f32 %v974, %v1047
      %v1075 = vadd.f32 %v975, %v1047
      %v1076 = vadd.f32 %v976, %v1047
      %v1077 = vadd.f32 %v977, %v1047
      %v1078 = vadd.f32 %v978, %v1047
      %v1079 = vadd.f32 %v979, %v1047
      %v1080 = vadd.f32 %v980, %v1047
      %v1081 = vadd.f32 %v981, %v1047
      %v1082 = vadd.f32 %v982, %v1047
      %v1083 = vadd.f32 %v983, %v1047
      %v1084 = vadd.f32 %v984, %v1047
      %v1085 = vadd.f32 %v985, %v1047
      %v1086 = vadd.f32 %v986, %v1047
      %v1087 = vadd.f32 %v987, %v1047
      %v1088 = vadd.f32 %v988, %v1047
      %v1089 = vadd.f32 %v989, %v1047
      %v1090 = vadd.f32 %v990, %v1047
      %v1091 = vadd.f32 %v991, %v1047
      %v1092 = vadd.f32 %v992, %v1047
      %v1093 = vadd.f32 %v993, %v1047
      %v1094 = vadd.f32 %v994, %v1047
      %v1095 = vadd.f32 %v995, %v1047
      %v1096 = vadd.f32 %v996, %v1047
      %v1097 = vadd.f32 %v997, %v1047
      %v1098 = vadd.f32 %v998, %v1047
      %v1099 = vadd.f32 %v999, %v1047
      %v1100 = vadd.f32 %v1000, %v1047
      %v1101 = vadd.f32 %v1001, %v1047
      %v1102 = vadd.f32 %v1002, %v1047
      %v1103 = vadd.f32 %v1003, %v1047
      %v1104 = vadd.f32 %v1004, %v1047
      %v1105 = vadd.f32 %v1005, %v1047
      %v1106 = vadd.f32 %v1006, %v1047
      %v1107 = vadd.f32 %v1007, %v1047
      %v1108 = vadd.f32 %v1008, %v1047
      %v1109 = vadd.f32 %v1009, %v1047
      %v1110 = vadd.f32 %v1010, %v1047
      %v1111 = vadd.f32 %v1011, %v1047
      %v1112 = vadd.f32 %v1012, %v1047
      %v1113 = vadd.f32 %v1013, %v1047
      %v1114 = vadd.f32 %v1014, %v1047
      %v1115 = vadd.f32 %v1015, %v1047
      %v1116 = vadd.f32 %v1016, %v1047
      %v1117 = vadd.f32 %v1017, %v1047
      %v1118 = vadd.f32 %v1018, %v1047
      %v1119 = vadd.f32 %v1019, %v1047
      %v1120 = vadd.f32 %v1020, %v1047
      %v1121 = vadd.f32 %v1021, %v1047
      %v1122 = vadd.f32 %v1022, %v1047
      %v1123 = vadd.f32 %v1023, %v1047
      %v1124 = vadd.f32 %v1024, %v1047
      %v1125 = vadd.f32 %v1025, %v1047
      %v1126 = vadd.f32 %v1026, %v1047
      %v1127 = vadd.f32 %v1027, %v1047
      %v1128 = vadd.f32 %v1028, %v1047
      %v1129 = vadd.f32 %v1029, %v1047
      %v1130 = vadd.f32 %v1030, %v1047
      %v1131 = vadd.f32 %v1031, %v1047
      %v1132 = vadd.f32 %v1032, %v1047
      %v1133 = vadd.f32 %v1033, %v1047
      %v1134 = vadd.f32 %v1034, %v1047
      %v1135 = vadd.f32 %v1035, %v1047
      %v1136 = vadd.f32 %v1036, %v1047
      %v1137 = vadd.f32 %v1037, %v1047
      %v1138 = vadd.f32 %v1038, %v1047
      %v1139 = vadd.f32 %v1039, %v1047
      %v1140 = vadd.f32 %v1040, %v1047
      %v1141 = vadd.f32 %v1041, %v1047
      %v1142 = vadd.f32 %v1042, %v1047
      %v1143 = vadd.f32 %v1043, %v1047
      %v1144 = vadd.f32 %v1044, %v1047
      %v1145 = vmax.f32 %v1049, 0.0
      %v1146 = vmax.f32 %v1050, 0.0
      %v1147 = vmax.f32 %v1051, 0.0
      %v1148 = vmax.f32 %v1052, 0.0
      %v1149 = vmax.f32 %v1053, 0.0
      %v1150 = vmax.f32 %v1054, 0.0
      %v1151 = vmax.f32 %v1055, 0.0
      %v1152 = vmax.f32 %v1056, 0.0
      %v1153 = vmax.f32 %v1057, 0.0
      %v1154 = vmax.f32 %v1058, 0.0
      %v1155 = vmax.f32 %v1059, 0.0
      %v1156 = vmax.f32 %v1060, 0.0
      %v1157 = vmax.f32 %v1061, 0.0
      %v1158 = vmax.f32 %v1062, 0.0
      %v1159 = vmax.f32 %v1063, 0.0
      %v1160 = vmax.f32 %v1064, 0.0
      %v1161 = vmax.f32 %v1065, 0.0
      %v1162 = vmax.f32 %v1066, 0.0
      %v1163 = vmax.f32 %v1067, 0.0
      %v1164 = vmax.f32 %v1068, 0.0
      %v1165 = vmax.f32 %v1069, 0.0
      %v1166 = vmax.f32 %v1070, 0.0
      %v1167 = vmax.f32 %v1071, 0.0
      %v1168 = vmax.f32 %v1072, 0.0
      %v1169 = vmax.f32 %v1073, 0.0
      %v1170 = vmax.f32 %v1074, 0.0
      %v1171 = vmax.f32 %v1075, 0.0
      %v1172 = vmax.f32 %v1076, 0.0
      %v1173 = vmax.f32 %v1077, 0.0
      %v1174 = vmax.f32 %v1078, 0.0
      %v1175 = vmax.f32 %v1079, 0.0
      %v1176 = vmax.f32 %v1080, 0.0
      %v1177 = vmax.f32 %v1081, 0.0
      %v1178 = vmax.f32 %v1082, 0.0
      %v1179 = vmax.f32 %v1083, 0.0
      %v1180 = vmax.f32 %v1084, 0.0
      %v1181 = vmax.f32 %v1085, 0.0
      %v1182 = vmax.f32 %v1086, 0.0
      %v1183 = vmax.f32 %v1087, 0.0
      %v1184 = vmax.f32 %v1088, 0.0
      %v1185 = vmax.f32 %v1089, 0.0
      %v1186 = vmax.f32 %v1090, 0.0
      %v1187 = vmax.f32 %v1091, 0.0
      %v1188 = vmax.f32 %v1092, 0.0
      %v1189 = vmax.f32 %v1093, 0.0
      %v1190 = vmax.f32 %v1094, 0.0
      %v1191 = vmax.f32 %v1095, 0.0
      %v1192 = vmax.f32 %v1096, 0.0
      %v1193 = vmax.f32 %v1097, 0.0
      %v1194 = vmax.f32 %v1098, 0.0
      %v1195 = vmax.f32 %v1099, 0.0
      %v1196 = vmax.f32 %v1100, 0.0
      %v1197 = vmax.f32 %v1101, 0.0
      %v1198 = vmax.f32 %v1102, 0.0
      %v1199 = vmax.f32 %v1103, 0.0
      %v1200 = vmax.f32 %v1104, 0.0
      %v1201 = vmax.f32 %v1105, 0.0
      %v1202 = vmax.f32 %v1106, 0.0
      %v1203 = vmax.f32 %v1107, 0.0
      %v1204 = vmax.f32 %v1108, 0.0
      %v1205 = vmax.f32 %v1109, 0.0
      %v1206 = vmax.f32 %v1110, 0.0
      %v1207 = vmax.f32 %v1111, 0.0
      %v1208 = vmax.f32 %v1112, 0.0
      %v1209 = vmax.f32 %v1113, 0.0
      %v1210 = vmax.f32 %v1114, 0.0
      %v1211 = vmax.f32 %v1115, 0.0
      %v1212 = vmax.f32 %v1116, 0.0
      %v1213 = vmax.f32 %v1117, 0.0
      %v1214 = vmax.f32 %v1118, 0.0
      %v1215 = vmax.f32 %v1119, 0.0
      %v1216 = vmax.f32 %v1120, 0.0
      %v1217 = vmax.f32 %v1121, 0.0
      %v1218 = vmax.f32 %v1122, 0.0
      %v1219 = vmax.f32 %v1123, 0.0
      %v1220 = vmax.f32 %v1124, 0.0
      %v1221 = vmax.f32 %v1125, 0.0
      %v1222 = vmax.f32 %v1126, 0.0
      %v1223 = vmax.f32 %v1127, 0.0
      %v1224 = vmax.f32 %v1128, 0.0
      %v1225 = vmax.f32 %v1129, 0.0
      %v1226 = vmax.f32 %v1130, 0.0
      %v1227 = vmax.f32 %v1131, 0.0
      %v1228 = vmax.f32 %v1132, 0.0
      %v1229 = vmax.f32 %v1133, 0.0
      %v1230 = vmax.f32 %v1134, 0.0
      %v1231 = vmax.f32 %v1135, 0.0
      %v1232 = vmax.f32 %v1136, 0.0
      %v1233 = vmax.f32 %v1137, 0.0
      %v1234 = vmax.f32 %v1138, 0.0
      %v1235 = vmax.f32 %v1139, 0.0
      %v1236 = vmax.f32 %v1140, 0.0
      %v1237 = vmax.f32 %v1141, 0.0
      %v1238 = vmax.f32 %v1142, 0.0
      %v1239 = vmax.f32 %v1143, 0.0
      %v1240 = vmax.f32 %v1144, 0.0
      %v1241 = vpack.c.bf16 %v1145, %v1145
      %v1242 = vpack.c.bf16 %v1146, %v1146
      %v1243 = vpack.c.bf16 %v1147, %v1147
      %v1244 = vpack.c.bf16 %v1148, %v1148
      %v1245 = vpack.c.bf16 %v1149, %v1149
      %v1246 = vpack.c.bf16 %v1150, %v1150
      %v1247 = vpack.c.bf16 %v1151, %v1151
      %v1248 = vpack.c.bf16 %v1152, %v1152
      %v1249 = vpack.c.bf16 %v1153, %v1153
      %v1250 = vpack.c.bf16 %v1154, %v1154
      %v1251 = vpack.c.bf16 %v1155, %v1155
      %v1252 = vpack.c.bf16 %v1156, %v1156
      %v1253 = vpack.c.bf16 %v1157, %v1157
      %v1254 = vpack.c.bf16 %v1158, %v1158
      %v1255 = vpack.c.bf16 %v1159, %v1159
      %v1256 = vpack.c.bf16 %v1160, %v1160
      %v1257 = vpack.c.bf16 %v1161, %v1161
      %v1258 = vpack.c.bf16 %v1162, %v1162
      %v1259 = vpack.c.bf16 %v1163, %v1163
      %v1260 = vpack.c.bf16 %v1164, %v1164
      %v1261 = vpack.c.bf16 %v1165, %v1165
      %v1262 = vpack.c.bf16 %v1166, %v1166
      %v1263 = vpack.c.bf16 %v1167, %v1167
      %v1264 = vpack.c.bf16 %v1168, %v1168
      %v1265 = vpack.c.bf16 %v1169, %v1169
      %v1266 = vpack.c.bf16 %v1170, %v1170
      %v1267 = vpack.c.bf16 %v1171, %v1171
      %v1268 = vpack.c.bf16 %v1172, %v1172
      %v1269 = vpack.c.bf16 %v1173, %v1173
      %v1270 = vpack.c.bf16 %v1174, %v1174
      %v1271 = vpack.c.bf16 %v1175, %v1175
      %v1272 = vpack.c.bf16 %v1176, %v1176
      %v1273 = vpack.c.bf16 %v1177, %v1177
      %v1274 = vpack.c.bf16 %v1178, %v1178
      %v1275 = vpack.c.bf16 %v1179, %v1179
      %v1276 = vpack.c.bf16 %v1180, %v1180
      %v1277 = vpack.c.bf16 %v1181, %v1181
      %v1278 = vpack.c.bf16 %v1182, %v1182
      %v1279 = vpack.c.bf16 %v1183, %v1183
      %v1280 = vpack.c.bf16 %v1184, %v1184
      %v1281 = vpack.c.bf16 %v1185, %v1185
      %v1282 = vpack.c.bf16 %v1186, %v1186
      %v1283 = vpack.c.bf16 %v1187, %v1187
      %v1284 = vpack.c.bf16 %v1188, %v1188
      %v1285 = vpack.c.bf16 %v1189, %v1189
      %v1286 = vpack.c.bf16 %v1190, %v1190
      %v1287 = vpack.c.bf16 %v1191, %v1191
      %v1288 = vpack.c.bf16 %v1192, %v1192
      %v1289 = vpack.c.bf16 %v1193, %v1193
      %v1290 = vpack.c.bf16 %v1194, %v1194
      %v1291 = vpack.c.bf16 %v1195, %v1195
      %v1292 = vpack.c.bf16 %v1196, %v1196
      %v1293 = vpack.c.bf16 %v1197, %v1197
      %v1294 = vpack.c.bf16 %v1198, %v1198
      %v1295 = vpack.c.bf16 %v1199, %v1199
      %v1296 = vpack.c.bf16 %v1200, %v1200
      %v1297 = vpack.c.bf16 %v1201, %v1201
      %v1298 = vpack.c.bf16 %v1202, %v1202
      %v1299 = vpack.c.bf16 %v1203, %v1203
      %v1300 = vpack.c.bf16 %v1204, %v1204
      %v1301 = vpack.c.bf16 %v1205, %v1205
      %v1302 = vpack.c.bf16 %v1206, %v1206
      %v1303 = vpack.c.bf16 %v1207, %v1207
      %v1304 = vpack.c.bf16 %v1208, %v1208
      %v1305 = vpack.c.bf16 %v1209, %v1209
      %v1306 = vpack.c.bf16 %v1210, %v1210
      %v1307 = vpack.c.bf16 %v1211, %v1211
      %v1308 = vpack.c.bf16 %v1212, %v1212
      %v1309 = vpack.c.bf16 %v1213, %v1213
      %v1310 = vpack.c.bf16 %v1214, %v1214
      %v1311 = vpack.c.bf16 %v1215, %v1215
      %v1312 = vpack.c.bf16 %v1216, %v1216
      %v1313 = vpack.c.bf16 %v1217, %v1217
      %v1314 = vpack.c.bf16 %v1218, %v1218
      %v1315 = vpack.c.bf16 %v1219, %v1219
      %v1316 = vpack.c.bf16 %v1220, %v1220
      %v1317 = vpack.c.bf16 %v1221, %v1221
      %v1318 = vpack.c.bf16 %v1222, %v1222
      %v1319 = vpack.c.bf16 %v1223, %v1223
      %v1320 = vpack.c.bf16 %v1224, %v1224
      %v1321 = vpack.c.bf16 %v1225, %v1225
      %v1322 = vpack.c.bf16 %v1226, %v1226
      %v1323 = vpack.c.bf16 %v1227, %v1227
      %v1324 = vpack.c.bf16 %v1228, %v1228
      %v1325 = vpack.c.bf16 %v1229, %v1229
      %v1326 = vpack.c.bf16 %v1230, %v1230
      %v1327 = vpack.c.bf16 %v1231, %v1231
      %v1328 = vpack.c.bf16 %v1232, %v1232
      %v1329 = vpack.c.bf16 %v1233, %v1233
      %v1330 = vpack.c.bf16 %v1234, %v1234
      %v1331 = vpack.c.bf16 %v1235, %v1235
      %v1332 = vpack.c.bf16 %v1236, %v1236
      %v1333 = vpack.c.bf16 %v1237, %v1237
      %v1334 = vpack.c.bf16 %v1238, %v1238
      %v1335 = vpack.c.bf16 %v1239, %v1239
      %v1336 = vpack.c.bf16 %v1240, %v1240
      %vm1337 = vcmask 257024
      %1338 = vst.msk [vmem:[%s197] sm:$0xf] %vm1337, %v1241
      %1339 = vst.msk [vmem:[%s197 + $0x4] sm:$0xf] %vm1337, %v1242
      %1340 = vst.msk [vmem:[%s197 + $0x8] sm:$0xf] %vm1337, %v1243
      %1341 = vst.msk [vmem:[%s197 + $0xc] sm:$0xf] %vm1337, %v1244
      %1342 = vst.msk [vmem:[%s197 + $0x10] sm:$0xf] %vm1337, %v1245
      %1343 = vst.msk [vmem:[%s197 + $0x14] sm:$0xf] %vm1337, %v1246
      %1344 = vst.msk [vmem:[%s197 + $0x18] sm:$0xf] %vm1337, %v1247
      %1345 = vst.msk [vmem:[%s197 + $0x1c] sm:$0xf] %vm1337, %v1248
      %1346 = vst.msk [vmem:[%s197 + $0x20] sm:$0xf] %vm1337, %v1249
      %1347 = vst.msk [vmem:[%s197 + $0x24] sm:$0xf] %vm1337, %v1250
      %1348 = vst.msk [vmem:[%s197 + $0x28] sm:$0xf] %vm1337, %v1251
      %1349 = vst.msk [vmem:[%s197 + $0x2c] sm:$0xf] %vm1337, %v1252
      %1350 = vst.msk [vmem:[%s197 + $0x30] sm:$0xf] %vm1337, %v1253
      %1351 = vst.msk [vmem:[%s197 + $0x34] sm:$0xf] %vm1337, %v1254
      %1352 = vst.msk [vmem:[%s197 + $0x38] sm:$0xf] %vm1337, %v1255
      %1353 = vst.msk [vmem:[%s197 + $0x3c] sm:$0xf] %vm1337, %v1256
      %1354 = vst.msk [vmem:[%s197 + $0x40] sm:$0xf] %vm1337, %v1257
      %1355 = vst.msk [vmem:[%s197 + $0x44] sm:$0xf] %vm1337, %v1258
      %1356 = vst.msk [vmem:[%s197 + $0x48] sm:$0xf] %vm1337, %v1259
      %1357 = vst.msk [vmem:[%s197 + $0x4c] sm:$0xf] %vm1337, %v1260
      %1358 = vst.msk [vmem:[%s197 + $0x50] sm:$0xf] %vm1337, %v1261
      %1359 = vst.msk [vmem:[%s197 + $0x54] sm:$0xf] %vm1337, %v1262
      %1360 = vst.msk [vmem:[%s197 + $0x58] sm:$0xf] %vm1337, %v1263
      %1361 = vst.msk [vmem:[%s197 + $0x5c] sm:$0xf] %vm1337, %v1264
      %1362 = vst.msk [vmem:[%s197 + $0x60] sm:$0xf] %vm1337, %v1265
      %1363 = vst.msk [vmem:[%s197 + $0x64] sm:$0xf] %vm1337, %v1266
      %1364 = vst.msk [vmem:[%s197 + $0x68] sm:$0xf] %vm1337, %v1267
      %1365 = vst.msk [vmem:[%s197 + $0x6c] sm:$0xf] %vm1337, %v1268
      %1366 = vst.msk [vmem:[%s197 + $0x70] sm:$0xf] %vm1337, %v1269
      %1367 = vst.msk [vmem:[%s197 + $0x74] sm:$0xf] %vm1337, %v1270
      %1368 = vst.msk [vmem:[%s197 + $0x78] sm:$0xf] %vm1337, %v1271
      %1369 = vst.msk [vmem:[%s197 + $0x7c] sm:$0xf] %vm1337, %v1272
      %1370 = vst.msk [vmem:[%s197 + $0x80] sm:$0xf] %vm1337, %v1273
      %1371 = vst.msk [vmem:[%s197 + $0x84] sm:$0xf] %vm1337, %v1274
      %1372 = vst.msk [vmem:[%s197 + $0x88] sm:$0xf] %vm1337, %v1275
      %1373 = vst.msk [vmem:[%s197 + $0x8c] sm:$0xf] %vm1337, %v1276
      %1374 = vst.msk [vmem:[%s197 + $0x90] sm:$0xf] %vm1337, %v1277
      %1375 = vst.msk [vmem:[%s197 + $0x94] sm:$0xf] %vm1337, %v1278
      %1376 = vst.msk [vmem:[%s197 + $0x98] sm:$0xf] %vm1337, %v1279
      %1377 = vst.msk [vmem:[%s197 + $0x9c] sm:$0xf] %vm1337, %v1280
      %1378 = vst.msk [vmem:[%s197 + $0xa0] sm:$0xf] %vm1337, %v1281
      %1379 = vst.msk [vmem:[%s197 + $0xa4] sm:$0xf] %vm1337, %v1282
      %1380 = vst.msk [vmem:[%s197 + $0xa8] sm:$0xf] %vm1337, %v1283
      %1381 = vst.msk [vmem:[%s197 + $0xac] sm:$0xf] %vm1337, %v1284
      %1382 = vst.msk [vmem:[%s197 + $0xb0] sm:$0xf] %vm1337, %v1285
      %1383 = vst.msk [vmem:[%s197 + $0xb4] sm:$0xf] %vm1337, %v1286
      %1384 = vst.msk [vmem:[%s197 + $0xb8] sm:$0xf] %vm1337, %v1287
      %1385 = vst.msk [vmem:[%s197 + $0xbc] sm:$0xf] %vm1337, %v1288
      %1386 = vst.msk [vmem:[%s197 + $0xc0] sm:$0xf] %vm1337, %v1289
      %1387 = vst.msk [vmem:[%s197 + $0xc4] sm:$0xf] %vm1337, %v1290
      %1388 = vst.msk [vmem:[%s197 + $0xc8] sm:$0xf] %vm1337, %v1291
      %1389 = vst.msk [vmem:[%s197 + $0xcc] sm:$0xf] %vm1337, %v1292
      %1390 = vst.msk [vmem:[%s197 + $0xd0] sm:$0xf] %vm1337, %v1293
      %1391 = vst.msk [vmem:[%s197 + $0xd4] sm:$0xf] %vm1337, %v1294
      %1392 = vst.msk [vmem:[%s197 + $0xd8] sm:$0xf] %vm1337, %v1295
      %1393 = vst.msk [vmem:[%s197 + $0xdc] sm:$0xf] %vm1337, %v1296
      %1394 = vst.msk [vmem:[%s197 + $0xe0] sm:$0xf] %vm1337, %v1297
      %1395 = vst.msk [vmem:[%s197 + $0xe4] sm:$0xf] %vm1337, %v1298
      %1396 = vst.msk [vmem:[%s197 + $0xe8] sm:$0xf] %vm1337, %v1299
      %1397 = vst.msk [vmem:[%s197 + $0xec] sm:$0xf] %vm1337, %v1300
      %1398 = vst.msk [vmem:[%s197 + $0xf0] sm:$0xf] %vm1337, %v1301
      %1399 = vst.msk [vmem:[%s197 + $0xf4] sm:$0xf] %vm1337, %v1302
      %1400 = vst.msk [vmem:[%s197 + $0xf8] sm:$0xf] %vm1337, %v1303
      %1401 = vst.msk [vmem:[%s197 + $0xfc] sm:$0xf] %vm1337, %v1304
      %1402 = vst.msk [vmem:[%s197 + $0x100] sm:$0xf] %vm1337, %v1305
      %1403 = vst.msk [vmem:[%s197 + $0x104] sm:$0xf] %vm1337, %v1306
      %1404 = vst.msk [vmem:[%s197 + $0x108] sm:$0xf] %vm1337, %v1307
      %1405 = vst.msk [vmem:[%s197 + $0x10c] sm:$0xf] %vm1337, %v1308
      %1406 = vst.msk [vmem:[%s197 + $0x110] sm:$0xf] %vm1337, %v1309
      %1407 = vst.msk [vmem:[%s197 + $0x114] sm:$0xf] %vm1337, %v1310
      %1408 = vst.msk [vmem:[%s197 + $0x118] sm:$0xf] %vm1337, %v1311
      %1409 = vst.msk [vmem:[%s197 + $0x11c] sm:$0xf] %vm1337, %v1312
      %1410 = vst.msk [vmem:[%s197 + $0x120] sm:$0xf] %vm1337, %v1313
      %1411 = vst.msk [vmem:[%s197 + $0x124] sm:$0xf] %vm1337, %v1314
      %1412 = vst.msk [vmem:[%s197 + $0x128] sm:$0xf] %vm1337, %v1315
      %1413 = vst.msk [vmem:[%s197 + $0x12c] sm:$0xf] %vm1337, %v1316
      %1414 = vst.msk [vmem:[%s197 + $0x130] sm:$0xf] %vm1337, %v1317
      %1415 = vst.msk [vmem:[%s197 + $0x134] sm:$0xf] %vm1337, %v1318
      %1416 = vst.msk [vmem:[%s197 + $0x138] sm:$0xf] %vm1337, %v1319
      %1417 = vst.msk [vmem:[%s197 + $0x13c] sm:$0xf] %vm1337, %v1320
      %1418 = vst.msk [vmem:[%s197 + $0x140] sm:$0xf] %vm1337, %v1321
      %1419 = vst.msk [vmem:[%s197 + $0x144] sm:$0xf] %vm1337, %v1322
      %1420 = vst.msk [vmem:[%s197 + $0x148] sm:$0xf] %vm1337, %v1323
      %1421 = vst.msk [vmem:[%s197 + $0x14c] sm:$0xf] %vm1337, %v1324
      %1422 = vst.msk [vmem:[%s197 + $0x150] sm:$0xf] %vm1337, %v1325
      %1423 = vst.msk [vmem:[%s197 + $0x154] sm:$0xf] %vm1337, %v1326
      %1424 = vst.msk [vmem:[%s197 + $0x158] sm:$0xf] %vm1337, %v1327
      %1425 = vst.msk [vmem:[%s197 + $0x15c] sm:$0xf] %vm1337, %v1328
      %1426 = vst.msk [vmem:[%s197 + $0x160] sm:$0xf] %vm1337, %v1329
      %1427 = vst.msk [vmem:[%s197 + $0x164] sm:$0xf] %vm1337, %v1330
      %1428 = vst.msk [vmem:[%s197 + $0x168] sm:$0xf] %vm1337, %v1331
      %1429 = vst.msk [vmem:[%s197 + $0x16c] sm:$0xf] %vm1337, %v1332
      %1430 = vst.msk [vmem:[%s197 + $0x170] sm:$0xf] %vm1337, %v1333
      %1431 = vst.msk [vmem:[%s197 + $0x174] sm:$0xf] %vm1337, %v1334
      %1432 = vst.msk [vmem:[%s197 + $0x178] sm:$0xf] %vm1337, %v1335
      %1433 = vst.msk [vmem:[%s197 + $0x17c] sm:$0xf] %vm1337, %v1336
      %s1434 = scalar_lea.vmem %s192, 384
      %v1435 = vld [vmem:[%s1434] sm:$0xf]
      %v1436 = vld [vmem:[%s1434 + $0x4] sm:$0xf]
      %v1437 = vld [vmem:[%s1434 + $0x8] sm:$0xf]
      %v1438 = vld [vmem:[%s1434 + $0xc] sm:$0xf]
      %v1439 = vld [vmem:[%s1434 + $0x10] sm:$0xf]
      %v1440 = vld [vmem:[%s1434 + $0x14] sm:$0xf]
      %v1441 = vld [vmem:[%s1434 + $0x18] sm:$0xf]
      %v1442 = vld [vmem:[%s1434 + $0x1c] sm:$0xf]
      %v1443 = vld [vmem:[%s1434 + $0x20] sm:$0xf]
      %v1444 = vld [vmem:[%s1434 + $0x24] sm:$0xf]
      %v1445 = vld [vmem:[%s1434 + $0x28] sm:$0xf]
      %v1446 = vld [vmem:[%s1434 + $0x2c] sm:$0xf]
      %v1447 = vld [vmem:[%s1434 + $0x30] sm:$0xf]
      %v1448 = vld [vmem:[%s1434 + $0x34] sm:$0xf]
      %v1449 = vld [vmem:[%s1434 + $0x38] sm:$0xf]
      %v1450 = vld [vmem:[%s1434 + $0x3c] sm:$0xf]
      %v1451 = vld [vmem:[%s1434 + $0x40] sm:$0xf]
      %v1452 = vld [vmem:[%s1434 + $0x44] sm:$0xf]
      %v1453 = vld [vmem:[%s1434 + $0x48] sm:$0xf]
      %v1454 = vld [vmem:[%s1434 + $0x4c] sm:$0xf]
      %v1455 = vld [vmem:[%s1434 + $0x50] sm:$0xf]
      %v1456 = vld [vmem:[%s1434 + $0x54] sm:$0xf]
      %v1457 = vld [vmem:[%s1434 + $0x58] sm:$0xf]
      %v1458 = vld [vmem:[%s1434 + $0x5c] sm:$0xf]
      %v1459 = vld [vmem:[%s1434 + $0x60] sm:$0xf]
      %v1460 = vld [vmem:[%s1434 + $0x64] sm:$0xf]
      %v1461 = vld [vmem:[%s1434 + $0x68] sm:$0xf]
      %v1462 = vld [vmem:[%s1434 + $0x6c] sm:$0xf]
      %v1463 = vld [vmem:[%s1434 + $0x70] sm:$0xf]
      %v1464 = vld [vmem:[%s1434 + $0x74] sm:$0xf]
      %v1465 = vld [vmem:[%s1434 + $0x78] sm:$0xf]
      %v1466 = vld [vmem:[%s1434 + $0x7c] sm:$0xf]
      %v1467 = vld [vmem:[%s1434 + $0x80] sm:$0xf]
      %v1468 = vld [vmem:[%s1434 + $0x84] sm:$0xf]
      %v1469 = vld [vmem:[%s1434 + $0x88] sm:$0xf]
      %v1470 = vld [vmem:[%s1434 + $0x8c] sm:$0xf]
      %v1471 = vld [vmem:[%s1434 + $0x90] sm:$0xf]
      %v1472 = vld [vmem:[%s1434 + $0x94] sm:$0xf]
      %v1473 = vld [vmem:[%s1434 + $0x98] sm:$0xf]
      %v1474 = vld [vmem:[%s1434 + $0x9c] sm:$0xf]
      %v1475 = vld [vmem:[%s1434 + $0xa0] sm:$0xf]
      %v1476 = vld [vmem:[%s1434 + $0xa4] sm:$0xf]
      %v1477 = vld [vmem:[%s1434 + $0xa8] sm:$0xf]
      %v1478 = vld [vmem:[%s1434 + $0xac] sm:$0xf]
      %v1479 = vld [vmem:[%s1434 + $0xb0] sm:$0xf]
      %v1480 = vld [vmem:[%s1434 + $0xb4] sm:$0xf]
      %v1481 = vld [vmem:[%s1434 + $0xb8] sm:$0xf]
      %v1482 = vld [vmem:[%s1434 + $0xbc] sm:$0xf]
      %v1483 = vld [vmem:[%s1434 + $0xc0] sm:$0xf]
      %v1484 = vld [vmem:[%s1434 + $0xc4] sm:$0xf]
      %v1485 = vld [vmem:[%s1434 + $0xc8] sm:$0xf]
      %v1486 = vld [vmem:[%s1434 + $0xcc] sm:$0xf]
      %v1487 = vld [vmem:[%s1434 + $0xd0] sm:$0xf]
      %v1488 = vld [vmem:[%s1434 + $0xd4] sm:$0xf]
      %v1489 = vld [vmem:[%s1434 + $0xd8] sm:$0xf]
      %v1490 = vld [vmem:[%s1434 + $0xdc] sm:$0xf]
      %v1491 = vld [vmem:[%s1434 + $0xe0] sm:$0xf]
      %v1492 = vld [vmem:[%s1434 + $0xe4] sm:$0xf]
      %v1493 = vld [vmem:[%s1434 + $0xe8] sm:$0xf]
      %v1494 = vld [vmem:[%s1434 + $0xec] sm:$0xf]
      %v1495 = vld [vmem:[%s1434 + $0xf0] sm:$0xf]
      %v1496 = vld [vmem:[%s1434 + $0xf4] sm:$0xf]
      %v1497 = vld [vmem:[%s1434 + $0xf8] sm:$0xf]
      %v1498 = vld [vmem:[%s1434 + $0xfc] sm:$0xf]
      %v1499 = vld [vmem:[%s1434 + $0x100] sm:$0xf]
      %v1500 = vld [vmem:[%s1434 + $0x104] sm:$0xf]
      %v1501 = vld [vmem:[%s1434 + $0x108] sm:$0xf]
      %v1502 = vld [vmem:[%s1434 + $0x10c] sm:$0xf]
      %v1503 = vld [vmem:[%s1434 + $0x110] sm:$0xf]
      %v1504 = vld [vmem:[%s1434 + $0x114] sm:$0xf]
      %v1505 = vld [vmem:[%s1434 + $0x118] sm:$0xf]
      %v1506 = vld [vmem:[%s1434 + $0x11c] sm:$0xf]
      %v1507 = vld [vmem:[%s1434 + $0x120] sm:$0xf]
      %v1508 = vld [vmem:[%s1434 + $0x124] sm:$0xf]
      %v1509 = vld [vmem:[%s1434 + $0x128] sm:$0xf]
      %v1510 = vld [vmem:[%s1434 + $0x12c] sm:$0xf]
      %v1511 = vld [vmem:[%s1434 + $0x130] sm:$0xf]
      %v1512 = vld [vmem:[%s1434 + $0x134] sm:$0xf]
      %v1513 = vld [vmem:[%s1434 + $0x138] sm:$0xf]
      %v1514 = vld [vmem:[%s1434 + $0x13c] sm:$0xf]
      %v1515 = vld [vmem:[%s1434 + $0x140] sm:$0xf]
      %v1516 = vld [vmem:[%s1434 + $0x144] sm:$0xf]
      %v1517 = vld [vmem:[%s1434 + $0x148] sm:$0xf]
      %v1518 = vld [vmem:[%s1434 + $0x14c] sm:$0xf]
      %v1519 = vld [vmem:[%s1434 + $0x150] sm:$0xf]
      %v1520 = vld [vmem:[%s1434 + $0x154] sm:$0xf]
      %v1521 = vld [vmem:[%s1434 + $0x158] sm:$0xf]
      %v1522 = vld [vmem:[%s1434 + $0x15c] sm:$0xf]
      %v1523 = vld [vmem:[%s1434 + $0x160] sm:$0xf]
      %v1524 = vld [vmem:[%s1434 + $0x164] sm:$0xf]
      %v1525 = vld [vmem:[%s1434 + $0x168] sm:$0xf]
      %v1526 = vld [vmem:[%s1434 + $0x16c] sm:$0xf]
      %v1527 = vld [vmem:[%s1434 + $0x170] sm:$0xf]
      %v1528 = vld [vmem:[%s1434 + $0x174] sm:$0xf]
      %v1529 = vld [vmem:[%s1434 + $0x178] sm:$0xf]
      %v1530 = vld [vmem:[%s1434 + $0x17c] sm:$0xf]
      %v1627 = vunpack.c.l.b16 %v1435
      %v1628 = vunpack.c.l.b16 %v1436
      %v1629 = vunpack.c.l.b16 %v1437
      %v1630 = vunpack.c.l.b16 %v1438
      %v1631 = vunpack.c.l.b16 %v1439
      %v1632 = vunpack.c.l.b16 %v1440
      %v1633 = vunpack.c.l.b16 %v1441
      %v1634 = vunpack.c.l.b16 %v1442
      %v1635 = vunpack.c.l.b16 %v1443
      %v1636 = vunpack.c.l.b16 %v1444
      %v1637 = vunpack.c.l.b16 %v1445
      %v1638 = vunpack.c.l.b16 %v1446
      %v1639 = vunpack.c.l.b16 %v1447
      %v1640 = vunpack.c.l.b16 %v1448
      %v1641 = vunpack.c.l.b16 %v1449
      %v1642 = vunpack.c.l.b16 %v1450
      %v1643 = vunpack.c.l.b16 %v1451
      %v1644 = vunpack.c.l.b16 %v1452
      %v1645 = vunpack.c.l.b16 %v1453
      %v1646 = vunpack.c.l.b16 %v1454
      %v1647 = vunpack.c.l.b16 %v1455
      %v1648 = vunpack.c.l.b16 %v1456
      %v1649 = vunpack.c.l.b16 %v1457
      %v1650 = vunpack.c.l.b16 %v1458
      %v1651 = vunpack.c.l.b16 %v1459
      %v1652 = vunpack.c.l.b16 %v1460
      %v1653 = vunpack.c.l.b16 %v1461
      %v1654 = vunpack.c.l.b16 %v1462
      %v1655 = vunpack.c.l.b16 %v1463
      %v1656 = vunpack.c.l.b16 %v1464
      %v1657 = vunpack.c.l.b16 %v1465
      %v1658 = vunpack.c.l.b16 %v1466
      %v1659 = vunpack.c.l.b16 %v1467
      %v1660 = vunpack.c.l.b16 %v1468
      %v1661 = vunpack.c.l.b16 %v1469
      %v1662 = vunpack.c.l.b16 %v1470
      %v1663 = vunpack.c.l.b16 %v1471
      %v1664 = vunpack.c.l.b16 %v1472
      %v1665 = vunpack.c.l.b16 %v1473
      %v1666 = vunpack.c.l.b16 %v1474
      %v1667 = vunpack.c.l.b16 %v1475
      %v1668 = vunpack.c.l.b16 %v1476
      %v1669 = vunpack.c.l.b16 %v1477
      %v1670 = vunpack.c.l.b16 %v1478
      %v1671 = vunpack.c.l.b16 %v1479
      %v1672 = vunpack.c.l.b16 %v1480
      %v1673 = vunpack.c.l.b16 %v1481
      %v1674 = vunpack.c.l.b16 %v1482
      %v1675 = vunpack.c.l.b16 %v1483
      %v1676 = vunpack.c.l.b16 %v1484
      %v1677 = vunpack.c.l.b16 %v1485
      %v1678 = vunpack.c.l.b16 %v1486
      %v1679 = vunpack.c.l.b16 %v1487
      %v1680 = vunpack.c.l.b16 %v1488
      %v1681 = vunpack.c.l.b16 %v1489
      %v1682 = vunpack.c.l.b16 %v1490
      %v1683 = vunpack.c.l.b16 %v1491
      %v1684 = vunpack.c.l.b16 %v1492
      %v1685 = vunpack.c.l.b16 %v1493
      %v1686 = vunpack.c.l.b16 %v1494
      %v1687 = vunpack.c.l.b16 %v1495
      %v1688 = vunpack.c.l.b16 %v1496
      %v1689 = vunpack.c.l.b16 %v1497
      %v1690 = vunpack.c.l.b16 %v1498
      %v1691 = vunpack.c.l.b16 %v1499
      %v1692 = vunpack.c.l.b16 %v1500
      %v1693 = vunpack.c.l.b16 %v1501
      %v1694 = vunpack.c.l.b16 %v1502
      %v1695 = vunpack.c.l.b16 %v1503
      %v1696 = vunpack.c.l.b16 %v1504
      %v1697 = vunpack.c.l.b16 %v1505
      %v1698 = vunpack.c.l.b16 %v1506
      %v1699 = vunpack.c.l.b16 %v1507
      %v1700 = vunpack.c.l.b16 %v1508
      %v1701 = vunpack.c.l.b16 %v1509
      %v1702 = vunpack.c.l.b16 %v1510
      %v1703 = vunpack.c.l.b16 %v1511
      %v1704 = vunpack.c.l.b16 %v1512
      %v1705 = vunpack.c.l.b16 %v1513
      %v1706 = vunpack.c.l.b16 %v1514
      %v1707 = vunpack.c.l.b16 %v1515
      %v1708 = vunpack.c.l.b16 %v1516
      %v1709 = vunpack.c.l.b16 %v1517
      %v1710 = vunpack.c.l.b16 %v1518
      %v1711 = vunpack.c.l.b16 %v1519
      %v1712 = vunpack.c.l.b16 %v1520
      %v1713 = vunpack.c.l.b16 %v1521
      %v1714 = vunpack.c.l.b16 %v1522
      %v1715 = vunpack.c.l.b16 %v1523
      %v1716 = vunpack.c.l.b16 %v1524
      %v1717 = vunpack.c.l.b16 %v1525
      %v1718 = vunpack.c.l.b16 %v1526
      %v1719 = vunpack.c.l.b16 %v1527
      %v1720 = vunpack.c.l.b16 %v1528
      %v1721 = vunpack.c.l.b16 %v1529
      %v1722 = vunpack.c.l.b16 %v1530
      %v1723 = vpack.c.b16 %v1628, %v1627
      %v1724 = vpack.c.b16 %v1630, %v1629
      %v1725 = vpack.c.b16 %v1632, %v1631
      %v1726 = vpack.c.b16 %v1634, %v1633
      %v1727 = vpack.c.b16 %v1636, %v1635
      %v1728 = vpack.c.b16 %v1638, %v1637
      %v1729 = vpack.c.b16 %v1640, %v1639
      %v1730 = vpack.c.b16 %v1642, %v1641
      %v1731 = vpack.c.b16 %v1644, %v1643
      %v1732 = vpack.c.b16 %v1646, %v1645
      %v1733 = vpack.c.b16 %v1648, %v1647
      %v1734 = vpack.c.b16 %v1650, %v1649
      %v1735 = vpack.c.b16 %v1652, %v1651
      %v1736 = vpack.c.b16 %v1654, %v1653
      %v1737 = vpack.c.b16 %v1656, %v1655
      %v1738 = vpack.c.b16 %v1658, %v1657
      %v1739 = vpack.c.b16 %v1660, %v1659
      %v1740 = vpack.c.b16 %v1662, %v1661
      %v1741 = vpack.c.b16 %v1664, %v1663
      %v1742 = vpack.c.b16 %v1666, %v1665
      %v1743 = vpack.c.b16 %v1668, %v1667
      %v1744 = vpack.c.b16 %v1670, %v1669
      %v1745 = vpack.c.b16 %v1672, %v1671
      %v1746 = vpack.c.b16 %v1674, %v1673
      %v1747 = vpack.c.b16 %v1676, %v1675
      %v1748 = vpack.c.b16 %v1678, %v1677
      %v1749 = vpack.c.b16 %v1680, %v1679
      %v1750 = vpack.c.b16 %v1682, %v1681
      %v1751 = vpack.c.b16 %v1684, %v1683
      %v1752 = vpack.c.b16 %v1686, %v1685
      %v1753 = vpack.c.b16 %v1688, %v1687
      %v1754 = vpack.c.b16 %v1690, %v1689
      %v1755 = vpack.c.b16 %v1692, %v1691
      %v1756 = vpack.c.b16 %v1694, %v1693
      %v1757 = vpack.c.b16 %v1696, %v1695
      %v1758 = vpack.c.b16 %v1698, %v1697
      %v1759 = vpack.c.b16 %v1700, %v1699
      %v1760 = vpack.c.b16 %v1702, %v1701
      %v1761 = vpack.c.b16 %v1704, %v1703
      %v1762 = vpack.c.b16 %v1706, %v1705
      %v1763 = vpack.c.b16 %v1708, %v1707
      %v1764 = vpack.c.b16 %v1710, %v1709
      %v1765 = vpack.c.b16 %v1712, %v1711
      %v1766 = vpack.c.b16 %v1714, %v1713
      %v1767 = vpack.c.b16 %v1716, %v1715
      %v1768 = vpack.c.b16 %v1718, %v1717
      %v1769 = vpack.c.b16 %v1720, %v1719
      %v1770 = vpack.c.b16 %v1722, %v1721
      %v1772 = vsel %vm551, %v1723, 0
      %v1775 = vsel %vm551, %v1724, 0
      %v1778 = vsel %vm551, %v1725, 0
      %v1781 = vsel %vm551, %v1726, 0
      %v1784 = vsel %vm551, %v1727, 0
      %v1787 = vsel %vm551, %v1728, 0
      %v1790 = vsel %vm551, %v1729, 0
      %v1793 = vsel %vm551, %v1730, 0
      %v1796 = vsel %vm551, %v1731, 0
      %v1799 = vsel %vm551, %v1732, 0
      %v1802 = vsel %vm551, %v1733, 0
      %v1805 = vsel %vm551, %v1734, 0
      %v1808 = vsel %vm551, %v1735, 0
      %v1811 = vsel %vm551, %v1736, 0
      %v1814 = vsel %vm551, %v1737, 0
      %v1817 = vsel %vm551, %v1738, 0
      %v1820 = vsel %vm551, %v1739, 0
      %v1823 = vsel %vm551, %v1740, 0
      %v1826 = vsel %vm551, %v1741, 0
      %v1829 = vsel %vm551, %v1742, 0
      %v1832 = vsel %vm551, %v1743, 0
      %v1835 = vsel %vm551, %v1744, 0
      %v1838 = vsel %vm551, %v1745, 0
      %v1841 = vsel %vm551, %v1746, 0
      %v1844 = vsel %vm551, %v1747, 0
      %v1847 = vsel %vm551, %v1748, 0
      %v1850 = vsel %vm551, %v1749, 0
      %v1853 = vsel %vm551, %v1750, 0
      %v1856 = vsel %vm551, %v1751, 0
      %v1859 = vsel %vm551, %v1752, 0
      %v1862 = vsel %vm551, %v1753, 0
      %v1865 = vsel %vm551, %v1754, 0
      %v1868 = vsel %vm551, %v1755, 0
      %v1871 = vsel %vm551, %v1756, 0
      %v1874 = vsel %vm551, %v1757, 0
      %v1877 = vsel %vm551, %v1758, 0
      %v1880 = vsel %vm551, %v1759, 0
      %v1883 = vsel %vm551, %v1760, 0
      %v1886 = vsel %vm551, %v1761, 0
      %v1889 = vsel %vm551, %v1762, 0
      %v1892 = vsel %vm551, %v1763, 0
      %v1895 = vsel %vm551, %v1764, 0
      %v1898 = vsel %vm551, %v1765, 0
      %v1901 = vsel %vm551, %v1766, 0
      %v1904 = vsel %vm551, %v1767, 0
      %v1907 = vsel %vm551, %v1768, 0
      %v1910 = vsel %vm551, %v1769, 0
      %v1913 = vsel %vm551, %v1770, 0
      %1915 = vmatpush.bf16.msra.mxu0 0
      %1916 = vmatpush.bf16.msra.mxu0 0
      %1917 = vmatpush.bf16.msra.mxu0 0
      %1918 = vmatpush.bf16.msra.mxu0 0
      %1919 = vmatpush.bf16.msra.mxu0 0
      %1920 = vmatpush.bf16.msra.mxu0 0
      %1921 = vmatpush.bf16.msra.mxu0 %v548
      %1922 = vmatpush.bf16.msra.mxu0 %v547
      %1923 = vmatmul.bf16.gmra.mxu0 %v1772
      %v1924 = vpop.f32.mrf.mxu0
      %v1925 = vadd.f32 0.0, %v1924
      %v1926 = vpop.f32.mrf.mxu0
      %v1927 = vadd.f32 0.0, %v1926
      %1928 = vmatmul.bf16.gmra.mxu0 %v1775
      %v1929 = vpop.f32.mrf.mxu0
      %v1930 = vadd.f32 0.0, %v1929
      %v1931 = vpop.f32.mrf.mxu0
      %v1932 = vadd.f32 0.0, %v1931
      %1933 = vmatmul.bf16.gmra.mxu0 %v1778
      %v1934 = vpop.f32.mrf.mxu0
      %v1935 = vadd.f32 0.0, %v1934
      %v1936 = vpop.f32.mrf.mxu0
      %v1937 = vadd.f32 0.0, %v1936
      %1938 = vmatmul.bf16.gmra.mxu0 %v1781
      %v1939 = vpop.f32.mrf.mxu0
      %v1940 = vadd.f32 0.0, %v1939
      %v1941 = vpop.f32.mrf.mxu0
      %v1942 = vadd.f32 0.0, %v1941
      %1943 = vmatmul.bf16.gmra.mxu0 %v1784
      %v1944 = vpop.f32.mrf.mxu0
      %v1945 = vadd.f32 0.0, %v1944
      %v1946 = vpop.f32.mrf.mxu0
      %v1947 = vadd.f32 0.0, %v1946
      %1948 = vmatmul.bf16.gmra.mxu0 %v1787
      %v1949 = vpop.f32.mrf.mxu0
      %v1950 = vadd.f32 0.0, %v1949
      %v1951 = vpop.f32.mrf.mxu0
      %v1952 = vadd.f32 0.0, %v1951
      %1953 = vmatmul.bf16.gmra.mxu0 %v1790
      %v1954 = vpop.f32.mrf.mxu0
      %v1955 = vadd.f32 0.0, %v1954
      %v1956 = vpop.f32.mrf.mxu0
      %v1957 = vadd.f32 0.0, %v1956
      %1958 = vmatmul.bf16.gmra.mxu0 %v1793
      %v1959 = vpop.f32.mrf.mxu0
      %v1960 = vadd.f32 0.0, %v1959
      %v1961 = vpop.f32.mrf.mxu0
      %v1962 = vadd.f32 0.0, %v1961
      %1963 = vmatmul.bf16.gmra.mxu0 %v1796
      %v1964 = vpop.f32.mrf.mxu0
      %v1965 = vadd.f32 0.0, %v1964
      %v1966 = vpop.f32.mrf.mxu0
      %v1967 = vadd.f32 0.0, %v1966
      %1968 = vmatmul.bf16.gmra.mxu0 %v1799
      %v1969 = vpop.f32.mrf.mxu0
      %v1970 = vadd.f32 0.0, %v1969
      %v1971 = vpop.f32.mrf.mxu0
      %v1972 = vadd.f32 0.0, %v1971
      %1973 = vmatmul.bf16.gmra.mxu0 %v1802
      %v1974 = vpop.f32.mrf.mxu0
      %v1975 = vadd.f32 0.0, %v1974
      %v1976 = vpop.f32.mrf.mxu0
      %v1977 = vadd.f32 0.0, %v1976
      %1978 = vmatmul.bf16.gmra.mxu0 %v1805
      %v1979 = vpop.f32.mrf.mxu0
      %v1980 = vadd.f32 0.0, %v1979
      %v1981 = vpop.f32.mrf.mxu0
      %v1982 = vadd.f32 0.0, %v1981
      %1983 = vmatmul.bf16.gmra.mxu0 %v1808
      %v1984 = vpop.f32.mrf.mxu0
      %v1985 = vadd.f32 0.0, %v1984
      %v1986 = vpop.f32.mrf.mxu0
      %v1987 = vadd.f32 0.0, %v1986
      %1988 = vmatmul.bf16.gmra.mxu0 %v1811
      %v1989 = vpop.f32.mrf.mxu0
      %v1990 = vadd.f32 0.0, %v1989
      %v1991 = vpop.f32.mrf.mxu0
      %v1992 = vadd.f32 0.0, %v1991
      %1993 = vmatmul.bf16.gmra.mxu0 %v1814
      %v1994 = vpop.f32.mrf.mxu0
      %v1995 = vadd.f32 0.0, %v1994
      %v1996 = vpop.f32.mrf.mxu0
      %v1997 = vadd.f32 0.0, %v1996
      %1998 = vmatmul.bf16.gmra.mxu0 %v1817
      %v1999 = vpop.f32.mrf.mxu0
      %v2000 = vadd.f32 0.0, %v1999
      %v2001 = vpop.f32.mrf.mxu0
      %v2002 = vadd.f32 0.0, %v2001
      %2003 = vmatmul.bf16.gmra.mxu0 %v1820
      %v2004 = vpop.f32.mrf.mxu0
      %v2005 = vadd.f32 0.0, %v2004
      %v2006 = vpop.f32.mrf.mxu0
      %v2007 = vadd.f32 0.0, %v2006
      %2008 = vmatmul.bf16.gmra.mxu0 %v1823
      %v2009 = vpop.f32.mrf.mxu0
      %v2010 = vadd.f32 0.0, %v2009
      %v2011 = vpop.f32.mrf.mxu0
      %v2012 = vadd.f32 0.0, %v2011
      %2013 = vmatmul.bf16.gmra.mxu0 %v1826
      %v2014 = vpop.f32.mrf.mxu0
      %v2015 = vadd.f32 0.0, %v2014
      %v2016 = vpop.f32.mrf.mxu0
      %v2017 = vadd.f32 0.0, %v2016
      %2018 = vmatmul.bf16.gmra.mxu0 %v1829
      %v2019 = vpop.f32.mrf.mxu0
      %v2020 = vadd.f32 0.0, %v2019
      %v2021 = vpop.f32.mrf.mxu0
      %v2022 = vadd.f32 0.0, %v2021
      %2023 = vmatmul.bf16.gmra.mxu0 %v1832
      %v2024 = vpop.f32.mrf.mxu0
      %v2025 = vadd.f32 0.0, %v2024
      %v2026 = vpop.f32.mrf.mxu0
      %v2027 = vadd.f32 0.0, %v2026
      %2028 = vmatmul.bf16.gmra.mxu0 %v1835
      %v2029 = vpop.f32.mrf.mxu0
      %v2030 = vadd.f32 0.0, %v2029
      %v2031 = vpop.f32.mrf.mxu0
      %v2032 = vadd.f32 0.0, %v2031
      %2033 = vmatmul.bf16.gmra.mxu0 %v1838
      %v2034 = vpop.f32.mrf.mxu0
      %v2035 = vadd.f32 0.0, %v2034
      %v2036 = vpop.f32.mrf.mxu0
      %v2037 = vadd.f32 0.0, %v2036
      %2038 = vmatmul.bf16.gmra.mxu0 %v1841
      %v2039 = vpop.f32.mrf.mxu0
      %v2040 = vadd.f32 0.0, %v2039
      %v2041 = vpop.f32.mrf.mxu0
      %v2042 = vadd.f32 0.0, %v2041
      %2043 = vmatmul.bf16.gmra.mxu0 %v1844
      %v2044 = vpop.f32.mrf.mxu0
      %v2045 = vadd.f32 0.0, %v2044
      %v2046 = vpop.f32.mrf.mxu0
      %v2047 = vadd.f32 0.0, %v2046
      %2048 = vmatmul.bf16.gmra.mxu0 %v1847
      %v2049 = vpop.f32.mrf.mxu0
      %v2050 = vadd.f32 0.0, %v2049
      %v2051 = vpop.f32.mrf.mxu0
      %v2052 = vadd.f32 0.0, %v2051
      %2053 = vmatmul.bf16.gmra.mxu0 %v1850
      %v2054 = vpop.f32.mrf.mxu0
      %v2055 = vadd.f32 0.0, %v2054
      %v2056 = vpop.f32.mrf.mxu0
      %v2057 = vadd.f32 0.0, %v2056
      %2058 = vmatmul.bf16.gmra.mxu0 %v1853
      %v2059 = vpop.f32.mrf.mxu0
      %v2060 = vadd.f32 0.0, %v2059
      %v2061 = vpop.f32.mrf.mxu0
      %v2062 = vadd.f32 0.0, %v2061
      %2063 = vmatmul.bf16.gmra.mxu0 %v1856
      %v2064 = vpop.f32.mrf.mxu0
      %v2065 = vadd.f32 0.0, %v2064
      %v2066 = vpop.f32.mrf.mxu0
      %v2067 = vadd.f32 0.0, %v2066
      %2068 = vmatmul.bf16.gmra.mxu0 %v1859
      %v2069 = vpop.f32.mrf.mxu0
      %v2070 = vadd.f32 0.0, %v2069
      %v2071 = vpop.f32.mrf.mxu0
      %v2072 = vadd.f32 0.0, %v2071
      %2073 = vmatmul.bf16.gmra.mxu0 %v1862
      %v2074 = vpop.f32.mrf.mxu0
      %v2075 = vadd.f32 0.0, %v2074
      %v2076 = vpop.f32.mrf.mxu0
      %v2077 = vadd.f32 0.0, %v2076
      %2078 = vmatmul.bf16.gmra.mxu0 %v1865
      %v2079 = vpop.f32.mrf.mxu0
      %v2080 = vadd.f32 0.0, %v2079
      %v2081 = vpop.f32.mrf.mxu0
      %v2082 = vadd.f32 0.0, %v2081
      %2083 = vmatmul.bf16.gmra.mxu0 %v1868
      %v2084 = vpop.f32.mrf.mxu0
      %v2085 = vadd.f32 0.0, %v2084
      %v2086 = vpop.f32.mrf.mxu0
      %v2087 = vadd.f32 0.0, %v2086
      %2088 = vmatmul.bf16.gmra.mxu0 %v1871
      %v2089 = vpop.f32.mrf.mxu0
      %v2090 = vadd.f32 0.0, %v2089
      %v2091 = vpop.f32.mrf.mxu0
      %v2092 = vadd.f32 0.0, %v2091
      %2093 = vmatmul.bf16.gmra.mxu0 %v1874
      %v2094 = vpop.f32.mrf.mxu0
      %v2095 = vadd.f32 0.0, %v2094
      %v2096 = vpop.f32.mrf.mxu0
      %v2097 = vadd.f32 0.0, %v2096
      %2098 = vmatmul.bf16.gmra.mxu0 %v1877
      %v2099 = vpop.f32.mrf.mxu0
      %v2100 = vadd.f32 0.0, %v2099
      %v2101 = vpop.f32.mrf.mxu0
      %v2102 = vadd.f32 0.0, %v2101
      %2103 = vmatmul.bf16.gmra.mxu0 %v1880
      %v2104 = vpop.f32.mrf.mxu0
      %v2105 = vadd.f32 0.0, %v2104
      %v2106 = vpop.f32.mrf.mxu0
      %v2107 = vadd.f32 0.0, %v2106
      %2108 = vmatmul.bf16.gmra.mxu0 %v1883
      %v2109 = vpop.f32.mrf.mxu0
      %v2110 = vadd.f32 0.0, %v2109
      %v2111 = vpop.f32.mrf.mxu0
      %v2112 = vadd.f32 0.0, %v2111
      %2113 = vmatmul.bf16.gmra.mxu0 %v1886
      %v2114 = vpop.f32.mrf.mxu0
      %v2115 = vadd.f32 0.0, %v2114
      %v2116 = vpop.f32.mrf.mxu0
      %v2117 = vadd.f32 0.0, %v2116
      %2118 = vmatmul.bf16.gmra.mxu0 %v1889
      %v2119 = vpop.f32.mrf.mxu0
      %v2120 = vadd.f32 0.0, %v2119
      %v2121 = vpop.f32.mrf.mxu0
      %v2122 = vadd.f32 0.0, %v2121
      %2123 = vmatmul.bf16.gmra.mxu0 %v1892
      %v2124 = vpop.f32.mrf.mxu0
      %v2125 = vadd.f32 0.0, %v2124
      %v2126 = vpop.f32.mrf.mxu0
      %v2127 = vadd.f32 0.0, %v2126
      %2128 = vmatmul.bf16.gmra.mxu0 %v1895
      %v2129 = vpop.f32.mrf.mxu0
      %v2130 = vadd.f32 0.0, %v2129
      %v2131 = vpop.f32.mrf.mxu0
      %v2132 = vadd.f32 0.0, %v2131
      %2133 = vmatmul.bf16.gmra.mxu0 %v1898
      %v2134 = vpop.f32.mrf.mxu0
      %v2135 = vadd.f32 0.0, %v2134
      %v2136 = vpop.f32.mrf.mxu0
      %v2137 = vadd.f32 0.0, %v2136
      %2138 = vmatmul.bf16.gmra.mxu0 %v1901
      %v2139 = vpop.f32.mrf.mxu0
      %v2140 = vadd.f32 0.0, %v2139
      %v2141 = vpop.f32.mrf.mxu0
      %v2142 = vadd.f32 0.0, %v2141
      %2143 = vmatmul.bf16.gmra.mxu0 %v1904
      %v2144 = vpop.f32.mrf.mxu0
      %v2145 = vadd.f32 0.0, %v2144
      %v2146 = vpop.f32.mrf.mxu0
      %v2147 = vadd.f32 0.0, %v2146
      %2148 = vmatmul.bf16.gmra.mxu0 %v1907
      %v2149 = vpop.f32.mrf.mxu0
      %v2150 = vadd.f32 0.0, %v2149
      %v2151 = vpop.f32.mrf.mxu0
      %v2152 = vadd.f32 0.0, %v2151
      %2153 = vmatmul.bf16.gmra.mxu0 %v1910
      %v2154 = vpop.f32.mrf.mxu0
      %v2155 = vadd.f32 0.0, %v2154
      %v2156 = vpop.f32.mrf.mxu0
      %v2157 = vadd.f32 0.0, %v2156
      %2158 = vmatmul.bf16.gmra.mxu0 %v1913
      %v2159 = vpop.f32.mrf.mxu0
      %v2160 = vadd.f32 0.0, %v2159
      %v2161 = vpop.f32.mrf.mxu0
      %v2162 = vadd.f32 0.0, %v2161
      %2163 = vdwg.mxu0
      %v2164 = vld [vmem:[%s2] sm:$0x1]
      %v2166 = vperm.slane %v2164, 0
      %v2168 = vmul.f32 %v1925, %v2166
      %v2169 = vmul.f32 %v1927, %v2166
      %v2170 = vmul.f32 %v1930, %v2166
      %v2171 = vmul.f32 %v1932, %v2166
      %v2172 = vmul.f32 %v1935, %v2166
      %v2173 = vmul.f32 %v1937, %v2166
      %v2174 = vmul.f32 %v1940, %v2166
      %v2175 = vmul.f32 %v1942, %v2166
      %v2176 = vmul.f32 %v1945, %v2166
      %v2177 = vmul.f32 %v1947, %v2166
      %v2178 = vmul.f32 %v1950, %v2166
      %v2179 = vmul.f32 %v1952, %v2166
      %v2180 = vmul.f32 %v1955, %v2166
      %v2181 = vmul.f32 %v1957, %v2166
      %v2182 = vmul.f32 %v1960, %v2166
      %v2183 = vmul.f32 %v1962, %v2166
      %v2184 = vmul.f32 %v1965, %v2166
      %v2185 = vmul.f32 %v1967, %v2166
      %v2186 = vmul.f32 %v1970, %v2166
      %v2187 = vmul.f32 %v1972, %v2166
      %v2188 = vmul.f32 %v1975, %v2166
      %v2189 = vmul.f32 %v1977, %v2166
      %v2190 = vmul.f32 %v1980, %v2166
      %v2191 = vmul.f32 %v1982, %v2166
      %v2192 = vmul.f32 %v1985, %v2166
      %v2193 = vmul.f32 %v1987, %v2166
      %v2194 = vmul.f32 %v1990, %v2166
      %v2195 = vmul.f32 %v1992, %v2166
      %v2196 = vmul.f32 %v1995, %v2166
      %v2197 = vmul.f32 %v1997, %v2166
      %v2198 = vmul.f32 %v2000, %v2166
      %v2199 = vmul.f32 %v2002, %v2166
      %v2200 = vmul.f32 %v2005, %v2166
      %v2201 = vmul.f32 %v2007, %v2166
      %v2202 = vmul.f32 %v2010, %v2166
      %v2203 = vmul.f32 %v2012, %v2166
      %v2204 = vmul.f32 %v2015, %v2166
      %v2205 = vmul.f32 %v2017, %v2166
      %v2206 = vmul.f32 %v2020, %v2166
      %v2207 = vmul.f32 %v2022, %v2166
      %v2208 = vmul.f32 %v2025, %v2166
      %v2209 = vmul.f32 %v2027, %v2166
      %v2210 = vmul.f32 %v2030, %v2166
      %v2211 = vmul.f32 %v2032, %v2166
      %v2212 = vmul.f32 %v2035, %v2166
      %v2213 = vmul.f32 %v2037, %v2166
      %v2214 = vmul.f32 %v2040, %v2166
      %v2215 = vmul.f32 %v2042, %v2166
      %v2216 = vmul.f32 %v2045, %v2166
      %v2217 = vmul.f32 %v2047, %v2166
      %v2218 = vmul.f32 %v2050, %v2166
      %v2219 = vmul.f32 %v2052, %v2166
      %v2220 = vmul.f32 %v2055, %v2166
      %v2221 = vmul.f32 %v2057, %v2166
      %v2222 = vmul.f32 %v2060, %v2166
      %v2223 = vmul.f32 %v2062, %v2166
      %v2224 = vmul.f32 %v2065, %v2166
      %v2225 = vmul.f32 %v2067, %v2166
      %v2226 = vmul.f32 %v2070, %v2166
      %v2227 = vmul.f32 %v2072, %v2166
      %v2228 = vmul.f32 %v2075, %v2166
      %v2229 = vmul.f32 %v2077, %v2166
      %v2230 = vmul.f32 %v2080, %v2166
      %v2231 = vmul.f32 %v2082, %v2166
      %v2232 = vmul.f32 %v2085, %v2166
      %v2233 = vmul.f32 %v2087, %v2166
      %v2234 = vmul.f32 %v2090, %v2166
      %v2235 = vmul.f32 %v2092, %v2166
      %v2236 = vmul.f32 %v2095, %v2166
      %v2237 = vmul.f32 %v2097, %v2166
      %v2238 = vmul.f32 %v2100, %v2166
      %v2239 = vmul.f32 %v2102, %v2166
      %v2240 = vmul.f32 %v2105, %v2166
      %v2241 = vmul.f32 %v2107, %v2166
      %v2242 = vmul.f32 %v2110, %v2166
      %v2243 = vmul.f32 %v2112, %v2166
      %v2244 = vmul.f32 %v2115, %v2166
      %v2245 = vmul.f32 %v2117, %v2166
      %v2246 = vmul.f32 %v2120, %v2166
      %v2247 = vmul.f32 %v2122, %v2166
      %v2248 = vmul.f32 %v2125, %v2166
      %v2249 = vmul.f32 %v2127, %v2166
      %v2250 = vmul.f32 %v2130, %v2166
      %v2251 = vmul.f32 %v2132, %v2166
      %v2252 = vmul.f32 %v2135, %v2166
      %v2253 = vmul.f32 %v2137, %v2166
      %v2254 = vmul.f32 %v2140, %v2166
      %v2255 = vmul.f32 %v2142, %v2166
      %v2256 = vmul.f32 %v2145, %v2166
      %v2257 = vmul.f32 %v2147, %v2166
      %v2258 = vmul.f32 %v2150, %v2166
      %v2259 = vmul.f32 %v2152, %v2166
      %v2260 = vmul.f32 %v2155, %v2166
      %v2261 = vmul.f32 %v2157, %v2166
      %v2262 = vmul.f32 %v2160, %v2166
      %v2263 = vmul.f32 %v2162, %v2166
      %v2264 = vld [vmem:[%s3] sm:$0x1]
      %v2266 = vperm.slane %v2264, 0
      %v2268 = vadd.f32 %v2168, %v2266
      %v2269 = vadd.f32 %v2169, %v2266
      %v2270 = vadd.f32 %v2170, %v2266
      %v2271 = vadd.f32 %v2171, %v2266
      %v2272 = vadd.f32 %v2172, %v2266
      %v2273 = vadd.f32 %v2173, %v2266
      %v2274 = vadd.f32 %v2174, %v2266
      %v2275 = vadd.f32 %v2175, %v2266
      %v2276 = vadd.f32 %v2176, %v2266
      %v2277 = vadd.f32 %v2177, %v2266
      %v2278 = vadd.f32 %v2178, %v2266
      %v2279 = vadd.f32 %v2179, %v2266
      %v2280 = vadd.f32 %v2180, %v2266
      %v2281 = vadd.f32 %v2181, %v2266
      %v2282 = vadd.f32 %v2182, %v2266
      %v2283 = vadd.f32 %v2183, %v2266
      %v2284 = vadd.f32 %v2184, %v2266
      %v2285 = vadd.f32 %v2185, %v2266
      %v2286 = vadd.f32 %v2186, %v2266
      %v2287 = vadd.f32 %v2187, %v2266
      %v2288 = vadd.f32 %v2188, %v2266
      %v2289 = vadd.f32 %v2189, %v2266
      %v2290 = vadd.f32 %v2190, %v2266
      %v2291 = vadd.f32 %v2191, %v2266
      %v2292 = vadd.f32 %v2192, %v2266
      %v2293 = vadd.f32 %v2193, %v2266
      %v2294 = vadd.f32 %v2194, %v2266
      %v2295 = vadd.f32 %v2195, %v2266
      %v2296 = vadd.f32 %v2196, %v2266
      %v2297 = vadd.f32 %v2197, %v2266
      %v2298 = vadd.f32 %v2198, %v2266
      %v2299 = vadd.f32 %v2199, %v2266
      %v2300 = vadd.f32 %v2200, %v2266
      %v2301 = vadd.f32 %v2201, %v2266
      %v2302 = vadd.f32 %v2202, %v2266
      %v2303 = vadd.f32 %v2203, %v2266
      %v2304 = vadd.f32 %v2204, %v2266
      %v2305 = vadd.f32 %v2205, %v2266
      %v2306 = vadd.f32 %v2206, %v2266
      %v2307 = vadd.f32 %v2207, %v2266
      %v2308 = vadd.f32 %v2208, %v2266
      %v2309 = vadd.f32 %v2209, %v2266
      %v2310 = vadd.f32 %v2210, %v2266
      %v2311 = vadd.f32 %v2211, %v2266
      %v2312 = vadd.f32 %v2212, %v2266
      %v2313 = vadd.f32 %v2213, %v2266
      %v2314 = vadd.f32 %v2214, %v2266
      %v2315 = vadd.f32 %v2215, %v2266
      %v2316 = vadd.f32 %v2216, %v2266
      %v2317 = vadd.f32 %v2217, %v2266
      %v2318 = vadd.f32 %v2218, %v2266
      %v2319 = vadd.f32 %v2219, %v2266
      %v2320 = vadd.f32 %v2220, %v2266
      %v2321 = vadd.f32 %v2221, %v2266
      %v2322 = vadd.f32 %v2222, %v2266
      %v2323 = vadd.f32 %v2223, %v2266
      %v2324 = vadd.f32 %v2224, %v2266
      %v2325 = vadd.f32 %v2225, %v2266
      %v2326 = vadd.f32 %v2226, %v2266
      %v2327 = vadd.f32 %v2227, %v2266
      %v2328 = vadd.f32 %v2228, %v2266
      %v2329 = vadd.f32 %v2229, %v2266
      %v2330 = vadd.f32 %v2230, %v2266
      %v2331 = vadd.f32 %v2231, %v2266
      %v2332 = vadd.f32 %v2232, %v2266
      %v2333 = vadd.f32 %v2233, %v2266
      %v2334 = vadd.f32 %v2234, %v2266
      %v2335 = vadd.f32 %v2235, %v2266
      %v2336 = vadd.f32 %v2236, %v2266
      %v2337 = vadd.f32 %v2237, %v2266
      %v2338 = vadd.f32 %v2238, %v2266
      %v2339 = vadd.f32 %v2239, %v2266
      %v2340 = vadd.f32 %v2240, %v2266
      %v2341 = vadd.f32 %v2241, %v2266
      %v2342 = vadd.f32 %v2242, %v2266
      %v2343 = vadd.f32 %v2243, %v2266
      %v2344 = vadd.f32 %v2244, %v2266
      %v2345 = vadd.f32 %v2245, %v2266
      %v2346 = vadd.f32 %v2246, %v2266
      %v2347 = vadd.f32 %v2247, %v2266
      %v2348 = vadd.f32 %v2248, %v2266
      %v2349 = vadd.f32 %v2249, %v2266
      %v2350 = vadd.f32 %v2250, %v2266
      %v2351 = vadd.f32 %v2251, %v2266
      %v2352 = vadd.f32 %v2252, %v2266
      %v2353 = vadd.f32 %v2253, %v2266
      %v2354 = vadd.f32 %v2254, %v2266
      %v2355 = vadd.f32 %v2255, %v2266
      %v2356 = vadd.f32 %v2256, %v2266
      %v2357 = vadd.f32 %v2257, %v2266
      %v2358 = vadd.f32 %v2258, %v2266
      %v2359 = vadd.f32 %v2259, %v2266
      %v2360 = vadd.f32 %v2260, %v2266
      %v2361 = vadd.f32 %v2261, %v2266
      %v2362 = vadd.f32 %v2262, %v2266
      %v2363 = vadd.f32 %v2263, %v2266
      %v2364 = vmax.f32 %v2268, 0.0
      %v2365 = vmax.f32 %v2269, 0.0
      %v2366 = vmax.f32 %v2270, 0.0
      %v2367 = vmax.f32 %v2271, 0.0
      %v2368 = vmax.f32 %v2272, 0.0
      %v2369 = vmax.f32 %v2273, 0.0
      %v2370 = vmax.f32 %v2274, 0.0
      %v2371 = vmax.f32 %v2275, 0.0
      %v2372 = vmax.f32 %v2276, 0.0
      %v2373 = vmax.f32 %v2277, 0.0
      %v2374 = vmax.f32 %v2278, 0.0
      %v2375 = vmax.f32 %v2279, 0.0
      %v2376 = vmax.f32 %v2280, 0.0
      %v2377 = vmax.f32 %v2281, 0.0
      %v2378 = vmax.f32 %v2282, 0.0
      %v2379 = vmax.f32 %v2283, 0.0
      %v2380 = vmax.f32 %v2284, 0.0
      %v2381 = vmax.f32 %v2285, 0.0
      %v2382 = vmax.f32 %v2286, 0.0
      %v2383 = vmax.f32 %v2287, 0.0
      %v2384 = vmax.f32 %v2288, 0.0
      %v2385 = vmax.f32 %v2289, 0.0
      %v2386 = vmax.f32 %v2290, 0.0
      %v2387 = vmax.f32 %v2291, 0.0
      %v2388 = vmax.f32 %v2292, 0.0
      %v2389 = vmax.f32 %v2293, 0.0
      %v2390 = vmax.f32 %v2294, 0.0
      %v2391 = vmax.f32 %v2295, 0.0
      %v2392 = vmax.f32 %v2296, 0.0
      %v2393 = vmax.f32 %v2297, 0.0
      %v2394 = vmax.f32 %v2298, 0.0
      %v2395 = vmax.f32 %v2299, 0.0
      %v2396 = vmax.f32 %v2300, 0.0
      %v2397 = vmax.f32 %v2301, 0.0
      %v2398 = vmax.f32 %v2302, 0.0
      %v2399 = vmax.f32 %v2303, 0.0
      %v2400 = vmax.f32 %v2304, 0.0
      %v2401 = vmax.f32 %v2305, 0.0
      %v2402 = vmax.f32 %v2306, 0.0
      %v2403 = vmax.f32 %v2307, 0.0
      %v2404 = vmax.f32 %v2308, 0.0
      %v2405 = vmax.f32 %v2309, 0.0
      %v2406 = vmax.f32 %v2310, 0.0
      %v2407 = vmax.f32 %v2311, 0.0
      %v2408 = vmax.f32 %v2312, 0.0
      %v2409 = vmax.f32 %v2313, 0.0
      %v2410 = vmax.f32 %v2314, 0.0
      %v2411 = vmax.f32 %v2315, 0.0
      %v2412 = vmax.f32 %v2316, 0.0
      %v2413 = vmax.f32 %v2317, 0.0
      %v2414 = vmax.f32 %v2318, 0.0
      %v2415 = vmax.f32 %v2319, 0.0
      %v2416 = vmax.f32 %v2320, 0.0
      %v2417 = vmax.f32 %v2321, 0.0
      %v2418 = vmax.f32 %v2322, 0.0
      %v2419 = vmax.f32 %v2323, 0.0
      %v2420 = vmax.f32 %v2324, 0.0
      %v2421 = vmax.f32 %v2325, 0.0
      %v2422 = vmax.f32 %v2326, 0.0
      %v2423 = vmax.f32 %v2327, 0.0
      %v2424 = vmax.f32 %v2328, 0.0
      %v2425 = vmax.f32 %v2329, 0.0
      %v2426 = vmax.f32 %v2330, 0.0
      %v2427 = vmax.f32 %v2331, 0.0
      %v2428 = vmax.f32 %v2332, 0.0
      %v2429 = vmax.f32 %v2333, 0.0
      %v2430 = vmax.f32 %v2334, 0.0
      %v2431 = vmax.f32 %v2335, 0.0
      %v2432 = vmax.f32 %v2336, 0.0
      %v2433 = vmax.f32 %v2337, 0.0
      %v2434 = vmax.f32 %v2338, 0.0
      %v2435 = vmax.f32 %v2339, 0.0
      %v2436 = vmax.f32 %v2340, 0.0
      %v2437 = vmax.f32 %v2341, 0.0
      %v2438 = vmax.f32 %v2342, 0.0
      %v2439 = vmax.f32 %v2343, 0.0
      %v2440 = vmax.f32 %v2344, 0.0
      %v2441 = vmax.f32 %v2345, 0.0
      %v2442 = vmax.f32 %v2346, 0.0
      %v2443 = vmax.f32 %v2347, 0.0
      %v2444 = vmax.f32 %v2348, 0.0
      %v2445 = vmax.f32 %v2349, 0.0
      %v2446 = vmax.f32 %v2350, 0.0
      %v2447 = vmax.f32 %v2351, 0.0
      %v2448 = vmax.f32 %v2352, 0.0
      %v2449 = vmax.f32 %v2353, 0.0
      %v2450 = vmax.f32 %v2354, 0.0
      %v2451 = vmax.f32 %v2355, 0.0
      %v2452 = vmax.f32 %v2356, 0.0
      %v2453 = vmax.f32 %v2357, 0.0
      %v2454 = vmax.f32 %v2358, 0.0
      %v2455 = vmax.f32 %v2359, 0.0
      %v2456 = vmax.f32 %v2360, 0.0
      %v2457 = vmax.f32 %v2361, 0.0
      %v2458 = vmax.f32 %v2362, 0.0
      %v2459 = vmax.f32 %v2363, 0.0
      %v2460 = vpack.c.bf16 %v2364, %v2364
      %v2461 = vpack.c.bf16 %v2365, %v2365
      %v2462 = vpack.c.bf16 %v2366, %v2366
      %v2463 = vpack.c.bf16 %v2367, %v2367
      %v2464 = vpack.c.bf16 %v2368, %v2368
      %v2465 = vpack.c.bf16 %v2369, %v2369
      %v2466 = vpack.c.bf16 %v2370, %v2370
      %v2467 = vpack.c.bf16 %v2371, %v2371
      %v2468 = vpack.c.bf16 %v2372, %v2372
      %v2469 = vpack.c.bf16 %v2373, %v2373
      %v2470 = vpack.c.bf16 %v2374, %v2374
      %v2471 = vpack.c.bf16 %v2375, %v2375
      %v2472 = vpack.c.bf16 %v2376, %v2376
      %v2473 = vpack.c.bf16 %v2377, %v2377
      %v2474 = vpack.c.bf16 %v2378, %v2378
      %v2475 = vpack.c.bf16 %v2379, %v2379
      %v2476 = vpack.c.bf16 %v2380, %v2380
      %v2477 = vpack.c.bf16 %v2381, %v2381
      %v2478 = vpack.c.bf16 %v2382, %v2382
      %v2479 = vpack.c.bf16 %v2383, %v2383
      %v2480 = vpack.c.bf16 %v2384, %v2384
      %v2481 = vpack.c.bf16 %v2385, %v2385
      %v2482 = vpack.c.bf16 %v2386, %v2386
      %v2483 = vpack.c.bf16 %v2387, %v2387
      %v2484 = vpack.c.bf16 %v2388, %v2388
      %v2485 = vpack.c.bf16 %v2389, %v2389
      %v2486 = vpack.c.bf16 %v2390, %v2390
      %v2487 = vpack.c.bf16 %v2391, %v2391
      %v2488 = vpack.c.bf16 %v2392, %v2392
      %v2489 = vpack.c.bf16 %v2393, %v2393
      %v2490 = vpack.c.bf16 %v2394, %v2394
      %v2491 = vpack.c.bf16 %v2395, %v2395
      %v2492 = vpack.c.bf16 %v2396, %v2396
      %v2493 = vpack.c.bf16 %v2397, %v2397
      %v2494 = vpack.c.bf16 %v2398, %v2398
      %v2495 = vpack.c.bf16 %v2399, %v2399
      %v2496 = vpack.c.bf16 %v2400, %v2400
      %v2497 = vpack.c.bf16 %v2401, %v2401
      %v2498 = vpack.c.bf16 %v2402, %v2402
      %v2499 = vpack.c.bf16 %v2403, %v2403
      %v2500 = vpack.c.bf16 %v2404, %v2404
      %v2501 = vpack.c.bf16 %v2405, %v2405
      %v2502 = vpack.c.bf16 %v2406, %v2406
      %v2503 = vpack.c.bf16 %v2407, %v2407
      %v2504 = vpack.c.bf16 %v2408, %v2408
      %v2505 = vpack.c.bf16 %v2409, %v2409
      %v2506 = vpack.c.bf16 %v2410, %v2410
      %v2507 = vpack.c.bf16 %v2411, %v2411
      %v2508 = vpack.c.bf16 %v2412, %v2412
      %v2509 = vpack.c.bf16 %v2413, %v2413
      %v2510 = vpack.c.bf16 %v2414, %v2414
      %v2511 = vpack.c.bf16 %v2415, %v2415
      %v2512 = vpack.c.bf16 %v2416, %v2416
      %v2513 = vpack.c.bf16 %v2417, %v2417
      %v2514 = vpack.c.bf16 %v2418, %v2418
      %v2515 = vpack.c.bf16 %v2419, %v2419
      %v2516 = vpack.c.bf16 %v2420, %v2420
      %v2517 = vpack.c.bf16 %v2421, %v2421
      %v2518 = vpack.c.bf16 %v2422, %v2422
      %v2519 = vpack.c.bf16 %v2423, %v2423
      %v2520 = vpack.c.bf16 %v2424, %v2424
      %v2521 = vpack.c.bf16 %v2425, %v2425
      %v2522 = vpack.c.bf16 %v2426, %v2426
      %v2523 = vpack.c.bf16 %v2427, %v2427
      %v2524 = vpack.c.bf16 %v2428, %v2428
      %v2525 = vpack.c.bf16 %v2429, %v2429
      %v2526 = vpack.c.bf16 %v2430, %v2430
      %v2527 = vpack.c.bf16 %v2431, %v2431
      %v2528 = vpack.c.bf16 %v2432, %v2432
      %v2529 = vpack.c.bf16 %v2433, %v2433
      %v2530 = vpack.c.bf16 %v2434, %v2434
      %v2531 = vpack.c.bf16 %v2435, %v2435
      %v2532 = vpack.c.bf16 %v2436, %v2436
      %v2533 = vpack.c.bf16 %v2437, %v2437
      %v2534 = vpack.c.bf16 %v2438, %v2438
      %v2535 = vpack.c.bf16 %v2439, %v2439
      %v2536 = vpack.c.bf16 %v2440, %v2440
      %v2537 = vpack.c.bf16 %v2441, %v2441
      %v2538 = vpack.c.bf16 %v2442, %v2442
      %v2539 = vpack.c.bf16 %v2443, %v2443
      %v2540 = vpack.c.bf16 %v2444, %v2444
      %v2541 = vpack.c.bf16 %v2445, %v2445
      %v2542 = vpack.c.bf16 %v2446, %v2446
      %v2543 = vpack.c.bf16 %v2447, %v2447
      %v2544 = vpack.c.bf16 %v2448, %v2448
      %v2545 = vpack.c.bf16 %v2449, %v2449
      %v2546 = vpack.c.bf16 %v2450, %v2450
      %v2547 = vpack.c.bf16 %v2451, %v2451
      %v2548 = vpack.c.bf16 %v2452, %v2452
      %v2549 = vpack.c.bf16 %v2453, %v2453
      %v2550 = vpack.c.bf16 %v2454, %v2454
      %v2551 = vpack.c.bf16 %v2455, %v2455
      %v2552 = vpack.c.bf16 %v2456, %v2456
      %v2553 = vpack.c.bf16 %v2457, %v2457
      %v2554 = vpack.c.bf16 %v2458, %v2458
      %v2555 = vpack.c.bf16 %v2459, %v2459
      %s2556 = scalar_lea.vmem %s197, 384
      %2557 = vst.msk [vmem:[%s2556] sm:$0xf] %vm1337, %v2460
      %2558 = vst.msk [vmem:[%s2556 + $0x4] sm:$0xf] %vm1337, %v2461
      %2559 = vst.msk [vmem:[%s2556 + $0x8] sm:$0xf] %vm1337, %v2462
      %2560 = vst.msk [vmem:[%s2556 + $0xc] sm:$0xf] %vm1337, %v2463
      %2561 = vst.msk [vmem:[%s2556 + $0x10] sm:$0xf] %vm1337, %v2464
      %2562 = vst.msk [vmem:[%s2556 + $0x14] sm:$0xf] %vm1337, %v2465
      %2563 = vst.msk [vmem:[%s2556 + $0x18] sm:$0xf] %vm1337, %v2466
      %2564 = vst.msk [vmem:[%s2556 + $0x1c] sm:$0xf] %vm1337, %v2467
      %2565 = vst.msk [vmem:[%s2556 + $0x20] sm:$0xf] %vm1337, %v2468
      %2566 = vst.msk [vmem:[%s2556 + $0x24] sm:$0xf] %vm1337, %v2469
      %2567 = vst.msk [vmem:[%s2556 + $0x28] sm:$0xf] %vm1337, %v2470
      %2568 = vst.msk [vmem:[%s2556 + $0x2c] sm:$0xf] %vm1337, %v2471
      %2569 = vst.msk [vmem:[%s2556 + $0x30] sm:$0xf] %vm1337, %v2472
      %2570 = vst.msk [vmem:[%s2556 + $0x34] sm:$0xf] %vm1337, %v2473
      %2571 = vst.msk [vmem:[%s2556 + $0x38] sm:$0xf] %vm1337, %v2474
      %2572 = vst.msk [vmem:[%s2556 + $0x3c] sm:$0xf] %vm1337, %v2475
      %2573 = vst.msk [vmem:[%s2556 + $0x40] sm:$0xf] %vm1337, %v2476
      %2574 = vst.msk [vmem:[%s2556 + $0x44] sm:$0xf] %vm1337, %v2477
      %2575 = vst.msk [vmem:[%s2556 + $0x48] sm:$0xf] %vm1337, %v2478
      %2576 = vst.msk [vmem:[%s2556 + $0x4c] sm:$0xf] %vm1337, %v2479
      %2577 = vst.msk [vmem:[%s2556 + $0x50] sm:$0xf] %vm1337, %v2480
      %2578 = vst.msk [vmem:[%s2556 + $0x54] sm:$0xf] %vm1337, %v2481
      %2579 = vst.msk [vmem:[%s2556 + $0x58] sm:$0xf] %vm1337, %v2482
      %2580 = vst.msk [vmem:[%s2556 + $0x5c] sm:$0xf] %vm1337, %v2483
      %2581 = vst.msk [vmem:[%s2556 + $0x60] sm:$0xf] %vm1337, %v2484
      %2582 = vst.msk [vmem:[%s2556 + $0x64] sm:$0xf] %vm1337, %v2485
      %2583 = vst.msk [vmem:[%s2556 + $0x68] sm:$0xf] %vm1337, %v2486
      %2584 = vst.msk [vmem:[%s2556 + $0x6c] sm:$0xf] %vm1337, %v2487
      %2585 = vst.msk [vmem:[%s2556 + $0x70] sm:$0xf] %vm1337, %v2488
      %2586 = vst.msk [vmem:[%s2556 + $0x74] sm:$0xf] %vm1337, %v2489
      %2587 = vst.msk [vmem:[%s2556 + $0x78] sm:$0xf] %vm1337, %v2490
      %2588 = vst.msk [vmem:[%s2556 + $0x7c] sm:$0xf] %vm1337, %v2491
      %2589 = vst.msk [vmem:[%s2556 + $0x80] sm:$0xf] %vm1337, %v2492
      %2590 = vst.msk [vmem:[%s2556 + $0x84] sm:$0xf] %vm1337, %v2493
      %2591 = vst.msk [vmem:[%s2556 + $0x88] sm:$0xf] %vm1337, %v2494
      %2592 = vst.msk [vmem:[%s2556 + $0x8c] sm:$0xf] %vm1337, %v2495
      %2593 = vst.msk [vmem:[%s2556 + $0x90] sm:$0xf] %vm1337, %v2496
      %2594 = vst.msk [vmem:[%s2556 + $0x94] sm:$0xf] %vm1337, %v2497
      %2595 = vst.msk [vmem:[%s2556 + $0x98] sm:$0xf] %vm1337, %v2498
      %2596 = vst.msk [vmem:[%s2556 + $0x9c] sm:$0xf] %vm1337, %v2499
      %2597 = vst.msk [vmem:[%s2556 + $0xa0] sm:$0xf] %vm1337, %v2500
      %2598 = vst.msk [vmem:[%s2556 + $0xa4] sm:$0xf] %vm1337, %v2501
      %2599 = vst.msk [vmem:[%s2556 + $0xa8] sm:$0xf] %vm1337, %v2502
      %2600 = vst.msk [vmem:[%s2556 + $0xac] sm:$0xf] %vm1337, %v2503
      %2601 = vst.msk [vmem:[%s2556 + $0xb0] sm:$0xf] %vm1337, %v2504
      %2602 = vst.msk [vmem:[%s2556 + $0xb4] sm:$0xf] %vm1337, %v2505
      %2603 = vst.msk [vmem:[%s2556 + $0xb8] sm:$0xf] %vm1337, %v2506
      %2604 = vst.msk [vmem:[%s2556 + $0xbc] sm:$0xf] %vm1337, %v2507
      %2605 = vst.msk [vmem:[%s2556 + $0xc0] sm:$0xf] %vm1337, %v2508
      %2606 = vst.msk [vmem:[%s2556 + $0xc4] sm:$0xf] %vm1337, %v2509
      %2607 = vst.msk [vmem:[%s2556 + $0xc8] sm:$0xf] %vm1337, %v2510
      %2608 = vst.msk [vmem:[%s2556 + $0xcc] sm:$0xf] %vm1337, %v2511
      %2609 = vst.msk [vmem:[%s2556 + $0xd0] sm:$0xf] %vm1337, %v2512
      %2610 = vst.msk [vmem:[%s2556 + $0xd4] sm:$0xf] %vm1337, %v2513
      %2611 = vst.msk [vmem:[%s2556 + $0xd8] sm:$0xf] %vm1337, %v2514
      %2612 = vst.msk [vmem:[%s2556 + $0xdc] sm:$0xf] %vm1337, %v2515
      %2613 = vst.msk [vmem:[%s2556 + $0xe0] sm:$0xf] %vm1337, %v2516
      %2614 = vst.msk [vmem:[%s2556 + $0xe4] sm:$0xf] %vm1337, %v2517
      %2615 = vst.msk [vmem:[%s2556 + $0xe8] sm:$0xf] %vm1337, %v2518
      %2616 = vst.msk [vmem:[%s2556 + $0xec] sm:$0xf] %vm1337, %v2519
      %2617 = vst.msk [vmem:[%s2556 + $0xf0] sm:$0xf] %vm1337, %v2520
      %2618 = vst.msk [vmem:[%s2556 + $0xf4] sm:$0xf] %vm1337, %v2521
      %2619 = vst.msk [vmem:[%s2556 + $0xf8] sm:$0xf] %vm1337, %v2522
      %2620 = vst.msk [vmem:[%s2556 + $0xfc] sm:$0xf] %vm1337, %v2523
      %2621 = vst.msk [vmem:[%s2556 + $0x100] sm:$0xf] %vm1337, %v2524
      %2622 = vst.msk [vmem:[%s2556 + $0x104] sm:$0xf] %vm1337, %v2525
      %2623 = vst.msk [vmem:[%s2556 + $0x108] sm:$0xf] %vm1337, %v2526
      %2624 = vst.msk [vmem:[%s2556 + $0x10c] sm:$0xf] %vm1337, %v2527
      %2625 = vst.msk [vmem:[%s2556 + $0x110] sm:$0xf] %vm1337, %v2528
      %2626 = vst.msk [vmem:[%s2556 + $0x114] sm:$0xf] %vm1337, %v2529
      %2627 = vst.msk [vmem:[%s2556 + $0x118] sm:$0xf] %vm1337, %v2530
      %2628 = vst.msk [vmem:[%s2556 + $0x11c] sm:$0xf] %vm1337, %v2531
      %2629 = vst.msk [vmem:[%s2556 + $0x120] sm:$0xf] %vm1337, %v2532
      %2630 = vst.msk [vmem:[%s2556 + $0x124] sm:$0xf] %vm1337, %v2533
      %2631 = vst.msk [vmem:[%s2556 + $0x128] sm:$0xf] %vm1337, %v2534
      %2632 = vst.msk [vmem:[%s2556 + $0x12c] sm:$0xf] %vm1337, %v2535
      %2633 = vst.msk [vmem:[%s2556 + $0x130] sm:$0xf] %vm1337, %v2536
      %2634 = vst.msk [vmem:[%s2556 + $0x134] sm:$0xf] %vm1337, %v2537
      %2635 = vst.msk [vmem:[%s2556 + $0x138] sm:$0xf] %vm1337, %v2538
      %2636 = vst.msk [vmem:[%s2556 + $0x13c] sm:$0xf] %vm1337, %v2539
      %2637 = vst.msk [vmem:[%s2556 + $0x140] sm:$0xf] %vm1337, %v2540
      %2638 = vst.msk [vmem:[%s2556 + $0x144] sm:$0xf] %vm1337, %v2541
      %2639 = vst.msk [vmem:[%s2556 + $0x148] sm:$0xf] %vm1337, %v2542
      %2640 = vst.msk [vmem:[%s2556 + $0x14c] sm:$0xf] %vm1337, %v2543
      %2641 = vst.msk [vmem:[%s2556 + $0x150] sm:$0xf] %vm1337, %v2544
      %2642 = vst.msk [vmem:[%s2556 + $0x154] sm:$0xf] %vm1337, %v2545
      %2643 = vst.msk [vmem:[%s2556 + $0x158] sm:$0xf] %vm1337, %v2546
      %2644 = vst.msk [vmem:[%s2556 + $0x15c] sm:$0xf] %vm1337, %v2547
      %2645 = vst.msk [vmem:[%s2556 + $0x160] sm:$0xf] %vm1337, %v2548
      %2646 = vst.msk [vmem:[%s2556 + $0x164] sm:$0xf] %vm1337, %v2549
      %2647 = vst.msk [vmem:[%s2556 + $0x168] sm:$0xf] %vm1337, %v2550
      %2648 = vst.msk [vmem:[%s2556 + $0x16c] sm:$0xf] %vm1337, %v2551
      %2649 = vst.msk [vmem:[%s2556 + $0x170] sm:$0xf] %vm1337, %v2552
      %2650 = vst.msk [vmem:[%s2556 + $0x174] sm:$0xf] %vm1337, %v2553
      %2651 = vst.msk [vmem:[%s2556 + $0x178] sm:$0xf] %vm1337, %v2554
      %2652 = vst.msk [vmem:[%s2556 + $0x17c] sm:$0xf] %vm1337, %v2555
      %s2653 = scalar_lea.vmem %s192, 768
      %v2654 = vld [vmem:[%s2653] sm:$0xf]
      %v2655 = vld [vmem:[%s2653 + $0x4] sm:$0xf]
      %v2656 = vld [vmem:[%s2653 + $0x8] sm:$0xf]
      %v2657 = vld [vmem:[%s2653 + $0xc] sm:$0xf]
      %v2658 = vld [vmem:[%s2653 + $0x10] sm:$0xf]
      %v2659 = vld [vmem:[%s2653 + $0x14] sm:$0xf]
      %v2660 = vld [vmem:[%s2653 + $0x18] sm:$0xf]
      %v2661 = vld [vmem:[%s2653 + $0x1c] sm:$0xf]
      %v2662 = vld [vmem:[%s2653 + $0x20] sm:$0xf]
      %v2663 = vld [vmem:[%s2653 + $0x24] sm:$0xf]
      %v2664 = vld [vmem:[%s2653 + $0x28] sm:$0xf]
      %v2665 = vld [vmem:[%s2653 + $0x2c] sm:$0xf]
      %v2666 = vld [vmem:[%s2653 + $0x30] sm:$0xf]
      %v2667 = vld [vmem:[%s2653 + $0x34] sm:$0xf]
      %v2668 = vld [vmem:[%s2653 + $0x38] sm:$0xf]
      %v2669 = vld [vmem:[%s2653 + $0x3c] sm:$0xf]
      %v2670 = vld [vmem:[%s2653 + $0x40] sm:$0xf]
      %v2671 = vld [vmem:[%s2653 + $0x44] sm:$0xf]
      %v2672 = vld [vmem:[%s2653 + $0x48] sm:$0xf]
      %v2673 = vld [vmem:[%s2653 + $0x4c] sm:$0xf]
      %v2674 = vld [vmem:[%s2653 + $0x50] sm:$0xf]
      %v2675 = vld [vmem:[%s2653 + $0x54] sm:$0xf]
      %v2676 = vld [vmem:[%s2653 + $0x58] sm:$0xf]
      %v2677 = vld [vmem:[%s2653 + $0x5c] sm:$0xf]
      %v2678 = vld [vmem:[%s2653 + $0x60] sm:$0xf]
      %v2679 = vld [vmem:[%s2653 + $0x64] sm:$0xf]
      %v2680 = vld [vmem:[%s2653 + $0x68] sm:$0xf]
      %v2681 = vld [vmem:[%s2653 + $0x6c] sm:$0xf]
      %v2682 = vld [vmem:[%s2653 + $0x70] sm:$0xf]
      %v2683 = vld [vmem:[%s2653 + $0x74] sm:$0xf]
      %v2684 = vld [vmem:[%s2653 + $0x78] sm:$0xf]
      %v2685 = vld [vmem:[%s2653 + $0x7c] sm:$0xf]
      %v2686 = vld [vmem:[%s2653 + $0x80] sm:$0xf]
      %v2687 = vld [vmem:[%s2653 + $0x84] sm:$0xf]
      %v2688 = vld [vmem:[%s2653 + $0x88] sm:$0xf]
      %v2689 = vld [vmem:[%s2653 + $0x8c] sm:$0xf]
      %v2690 = vld [vmem:[%s2653 + $0x90] sm:$0xf]
      %v2691 = vld [vmem:[%s2653 + $0x94] sm:$0xf]
      %v2692 = vld [vmem:[%s2653 + $0x98] sm:$0xf]
      %v2693 = vld [vmem:[%s2653 + $0x9c] sm:$0xf]
      %v2694 = vld [vmem:[%s2653 + $0xa0] sm:$0xf]
      %v2695 = vld [vmem:[%s2653 + $0xa4] sm:$0xf]
      %v2696 = vld [vmem:[%s2653 + $0xa8] sm:$0xf]
      %v2697 = vld [vmem:[%s2653 + $0xac] sm:$0xf]
      %v2698 = vld [vmem:[%s2653 + $0xb0] sm:$0xf]
      %v2699 = vld [vmem:[%s2653 + $0xb4] sm:$0xf]
      %v2700 = vld [vmem:[%s2653 + $0xb8] sm:$0xf]
      %v2701 = vld [vmem:[%s2653 + $0xbc] sm:$0xf]
      %v2702 = vld [vmem:[%s2653 + $0xc0] sm:$0xf]
      %v2703 = vld [vmem:[%s2653 + $0xc4] sm:$0xf]
      %v2704 = vld [vmem:[%s2653 + $0xc8] sm:$0xf]
      %v2705 = vld [vmem:[%s2653 + $0xcc] sm:$0xf]
      %v2706 = vld [vmem:[%s2653 + $0xd0] sm:$0xf]
      %v2707 = vld [vmem:[%s2653 + $0xd4] sm:$0xf]
      %v2708 = vld [vmem:[%s2653 + $0xd8] sm:$0xf]
      %v2709 = vld [vmem:[%s2653 + $0xdc] sm:$0xf]
      %v2710 = vld [vmem:[%s2653 + $0xe0] sm:$0xf]
      %v2711 = vld [vmem:[%s2653 + $0xe4] sm:$0xf]
      %v2712 = vld [vmem:[%s2653 + $0xe8] sm:$0xf]
      %v2713 = vld [vmem:[%s2653 + $0xec] sm:$0xf]
      %v2714 = vld [vmem:[%s2653 + $0xf0] sm:$0xf]
      %v2715 = vld [vmem:[%s2653 + $0xf4] sm:$0xf]
      %v2716 = vld [vmem:[%s2653 + $0xf8] sm:$0xf]
      %v2717 = vld [vmem:[%s2653 + $0xfc] sm:$0xf]
      %v2718 = vld [vmem:[%s2653 + $0x100] sm:$0xf]
      %v2719 = vld [vmem:[%s2653 + $0x104] sm:$0xf]
      %v2720 = vld [vmem:[%s2653 + $0x108] sm:$0xf]
      %v2721 = vld [vmem:[%s2653 + $0x10c] sm:$0xf]
      %v2722 = vld [vmem:[%s2653 + $0x110] sm:$0xf]
      %v2723 = vld [vmem:[%s2653 + $0x114] sm:$0xf]
      %v2724 = vld [vmem:[%s2653 + $0x118] sm:$0xf]
      %v2725 = vld [vmem:[%s2653 + $0x11c] sm:$0xf]
      %v2726 = vld [vmem:[%s2653 + $0x120] sm:$0xf]
      %v2727 = vld [vmem:[%s2653 + $0x124] sm:$0xf]
      %v2728 = vld [vmem:[%s2653 + $0x128] sm:$0xf]
      %v2729 = vld [vmem:[%s2653 + $0x12c] sm:$0xf]
      %v2730 = vld [vmem:[%s2653 + $0x130] sm:$0xf]
      %v2731 = vld [vmem:[%s2653 + $0x134] sm:$0xf]
      %v2732 = vld [vmem:[%s2653 + $0x138] sm:$0xf]
      %v2733 = vld [vmem:[%s2653 + $0x13c] sm:$0xf]
      %v2734 = vld [vmem:[%s2653 + $0x140] sm:$0xf]
      %v2735 = vld [vmem:[%s2653 + $0x144] sm:$0xf]
      %v2736 = vld [vmem:[%s2653 + $0x148] sm:$0xf]
      %v2737 = vld [vmem:[%s2653 + $0x14c] sm:$0xf]
      %v2738 = vld [vmem:[%s2653 + $0x150] sm:$0xf]
      %v2739 = vld [vmem:[%s2653 + $0x154] sm:$0xf]
      %v2740 = vld [vmem:[%s2653 + $0x158] sm:$0xf]
      %v2741 = vld [vmem:[%s2653 + $0x15c] sm:$0xf]
      %v2742 = vld [vmem:[%s2653 + $0x160] sm:$0xf]
      %v2743 = vld [vmem:[%s2653 + $0x164] sm:$0xf]
      %v2744 = vld [vmem:[%s2653 + $0x168] sm:$0xf]
      %v2745 = vld [vmem:[%s2653 + $0x16c] sm:$0xf]
      %v2746 = vld [vmem:[%s2653 + $0x170] sm:$0xf]
      %v2747 = vld [vmem:[%s2653 + $0x174] sm:$0xf]
      %v2748 = vld [vmem:[%s2653 + $0x178] sm:$0xf]
      %v2749 = vld [vmem:[%s2653 + $0x17c] sm:$0xf]
      %v2846 = vunpack.c.l.b16 %v2654
      %v2847 = vunpack.c.l.b16 %v2655
      %v2848 = vunpack.c.l.b16 %v2656
      %v2849 = vunpack.c.l.b16 %v2657
      %v2850 = vunpack.c.l.b16 %v2658
      %v2851 = vunpack.c.l.b16 %v2659
      %v2852 = vunpack.c.l.b16 %v2660
      %v2853 = vunpack.c.l.b16 %v2661
      %v2854 = vunpack.c.l.b16 %v2662
      %v2855 = vunpack.c.l.b16 %v2663
      %v2856 = vunpack.c.l.b16 %v2664
      %v2857 = vunpack.c.l.b16 %v2665
      %v2858 = vunpack.c.l.b16 %v2666
      %v2859 = vunpack.c.l.b16 %v2667
      %v2860 = vunpack.c.l.b16 %v2668
      %v2861 = vunpack.c.l.b16 %v2669
      %v2862 = vunpack.c.l.b16 %v2670
      %v2863 = vunpack.c.l.b16 %v2671
      %v2864 = vunpack.c.l.b16 %v2672
      %v2865 = vunpack.c.l.b16 %v2673
      %v2866 = vunpack.c.l.b16 %v2674
      %v2867 = vunpack.c.l.b16 %v2675
      %v2868 = vunpack.c.l.b16 %v2676
      %v2869 = vunpack.c.l.b16 %v2677
      %v2870 = vunpack.c.l.b16 %v2678
      %v2871 = vunpack.c.l.b16 %v2679
      %v2872 = vunpack.c.l.b16 %v2680
      %v2873 = vunpack.c.l.b16 %v2681
      %v2874 = vunpack.c.l.b16 %v2682
      %v2875 = vunpack.c.l.b16 %v2683
      %v2876 = vunpack.c.l.b16 %v2684
      %v2877 = vunpack.c.l.b16 %v2685
      %v2878 = vunpack.c.l.b16 %v2686
      %v2879 = vunpack.c.l.b16 %v2687
      %v2880 = vunpack.c.l.b16 %v2688
      %v2881 = vunpack.c.l.b16 %v2689
      %v2882 = vunpack.c.l.b16 %v2690
      %v2883 = vunpack.c.l.b16 %v2691
      %v2884 = vunpack.c.l.b16 %v2692
      %v2885 = vunpack.c.l.b16 %v2693
      %v2886 = vunpack.c.l.b16 %v2694
      %v2887 = vunpack.c.l.b16 %v2695
      %v2888 = vunpack.c.l.b16 %v2696
      %v2889 = vunpack.c.l.b16 %v2697
      %v2890 = vunpack.c.l.b16 %v2698
      %v2891 = vunpack.c.l.b16 %v2699
      %v2892 = vunpack.c.l.b16 %v2700
      %v2893 = vunpack.c.l.b16 %v2701
      %v2894 = vunpack.c.l.b16 %v2702
      %v2895 = vunpack.c.l.b16 %v2703
      %v2896 = vunpack.c.l.b16 %v2704
      %v2897 = vunpack.c.l.b16 %v2705
      %v2898 = vunpack.c.l.b16 %v2706
      %v2899 = vunpack.c.l.b16 %v2707
      %v2900 = vunpack.c.l.b16 %v2708
      %v2901 = vunpack.c.l.b16 %v2709
      %v2902 = vunpack.c.l.b16 %v2710
      %v2903 = vunpack.c.l.b16 %v2711
      %v2904 = vunpack.c.l.b16 %v2712
      %v2905 = vunpack.c.l.b16 %v2713
      %v2906 = vunpack.c.l.b16 %v2714
      %v2907 = vunpack.c.l.b16 %v2715
      %v2908 = vunpack.c.l.b16 %v2716
      %v2909 = vunpack.c.l.b16 %v2717
      %v2910 = vunpack.c.l.b16 %v2718
      %v2911 = vunpack.c.l.b16 %v2719
      %v2912 = vunpack.c.l.b16 %v2720
      %v2913 = vunpack.c.l.b16 %v2721
      %v2914 = vunpack.c.l.b16 %v2722
      %v2915 = vunpack.c.l.b16 %v2723
      %v2916 = vunpack.c.l.b16 %v2724
      %v2917 = vunpack.c.l.b16 %v2725
      %v2918 = vunpack.c.l.b16 %v2726
      %v2919 = vunpack.c.l.b16 %v2727
      %v2920 = vunpack.c.l.b16 %v2728
      %v2921 = vunpack.c.l.b16 %v2729
      %v2922 = vunpack.c.l.b16 %v2730
      %v2923 = vunpack.c.l.b16 %v2731
      %v2924 = vunpack.c.l.b16 %v2732
      %v2925 = vunpack.c.l.b16 %v2733
      %v2926 = vunpack.c.l.b16 %v2734
      %v2927 = vunpack.c.l.b16 %v2735
      %v2928 = vunpack.c.l.b16 %v2736
      %v2929 = vunpack.c.l.b16 %v2737
      %v2930 = vunpack.c.l.b16 %v2738
      %v2931 = vunpack.c.l.b16 %v2739
      %v2932 = vunpack.c.l.b16 %v2740
      %v2933 = vunpack.c.l.b16 %v2741
      %v2934 = vunpack.c.l.b16 %v2742
      %v2935 = vunpack.c.l.b16 %v2743
      %v2936 = vunpack.c.l.b16 %v2744
      %v2937 = vunpack.c.l.b16 %v2745
      %v2938 = vunpack.c.l.b16 %v2746
      %v2939 = vunpack.c.l.b16 %v2747
      %v2940 = vunpack.c.l.b16 %v2748
      %v2941 = vunpack.c.l.b16 %v2749
      %v2942 = vpack.c.b16 %v2847, %v2846
      %v2943 = vpack.c.b16 %v2849, %v2848
      %v2944 = vpack.c.b16 %v2851, %v2850
      %v2945 = vpack.c.b16 %v2853, %v2852
      %v2946 = vpack.c.b16 %v2855, %v2854
      %v2947 = vpack.c.b16 %v2857, %v2856
      %v2948 = vpack.c.b16 %v2859, %v2858
      %v2949 = vpack.c.b16 %v2861, %v2860
      %v2950 = vpack.c.b16 %v2863, %v2862
      %v2951 = vpack.c.b16 %v2865, %v2864
      %v2952 = vpack.c.b16 %v2867, %v2866
      %v2953 = vpack.c.b16 %v2869, %v2868
      %v2954 = vpack.c.b16 %v2871, %v2870
      %v2955 = vpack.c.b16 %v2873, %v2872
      %v2956 = vpack.c.b16 %v2875, %v2874
      %v2957 = vpack.c.b16 %v2877, %v2876
      %v2958 = vpack.c.b16 %v2879, %v2878
      %v2959 = vpack.c.b16 %v2881, %v2880
      %v2960 = vpack.c.b16 %v2883, %v2882
      %v2961 = vpack.c.b16 %v2885, %v2884
      %v2962 = vpack.c.b16 %v2887, %v2886
      %v2963 = vpack.c.b16 %v2889, %v2888
      %v2964 = vpack.c.b16 %v2891, %v2890
      %v2965 = vpack.c.b16 %v2893, %v2892
      %v2966 = vpack.c.b16 %v2895, %v2894
      %v2967 = vpack.c.b16 %v2897, %v2896
      %v2968 = vpack.c.b16 %v2899, %v2898
      %v2969 = vpack.c.b16 %v2901, %v2900
      %v2970 = vpack.c.b16 %v2903, %v2902
      %v2971 = vpack.c.b16 %v2905, %v2904
      %v2972 = vpack.c.b16 %v2907, %v2906
      %v2973 = vpack.c.b16 %v2909, %v2908
      %v2974 = vpack.c.b16 %v2911, %v2910
      %v2975 = vpack.c.b16 %v2913, %v2912
      %v2976 = vpack.c.b16 %v2915, %v2914
      %v2977 = vpack.c.b16 %v2917, %v2916
      %v2978 = vpack.c.b16 %v2919, %v2918
      %v2979 = vpack.c.b16 %v2921, %v2920
      %v2980 = vpack.c.b16 %v2923, %v2922
      %v2981 = vpack.c.b16 %v2925, %v2924
      %v2982 = vpack.c.b16 %v2927, %v2926
      %v2983 = vpack.c.b16 %v2929, %v2928
      %v2984 = vpack.c.b16 %v2931, %v2930
      %v2985 = vpack.c.b16 %v2933, %v2932
      %v2986 = vpack.c.b16 %v2935, %v2934
      %v2987 = vpack.c.b16 %v2937, %v2936
      %v2988 = vpack.c.b16 %v2939, %v2938
      %v2989 = vpack.c.b16 %v2941, %v2940
      %v2991 = vsel %vm551, %v2942, 0
      %v2994 = vsel %vm551, %v2943, 0
      %v2997 = vsel %vm551, %v2944, 0
      %v3000 = vsel %vm551, %v2945, 0
      %v3003 = vsel %vm551, %v2946, 0
      %v3006 = vsel %vm551, %v2947, 0
      %v3009 = vsel %vm551, %v2948, 0
      %v3012 = vsel %vm551, %v2949, 0
      %v3015 = vsel %vm551, %v2950, 0
      %v3018 = vsel %vm551, %v2951, 0
      %v3021 = vsel %vm551, %v2952, 0
      %v3024 = vsel %vm551, %v2953, 0
      %v3027 = vsel %vm551, %v2954, 0
      %v3030 = vsel %vm551, %v2955, 0
      %v3033 = vsel %vm551, %v2956, 0
      %v3036 = vsel %vm551, %v2957, 0
      %v3039 = vsel %vm551, %v2958, 0
      %v3042 = vsel %vm551, %v2959, 0
      %v3045 = vsel %vm551, %v2960, 0
      %v3048 = vsel %vm551, %v2961, 0
      %v3051 = vsel %vm551, %v2962, 0
      %v3054 = vsel %vm551, %v2963, 0
      %v3057 = vsel %vm551, %v2964, 0
      %v3060 = vsel %vm551, %v2965, 0
      %v3063 = vsel %vm551, %v2966, 0
      %v3066 = vsel %vm551, %v2967, 0
      %v3069 = vsel %vm551, %v2968, 0
      %v3072 = vsel %vm551, %v2969, 0
      %v3075 = vsel %vm551, %v2970, 0
      %v3078 = vsel %vm551, %v2971, 0
      %v3081 = vsel %vm551, %v2972, 0
      %v3084 = vsel %vm551, %v2973, 0
      %v3087 = vsel %vm551, %v2974, 0
      %v3090 = vsel %vm551, %v2975, 0
      %v3093 = vsel %vm551, %v2976, 0
      %v3096 = vsel %vm551, %v2977, 0
      %v3099 = vsel %vm551, %v2978, 0
      %v3102 = vsel %vm551, %v2979, 0
      %v3105 = vsel %vm551, %v2980, 0
      %v3108 = vsel %vm551, %v2981, 0
      %v3111 = vsel %vm551, %v2982, 0
      %v3114 = vsel %vm551, %v2983, 0
      %v3117 = vsel %vm551, %v2984, 0
      %v3120 = vsel %vm551, %v2985, 0
      %v3123 = vsel %vm551, %v2986, 0
      %v3126 = vsel %vm551, %v2987, 0
      %v3129 = vsel %vm551, %v2988, 0
      %v3132 = vsel %vm551, %v2989, 0
      %3134 = vmatpush.bf16.msra.mxu0 0
      %3135 = vmatpush.bf16.msra.mxu0 0
      %3136 = vmatpush.bf16.msra.mxu0 0
      %3137 = vmatpush.bf16.msra.mxu0 0
      %3138 = vmatpush.bf16.msra.mxu0 0
      %3139 = vmatpush.bf16.msra.mxu0 0
      %3140 = vmatpush.bf16.msra.mxu0 %v548
      %3141 = vmatpush.bf16.msra.mxu0 %v547
      %3142 = vmatmul.bf16.gmra.mxu0 %v2991
      %v3143 = vpop.f32.mrf.mxu0
      %v3144 = vadd.f32 0.0, %v3143
      %v3145 = vpop.f32.mrf.mxu0
      %v3146 = vadd.f32 0.0, %v3145
      %3147 = vmatmul.bf16.gmra.mxu0 %v2994
      %v3148 = vpop.f32.mrf.mxu0
      %v3149 = vadd.f32 0.0, %v3148
      %v3150 = vpop.f32.mrf.mxu0
      %v3151 = vadd.f32 0.0, %v3150
      %3152 = vmatmul.bf16.gmra.mxu0 %v2997
      %v3153 = vpop.f32.mrf.mxu0
      %v3154 = vadd.f32 0.0, %v3153
      %v3155 = vpop.f32.mrf.mxu0
      %v3156 = vadd.f32 0.0, %v3155
      %3157 = vmatmul.bf16.gmra.mxu0 %v3000
      %v3158 = vpop.f32.mrf.mxu0
      %v3159 = vadd.f32 0.0, %v3158
      %v3160 = vpop.f32.mrf.mxu0
      %v3161 = vadd.f32 0.0, %v3160
      %3162 = vmatmul.bf16.gmra.mxu0 %v3003
      %v3163 = vpop.f32.mrf.mxu0
      %v3164 = vadd.f32 0.0, %v3163
      %v3165 = vpop.f32.mrf.mxu0
      %v3166 = vadd.f32 0.0, %v3165
      %3167 = vmatmul.bf16.gmra.mxu0 %v3006
      %v3168 = vpop.f32.mrf.mxu0
      %v3169 = vadd.f32 0.0, %v3168
      %v3170 = vpop.f32.mrf.mxu0
      %v3171 = vadd.f32 0.0, %v3170
      %3172 = vmatmul.bf16.gmra.mxu0 %v3009
      %v3173 = vpop.f32.mrf.mxu0
      %v3174 = vadd.f32 0.0, %v3173
      %v3175 = vpop.f32.mrf.mxu0
      %v3176 = vadd.f32 0.0, %v3175
      %3177 = vmatmul.bf16.gmra.mxu0 %v3012
      %v3178 = vpop.f32.mrf.mxu0
      %v3179 = vadd.f32 0.0, %v3178
      %v3180 = vpop.f32.mrf.mxu0
      %v3181 = vadd.f32 0.0, %v3180
      %3182 = vmatmul.bf16.gmra.mxu0 %v3015
      %v3183 = vpop.f32.mrf.mxu0
      %v3184 = vadd.f32 0.0, %v3183
      %v3185 = vpop.f32.mrf.mxu0
      %v3186 = vadd.f32 0.0, %v3185
      %3187 = vmatmul.bf16.gmra.mxu0 %v3018
      %v3188 = vpop.f32.mrf.mxu0
      %v3189 = vadd.f32 0.0, %v3188
      %v3190 = vpop.f32.mrf.mxu0
      %v3191 = vadd.f32 0.0, %v3190
      %3192 = vmatmul.bf16.gmra.mxu0 %v3021
      %v3193 = vpop.f32.mrf.mxu0
      %v3194 = vadd.f32 0.0, %v3193
      %v3195 = vpop.f32.mrf.mxu0
      %v3196 = vadd.f32 0.0, %v3195
      %3197 = vmatmul.bf16.gmra.mxu0 %v3024
      %v3198 = vpop.f32.mrf.mxu0
      %v3199 = vadd.f32 0.0, %v3198
      %v3200 = vpop.f32.mrf.mxu0
      %v3201 = vadd.f32 0.0, %v3200
      %3202 = vmatmul.bf16.gmra.mxu0 %v3027
      %v3203 = vpop.f32.mrf.mxu0
      %v3204 = vadd.f32 0.0, %v3203
      %v3205 = vpop.f32.mrf.mxu0
      %v3206 = vadd.f32 0.0, %v3205
      %3207 = vmatmul.bf16.gmra.mxu0 %v3030
      %v3208 = vpop.f32.mrf.mxu0
      %v3209 = vadd.f32 0.0, %v3208
      %v3210 = vpop.f32.mrf.mxu0
      %v3211 = vadd.f32 0.0, %v3210
      %3212 = vmatmul.bf16.gmra.mxu0 %v3033
      %v3213 = vpop.f32.mrf.mxu0
      %v3214 = vadd.f32 0.0, %v3213
      %v3215 = vpop.f32.mrf.mxu0
      %v3216 = vadd.f32 0.0, %v3215
      %3217 = vmatmul.bf16.gmra.mxu0 %v3036
      %v3218 = vpop.f32.mrf.mxu0
      %v3219 = vadd.f32 0.0, %v3218
      %v3220 = vpop.f32.mrf.mxu0
      %v3221 = vadd.f32 0.0, %v3220
      %3222 = vmatmul.bf16.gmra.mxu0 %v3039
      %v3223 = vpop.f32.mrf.mxu0
      %v3224 = vadd.f32 0.0, %v3223
      %v3225 = vpop.f32.mrf.mxu0
      %v3226 = vadd.f32 0.0, %v3225
      %3227 = vmatmul.bf16.gmra.mxu0 %v3042
      %v3228 = vpop.f32.mrf.mxu0
      %v3229 = vadd.f32 0.0, %v3228
      %v3230 = vpop.f32.mrf.mxu0
      %v3231 = vadd.f32 0.0, %v3230
      %3232 = vmatmul.bf16.gmra.mxu0 %v3045
      %v3233 = vpop.f32.mrf.mxu0
      %v3234 = vadd.f32 0.0, %v3233
      %v3235 = vpop.f32.mrf.mxu0
      %v3236 = vadd.f32 0.0, %v3235
      %3237 = vmatmul.bf16.gmra.mxu0 %v3048
      %v3238 = vpop.f32.mrf.mxu0
      %v3239 = vadd.f32 0.0, %v3238
      %v3240 = vpop.f32.mrf.mxu0
      %v3241 = vadd.f32 0.0, %v3240
      %3242 = vmatmul.bf16.gmra.mxu0 %v3051
      %v3243 = vpop.f32.mrf.mxu0
      %v3244 = vadd.f32 0.0, %v3243
      %v3245 = vpop.f32.mrf.mxu0
      %v3246 = vadd.f32 0.0, %v3245
      %3247 = vmatmul.bf16.gmra.mxu0 %v3054
      %v3248 = vpop.f32.mrf.mxu0
      %v3249 = vadd.f32 0.0, %v3248
      %v3250 = vpop.f32.mrf.mxu0
      %v3251 = vadd.f32 0.0, %v3250
      %3252 = vmatmul.bf16.gmra.mxu0 %v3057
      %v3253 = vpop.f32.mrf.mxu0
      %v3254 = vadd.f32 0.0, %v3253
      %v3255 = vpop.f32.mrf.mxu0
      %v3256 = vadd.f32 0.0, %v3255
      %3257 = vmatmul.bf16.gmra.mxu0 %v3060
      %v3258 = vpop.f32.mrf.mxu0
      %v3259 = vadd.f32 0.0, %v3258
      %v3260 = vpop.f32.mrf.mxu0
      %v3261 = vadd.f32 0.0, %v3260
      %3262 = vmatmul.bf16.gmra.mxu0 %v3063
      %v3263 = vpop.f32.mrf.mxu0
      %v3264 = vadd.f32 0.0, %v3263
      %v3265 = vpop.f32.mrf.mxu0
      %v3266 = vadd.f32 0.0, %v3265
      %3267 = vmatmul.bf16.gmra.mxu0 %v3066
      %v3268 = vpop.f32.mrf.mxu0
      %v3269 = vadd.f32 0.0, %v3268
      %v3270 = vpop.f32.mrf.mxu0
      %v3271 = vadd.f32 0.0, %v3270
      %3272 = vmatmul.bf16.gmra.mxu0 %v3069
      %v3273 = vpop.f32.mrf.mxu0
      %v3274 = vadd.f32 0.0, %v3273
      %v3275 = vpop.f32.mrf.mxu0
      %v3276 = vadd.f32 0.0, %v3275
      %3277 = vmatmul.bf16.gmra.mxu0 %v3072
      %v3278 = vpop.f32.mrf.mxu0
      %v3279 = vadd.f32 0.0, %v3278
      %v3280 = vpop.f32.mrf.mxu0
      %v3281 = vadd.f32 0.0, %v3280
      %3282 = vmatmul.bf16.gmra.mxu0 %v3075
      %v3283 = vpop.f32.mrf.mxu0
      %v3284 = vadd.f32 0.0, %v3283
      %v3285 = vpop.f32.mrf.mxu0
      %v3286 = vadd.f32 0.0, %v3285
      %3287 = vmatmul.bf16.gmra.mxu0 %v3078
      %v3288 = vpop.f32.mrf.mxu0
      %v3289 = vadd.f32 0.0, %v3288
      %v3290 = vpop.f32.mrf.mxu0
      %v3291 = vadd.f32 0.0, %v3290
      %3292 = vmatmul.bf16.gmra.mxu0 %v3081
      %v3293 = vpop.f32.mrf.mxu0
      %v3294 = vadd.f32 0.0, %v3293
      %v3295 = vpop.f32.mrf.mxu0
      %v3296 = vadd.f32 0.0, %v3295
      %3297 = vmatmul.bf16.gmra.mxu0 %v3084
      %v3298 = vpop.f32.mrf.mxu0
      %v3299 = vadd.f32 0.0, %v3298
      %v3300 = vpop.f32.mrf.mxu0
      %v3301 = vadd.f32 0.0, %v3300
      %3302 = vmatmul.bf16.gmra.mxu0 %v3087
      %v3303 = vpop.f32.mrf.mxu0
      %v3304 = vadd.f32 0.0, %v3303
      %v3305 = vpop.f32.mrf.mxu0
      %v3306 = vadd.f32 0.0, %v3305
      %3307 = vmatmul.bf16.gmra.mxu0 %v3090
      %v3308 = vpop.f32.mrf.mxu0
      %v3309 = vadd.f32 0.0, %v3308
      %v3310 = vpop.f32.mrf.mxu0
      %v3311 = vadd.f32 0.0, %v3310
      %3312 = vmatmul.bf16.gmra.mxu0 %v3093
      %v3313 = vpop.f32.mrf.mxu0
      %v3314 = vadd.f32 0.0, %v3313
      %v3315 = vpop.f32.mrf.mxu0
      %v3316 = vadd.f32 0.0, %v3315
      %3317 = vmatmul.bf16.gmra.mxu0 %v3096
      %v3318 = vpop.f32.mrf.mxu0
      %v3319 = vadd.f32 0.0, %v3318
      %v3320 = vpop.f32.mrf.mxu0
      %v3321 = vadd.f32 0.0, %v3320
      %3322 = vmatmul.bf16.gmra.mxu0 %v3099
      %v3323 = vpop.f32.mrf.mxu0
      %v3324 = vadd.f32 0.0, %v3323
      %v3325 = vpop.f32.mrf.mxu0
      %v3326 = vadd.f32 0.0, %v3325
      %3327 = vmatmul.bf16.gmra.mxu0 %v3102
      %v3328 = vpop.f32.mrf.mxu0
      %v3329 = vadd.f32 0.0, %v3328
      %v3330 = vpop.f32.mrf.mxu0
      %v3331 = vadd.f32 0.0, %v3330
      %3332 = vmatmul.bf16.gmra.mxu0 %v3105
      %v3333 = vpop.f32.mrf.mxu0
      %v3334 = vadd.f32 0.0, %v3333
      %v3335 = vpop.f32.mrf.mxu0
      %v3336 = vadd.f32 0.0, %v3335
      %3337 = vmatmul.bf16.gmra.mxu0 %v3108
      %v3338 = vpop.f32.mrf.mxu0
      %v3339 = vadd.f32 0.0, %v3338
      %v3340 = vpop.f32.mrf.mxu0
      %v3341 = vadd.f32 0.0, %v3340
      %3342 = vmatmul.bf16.gmra.mxu0 %v3111
      %v3343 = vpop.f32.mrf.mxu0
      %v3344 = vadd.f32 0.0, %v3343
      %v3345 = vpop.f32.mrf.mxu0
      %v3346 = vadd.f32 0.0, %v3345
      %3347 = vmatmul.bf16.gmra.mxu0 %v3114
      %v3348 = vpop.f32.mrf.mxu0
      %v3349 = vadd.f32 0.0, %v3348
      %v3350 = vpop.f32.mrf.mxu0
      %v3351 = vadd.f32 0.0, %v3350
      %3352 = vmatmul.bf16.gmra.mxu0 %v3117
      %v3353 = vpop.f32.mrf.mxu0
      %v3354 = vadd.f32 0.0, %v3353
      %v3355 = vpop.f32.mrf.mxu0
      %v3356 = vadd.f32 0.0, %v3355
      %3357 = vmatmul.bf16.gmra.mxu0 %v3120
      %v3358 = vpop.f32.mrf.mxu0
      %v3359 = vadd.f32 0.0, %v3358
      %v3360 = vpop.f32.mrf.mxu0
      %v3361 = vadd.f32 0.0, %v3360
      %3362 = vmatmul.bf16.gmra.mxu0 %v3123
      %v3363 = vpop.f32.mrf.mxu0
      %v3364 = vadd.f32 0.0, %v3363
      %v3365 = vpop.f32.mrf.mxu0
      %v3366 = vadd.f32 0.0, %v3365
      %3367 = vmatmul.bf16.gmra.mxu0 %v3126
      %v3368 = vpop.f32.mrf.mxu0
      %v3369 = vadd.f32 0.0, %v3368
      %v3370 = vpop.f32.mrf.mxu0
      %v3371 = vadd.f32 0.0, %v3370
      %3372 = vmatmul.bf16.gmra.mxu0 %v3129
      %v3373 = vpop.f32.mrf.mxu0
      %v3374 = vadd.f32 0.0, %v3373
      %v3375 = vpop.f32.mrf.mxu0
      %v3376 = vadd.f32 0.0, %v3375
      %3377 = vmatmul.bf16.gmra.mxu0 %v3132
      %v3378 = vpop.f32.mrf.mxu0
      %v3379 = vadd.f32 0.0, %v3378
      %v3380 = vpop.f32.mrf.mxu0
      %v3381 = vadd.f32 0.0, %v3380
      %3382 = vdwg.mxu0
      %v3383 = vld [vmem:[%s2] sm:$0x1]
      %v3385 = vperm.slane %v3383, 0
      %v3387 = vmul.f32 %v3144, %v3385
      %v3388 = vmul.f32 %v3146, %v3385
      %v3389 = vmul.f32 %v3149, %v3385
      %v3390 = vmul.f32 %v3151, %v3385
      %v3391 = vmul.f32 %v3154, %v3385
      %v3392 = vmul.f32 %v3156, %v3385
      %v3393 = vmul.f32 %v3159, %v3385
      %v3394 = vmul.f32 %v3161, %v3385
      %v3395 = vmul.f32 %v3164, %v3385
      %v3396 = vmul.f32 %v3166, %v3385
      %v3397 = vmul.f32 %v3169, %v3385
      %v3398 = vmul.f32 %v3171, %v3385
      %v3399 = vmul.f32 %v3174, %v3385
      %v3400 = vmul.f32 %v3176, %v3385
      %v3401 = vmul.f32 %v3179, %v3385
      %v3402 = vmul.f32 %v3181, %v3385
      %v3403 = vmul.f32 %v3184, %v3385
      %v3404 = vmul.f32 %v3186, %v3385
      %v3405 = vmul.f32 %v3189, %v3385
      %v3406 = vmul.f32 %v3191, %v3385
      %v3407 = vmul.f32 %v3194, %v3385
      %v3408 = vmul.f32 %v3196, %v3385
      %v3409 = vmul.f32 %v3199, %v3385
      %v3410 = vmul.f32 %v3201, %v3385
      %v3411 = vmul.f32 %v3204, %v3385
      %v3412 = vmul.f32 %v3206, %v3385
      %v3413 = vmul.f32 %v3209, %v3385
      %v3414 = vmul.f32 %v3211, %v3385
      %v3415 = vmul.f32 %v3214, %v3385
      %v3416 = vmul.f32 %v3216, %v3385
      %v3417 = vmul.f32 %v3219, %v3385
      %v3418 = vmul.f32 %v3221, %v3385
      %v3419 = vmul.f32 %v3224, %v3385
      %v3420 = vmul.f32 %v3226, %v3385
      %v3421 = vmul.f32 %v3229, %v3385
      %v3422 = vmul.f32 %v3231, %v3385
      %v3423 = vmul.f32 %v3234, %v3385
      %v3424 = vmul.f32 %v3236, %v3385
      %v3425 = vmul.f32 %v3239, %v3385
      %v3426 = vmul.f32 %v3241, %v3385
      %v3427 = vmul.f32 %v3244, %v3385
      %v3428 = vmul.f32 %v3246, %v3385
      %v3429 = vmul.f32 %v3249, %v3385
      %v3430 = vmul.f32 %v3251, %v3385
      %v3431 = vmul.f32 %v3254, %v3385
      %v3432 = vmul.f32 %v3256, %v3385
      %v3433 = vmul.f32 %v3259, %v3385
      %v3434 = vmul.f32 %v3261, %v3385
      %v3435 = vmul.f32 %v3264, %v3385
      %v3436 = vmul.f32 %v3266, %v3385
      %v3437 = vmul.f32 %v3269, %v3385
      %v3438 = vmul.f32 %v3271, %v3385
      %v3439 = vmul.f32 %v3274, %v3385
      %v3440 = vmul.f32 %v3276, %v3385
      %v3441 = vmul.f32 %v3279, %v3385
      %v3442 = vmul.f32 %v3281, %v3385
      %v3443 = vmul.f32 %v3284, %v3385
      %v3444 = vmul.f32 %v3286, %v3385
      %v3445 = vmul.f32 %v3289, %v3385
      %v3446 = vmul.f32 %v3291, %v3385
      %v3447 = vmul.f32 %v3294, %v3385
      %v3448 = vmul.f32 %v3296, %v3385
      %v3449 = vmul.f32 %v3299, %v3385
      %v3450 = vmul.f32 %v3301, %v3385
      %v3451 = vmul.f32 %v3304, %v3385
      %v3452 = vmul.f32 %v3306, %v3385
      %v3453 = vmul.f32 %v3309, %v3385
      %v3454 = vmul.f32 %v3311, %v3385
      %v3455 = vmul.f32 %v3314, %v3385
      %v3456 = vmul.f32 %v3316, %v3385
      %v3457 = vmul.f32 %v3319, %v3385
      %v3458 = vmul.f32 %v3321, %v3385
      %v3459 = vmul.f32 %v3324, %v3385
      %v3460 = vmul.f32 %v3326, %v3385
      %v3461 = vmul.f32 %v3329, %v3385
      %v3462 = vmul.f32 %v3331, %v3385
      %v3463 = vmul.f32 %v3334, %v3385
      %v3464 = vmul.f32 %v3336, %v3385
      %v3465 = vmul.f32 %v3339, %v3385
      %v3466 = vmul.f32 %v3341, %v3385
      %v3467 = vmul.f32 %v3344, %v3385
      %v3468 = vmul.f32 %v3346, %v3385
      %v3469 = vmul.f32 %v3349, %v3385
      %v3470 = vmul.f32 %v3351, %v3385
      %v3471 = vmul.f32 %v3354, %v3385
      %v3472 = vmul.f32 %v3356, %v3385
      %v3473 = vmul.f32 %v3359, %v3385
      %v3474 = vmul.f32 %v3361, %v3385
      %v3475 = vmul.f32 %v3364, %v3385
      %v3476 = vmul.f32 %v3366, %v3385
      %v3477 = vmul.f32 %v3369, %v3385
      %v3478 = vmul.f32 %v3371, %v3385
      %v3479 = vmul.f32 %v3374, %v3385
      %v3480 = vmul.f32 %v3376, %v3385
      %v3481 = vmul.f32 %v3379, %v3385
      %v3482 = vmul.f32 %v3381, %v3385
      %v3483 = vld [vmem:[%s3] sm:$0x1]
      %v3485 = vperm.slane %v3483, 0
      %v3487 = vadd.f32 %v3387, %v3485
      %v3488 = vadd.f32 %v3388, %v3485
      %v3489 = vadd.f32 %v3389, %v3485
      %v3490 = vadd.f32 %v3390, %v3485
      %v3491 = vadd.f32 %v3391, %v3485
      %v3492 = vadd.f32 %v3392, %v3485
      %v3493 = vadd.f32 %v3393, %v3485
      %v3494 = vadd.f32 %v3394, %v3485
      %v3495 = vadd.f32 %v3395, %v3485
      %v3496 = vadd.f32 %v3396, %v3485
      %v3497 = vadd.f32 %v3397, %v3485
      %v3498 = vadd.f32 %v3398, %v3485
      %v3499 = vadd.f32 %v3399, %v3485
      %v3500 = vadd.f32 %v3400, %v3485
      %v3501 = vadd.f32 %v3401, %v3485
      %v3502 = vadd.f32 %v3402, %v3485
      %v3503 = vadd.f32 %v3403, %v3485
      %v3504 = vadd.f32 %v3404, %v3485
      %v3505 = vadd.f32 %v3405, %v3485
      %v3506 = vadd.f32 %v3406, %v3485
      %v3507 = vadd.f32 %v3407, %v3485
      %v3508 = vadd.f32 %v3408, %v3485
      %v3509 = vadd.f32 %v3409, %v3485
      %v3510 = vadd.f32 %v3410, %v3485
      %v3511 = vadd.f32 %v3411, %v3485
      %v3512 = vadd.f32 %v3412, %v3485
      %v3513 = vadd.f32 %v3413, %v3485
      %v3514 = vadd.f32 %v3414, %v3485
      %v3515 = vadd.f32 %v3415, %v3485
      %v3516 = vadd.f32 %v3416, %v3485
      %v3517 = vadd.f32 %v3417, %v3485
      %v3518 = vadd.f32 %v3418, %v3485
      %v3519 = vadd.f32 %v3419, %v3485
      %v3520 = vadd.f32 %v3420, %v3485
      %v3521 = vadd.f32 %v3421, %v3485
      %v3522 = vadd.f32 %v3422, %v3485
      %v3523 = vadd.f32 %v3423, %v3485
      %v3524 = vadd.f32 %v3424, %v3485
      %v3525 = vadd.f32 %v3425, %v3485
      %v3526 = vadd.f32 %v3426, %v3485
      %v3527 = vadd.f32 %v3427, %v3485
      %v3528 = vadd.f32 %v3428, %v3485
      %v3529 = vadd.f32 %v3429, %v3485
      %v3530 = vadd.f32 %v3430, %v3485
      %v3531 = vadd.f32 %v3431, %v3485
      %v3532 = vadd.f32 %v3432, %v3485
      %v3533 = vadd.f32 %v3433, %v3485
      %v3534 = vadd.f32 %v3434, %v3485
      %v3535 = vadd.f32 %v3435, %v3485
      %v3536 = vadd.f32 %v3436, %v3485
      %v3537 = vadd.f32 %v3437, %v3485
      %v3538 = vadd.f32 %v3438, %v3485
      %v3539 = vadd.f32 %v3439, %v3485
      %v3540 = vadd.f32 %v3440, %v3485
      %v3541 = vadd.f32 %v3441, %v3485
      %v3542 = vadd.f32 %v3442, %v3485
      %v3543 = vadd.f32 %v3443, %v3485
      %v3544 = vadd.f32 %v3444, %v3485
      %v3545 = vadd.f32 %v3445, %v3485
      %v3546 = vadd.f32 %v3446, %v3485
      %v3547 = vadd.f32 %v3447, %v3485
      %v3548 = vadd.f32 %v3448, %v3485
      %v3549 = vadd.f32 %v3449, %v3485
      %v3550 = vadd.f32 %v3450, %v3485
      %v3551 = vadd.f32 %v3451, %v3485
      %v3552 = vadd.f32 %v3452, %v3485
      %v3553 = vadd.f32 %v3453, %v3485
      %v3554 = vadd.f32 %v3454, %v3485
      %v3555 = vadd.f32 %v3455, %v3485
      %v3556 = vadd.f32 %v3456, %v3485
      %v3557 = vadd.f32 %v3457, %v3485
      %v3558 = vadd.f32 %v3458, %v3485
      %v3559 = vadd.f32 %v3459, %v3485
      %v3560 = vadd.f32 %v3460, %v3485
      %v3561 = vadd.f32 %v3461, %v3485
      %v3562 = vadd.f32 %v3462, %v3485
      %v3563 = vadd.f32 %v3463, %v3485
      %v3564 = vadd.f32 %v3464, %v3485
      %v3565 = vadd.f32 %v3465, %v3485
      %v3566 = vadd.f32 %v3466, %v3485
      %v3567 = vadd.f32 %v3467, %v3485
      %v3568 = vadd.f32 %v3468, %v3485
      %v3569 = vadd.f32 %v3469, %v3485
      %v3570 = vadd.f32 %v3470, %v3485
      %v3571 = vadd.f32 %v3471, %v3485
      %v3572 = vadd.f32 %v3472, %v3485
      %v3573 = vadd.f32 %v3473, %v3485
      %v3574 = vadd.f32 %v3474, %v3485
      %v3575 = vadd.f32 %v3475, %v3485
      %v3576 = vadd.f32 %v3476, %v3485
      %v3577 = vadd.f32 %v3477, %v3485
      %v3578 = vadd.f32 %v3478, %v3485
      %v3579 = vadd.f32 %v3479, %v3485
      %v3580 = vadd.f32 %v3480, %v3485
      %v3581 = vadd.f32 %v3481, %v3485
      %v3582 = vadd.f32 %v3482, %v3485
      %v3583 = vmax.f32 %v3487, 0.0
      %v3584 = vmax.f32 %v3488, 0.0
      %v3585 = vmax.f32 %v3489, 0.0
      %v3586 = vmax.f32 %v3490, 0.0
      %v3587 = vmax.f32 %v3491, 0.0
      %v3588 = vmax.f32 %v3492, 0.0
      %v3589 = vmax.f32 %v3493, 0.0
      %v3590 = vmax.f32 %v3494, 0.0
      %v3591 = vmax.f32 %v3495, 0.0
      %v3592 = vmax.f32 %v3496, 0.0
      %v3593 = vmax.f32 %v3497, 0.0
      %v3594 = vmax.f32 %v3498, 0.0
      %v3595 = vmax.f32 %v3499, 0.0
      %v3596 = vmax.f32 %v3500, 0.0
      %v3597 = vmax.f32 %v3501, 0.0
      %v3598 = vmax.f32 %v3502, 0.0
      %v3599 = vmax.f32 %v3503, 0.0
      %v3600 = vmax.f32 %v3504, 0.0
      %v3601 = vmax.f32 %v3505, 0.0
      %v3602 = vmax.f32 %v3506, 0.0
      %v3603 = vmax.f32 %v3507, 0.0
      %v3604 = vmax.f32 %v3508, 0.0
      %v3605 = vmax.f32 %v3509, 0.0
      %v3606 = vmax.f32 %v3510, 0.0
      %v3607 = vmax.f32 %v3511, 0.0
      %v3608 = vmax.f32 %v3512, 0.0
      %v3609 = vmax.f32 %v3513, 0.0
      %v3610 = vmax.f32 %v3514, 0.0
      %v3611 = vmax.f32 %v3515, 0.0
      %v3612 = vmax.f32 %v3516, 0.0
      %v3613 = vmax.f32 %v3517, 0.0
      %v3614 = vmax.f32 %v3518, 0.0
      %v3615 = vmax.f32 %v3519, 0.0
      %v3616 = vmax.f32 %v3520, 0.0
      %v3617 = vmax.f32 %v3521, 0.0
      %v3618 = vmax.f32 %v3522, 0.0
      %v3619 = vmax.f32 %v3523, 0.0
      %v3620 = vmax.f32 %v3524, 0.0
      %v3621 = vmax.f32 %v3525, 0.0
      %v3622 = vmax.f32 %v3526, 0.0
      %v3623 = vmax.f32 %v3527, 0.0
      %v3624 = vmax.f32 %v3528, 0.0
      %v3625 = vmax.f32 %v3529, 0.0
      %v3626 = vmax.f32 %v3530, 0.0
      %v3627 = vmax.f32 %v3531, 0.0
      %v3628 = vmax.f32 %v3532, 0.0
      %v3629 = vmax.f32 %v3533, 0.0
      %v3630 = vmax.f32 %v3534, 0.0
      %v3631 = vmax.f32 %v3535, 0.0
      %v3632 = vmax.f32 %v3536, 0.0
      %v3633 = vmax.f32 %v3537, 0.0
      %v3634 = vmax.f32 %v3538, 0.0
      %v3635 = vmax.f32 %v3539, 0.0
      %v3636 = vmax.f32 %v3540, 0.0
      %v3637 = vmax.f32 %v3541, 0.0
      %v3638 = vmax.f32 %v3542, 0.0
      %v3639 = vmax.f32 %v3543, 0.0
      %v3640 = vmax.f32 %v3544, 0.0
      %v3641 = vmax.f32 %v3545, 0.0
      %v3642 = vmax.f32 %v3546, 0.0
      %v3643 = vmax.f32 %v3547, 0.0
      %v3644 = vmax.f32 %v3548, 0.0
      %v3645 = vmax.f32 %v3549, 0.0
      %v3646 = vmax.f32 %v3550, 0.0
      %v3647 = vmax.f32 %v3551, 0.0
      %v3648 = vmax.f32 %v3552, 0.0
      %v3649 = vmax.f32 %v3553, 0.0
      %v3650 = vmax.f32 %v3554, 0.0
      %v3651 = vmax.f32 %v3555, 0.0
      %v3652 = vmax.f32 %v3556, 0.0
      %v3653 = vmax.f32 %v3557, 0.0
      %v3654 = vmax.f32 %v3558, 0.0
      %v3655 = vmax.f32 %v3559, 0.0
      %v3656 = vmax.f32 %v3560, 0.0
      %v3657 = vmax.f32 %v3561, 0.0
      %v3658 = vmax.f32 %v3562, 0.0
      %v3659 = vmax.f32 %v3563, 0.0
      %v3660 = vmax.f32 %v3564, 0.0
      %v3661 = vmax.f32 %v3565, 0.0
      %v3662 = vmax.f32 %v3566, 0.0
      %v3663 = vmax.f32 %v3567, 0.0
      %v3664 = vmax.f32 %v3568, 0.0
      %v3665 = vmax.f32 %v3569, 0.0
      %v3666 = vmax.f32 %v3570, 0.0
      %v3667 = vmax.f32 %v3571, 0.0
      %v3668 = vmax.f32 %v3572, 0.0
      %v3669 = vmax.f32 %v3573, 0.0
      %v3670 = vmax.f32 %v3574, 0.0
      %v3671 = vmax.f32 %v3575, 0.0
      %v3672 = vmax.f32 %v3576, 0.0
      %v3673 = vmax.f32 %v3577, 0.0
      %v3674 = vmax.f32 %v3578, 0.0
      %v3675 = vmax.f32 %v3579, 0.0
      %v3676 = vmax.f32 %v3580, 0.0
      %v3677 = vmax.f32 %v3581, 0.0
      %v3678 = vmax.f32 %v3582, 0.0
      %v3679 = vpack.c.bf16 %v3583, %v3583
      %v3680 = vpack.c.bf16 %v3584, %v3584
      %v3681 = vpack.c.bf16 %v3585, %v3585
      %v3682 = vpack.c.bf16 %v3586, %v3586
      %v3683 = vpack.c.bf16 %v3587, %v3587
      %v3684 = vpack.c.bf16 %v3588, %v3588
      %v3685 = vpack.c.bf16 %v3589, %v3589
      %v3686 = vpack.c.bf16 %v3590, %v3590
      %v3687 = vpack.c.bf16 %v3591, %v3591
      %v3688 = vpack.c.bf16 %v3592, %v3592
      %v3689 = vpack.c.bf16 %v3593, %v3593
      %v3690 = vpack.c.bf16 %v3594, %v3594
      %v3691 = vpack.c.bf16 %v3595, %v3595
      %v3692 = vpack.c.bf16 %v3596, %v3596
      %v3693 = vpack.c.bf16 %v3597, %v3597
      %v3694 = vpack.c.bf16 %v3598, %v3598
      %v3695 = vpack.c.bf16 %v3599, %v3599
      %v3696 = vpack.c.bf16 %v3600, %v3600
      %v3697 = vpack.c.bf16 %v3601, %v3601
      %v3698 = vpack.c.bf16 %v3602, %v3602
      %v3699 = vpack.c.bf16 %v3603, %v3603
      %v3700 = vpack.c.bf16 %v3604, %v3604
      %v3701 = vpack.c.bf16 %v3605, %v3605
      %v3702 = vpack.c.bf16 %v3606, %v3606
      %v3703 = vpack.c.bf16 %v3607, %v3607
      %v3704 = vpack.c.bf16 %v3608, %v3608
      %v3705 = vpack.c.bf16 %v3609, %v3609
      %v3706 = vpack.c.bf16 %v3610, %v3610
      %v3707 = vpack.c.bf16 %v3611, %v3611
      %v3708 = vpack.c.bf16 %v3612, %v3612
      %v3709 = vpack.c.bf16 %v3613, %v3613
      %v3710 = vpack.c.bf16 %v3614, %v3614
      %v3711 = vpack.c.bf16 %v3615, %v3615
      %v3712 = vpack.c.bf16 %v3616, %v3616
      %v3713 = vpack.c.bf16 %v3617, %v3617
      %v3714 = vpack.c.bf16 %v3618, %v3618
      %v3715 = vpack.c.bf16 %v3619, %v3619
      %v3716 = vpack.c.bf16 %v3620, %v3620
      %v3717 = vpack.c.bf16 %v3621, %v3621
      %v3718 = vpack.c.bf16 %v3622, %v3622
      %v3719 = vpack.c.bf16 %v3623, %v3623
      %v3720 = vpack.c.bf16 %v3624, %v3624
      %v3721 = vpack.c.bf16 %v3625, %v3625
      %v3722 = vpack.c.bf16 %v3626, %v3626
      %v3723 = vpack.c.bf16 %v3627, %v3627
      %v3724 = vpack.c.bf16 %v3628, %v3628
      %v3725 = vpack.c.bf16 %v3629, %v3629
      %v3726 = vpack.c.bf16 %v3630, %v3630
      %v3727 = vpack.c.bf16 %v3631, %v3631
      %v3728 = vpack.c.bf16 %v3632, %v3632
      %v3729 = vpack.c.bf16 %v3633, %v3633
      %v3730 = vpack.c.bf16 %v3634, %v3634
      %v3731 = vpack.c.bf16 %v3635, %v3635
      %v3732 = vpack.c.bf16 %v3636, %v3636
      %v3733 = vpack.c.bf16 %v3637, %v3637
      %v3734 = vpack.c.bf16 %v3638, %v3638
      %v3735 = vpack.c.bf16 %v3639, %v3639
      %v3736 = vpack.c.bf16 %v3640, %v3640
      %v3737 = vpack.c.bf16 %v3641, %v3641
      %v3738 = vpack.c.bf16 %v3642, %v3642
      %v3739 = vpack.c.bf16 %v3643, %v3643
      %v3740 = vpack.c.bf16 %v3644, %v3644
      %v3741 = vpack.c.bf16 %v3645, %v3645
      %v3742 = vpack.c.bf16 %v3646, %v3646
      %v3743 = vpack.c.bf16 %v3647, %v3647
      %v3744 = vpack.c.bf16 %v3648, %v3648
      %v3745 = vpack.c.bf16 %v3649, %v3649
      %v3746 = vpack.c.bf16 %v3650, %v3650
      %v3747 = vpack.c.bf16 %v3651, %v3651
      %v3748 = vpack.c.bf16 %v3652, %v3652
      %v3749 = vpack.c.bf16 %v3653, %v3653
      %v3750 = vpack.c.bf16 %v3654, %v3654
      %v3751 = vpack.c.bf16 %v3655, %v3655
      %v3752 = vpack.c.bf16 %v3656, %v3656
      %v3753 = vpack.c.bf16 %v3657, %v3657
      %v3754 = vpack.c.bf16 %v3658, %v3658
      %v3755 = vpack.c.bf16 %v3659, %v3659
      %v3756 = vpack.c.bf16 %v3660, %v3660
      %v3757 = vpack.c.bf16 %v3661, %v3661
      %v3758 = vpack.c.bf16 %v3662, %v3662
      %v3759 = vpack.c.bf16 %v3663, %v3663
      %v3760 = vpack.c.bf16 %v3664, %v3664
      %v3761 = vpack.c.bf16 %v3665, %v3665
      %v3762 = vpack.c.bf16 %v3666, %v3666
      %v3763 = vpack.c.bf16 %v3667, %v3667
      %v3764 = vpack.c.bf16 %v3668, %v3668
      %v3765 = vpack.c.bf16 %v3669, %v3669
      %v3766 = vpack.c.bf16 %v3670, %v3670
      %v3767 = vpack.c.bf16 %v3671, %v3671
      %v3768 = vpack.c.bf16 %v3672, %v3672
      %v3769 = vpack.c.bf16 %v3673, %v3673
      %v3770 = vpack.c.bf16 %v3674, %v3674
      %v3771 = vpack.c.bf16 %v3675, %v3675
      %v3772 = vpack.c.bf16 %v3676, %v3676
      %v3773 = vpack.c.bf16 %v3677, %v3677
      %v3774 = vpack.c.bf16 %v3678, %v3678
      %s3775 = scalar_lea.vmem %s197, 768
      %3776 = vst.msk [vmem:[%s3775] sm:$0xf] %vm1337, %v3679
      %3777 = vst.msk [vmem:[%s3775 + $0x4] sm:$0xf] %vm1337, %v3680
      %3778 = vst.msk [vmem:[%s3775 + $0x8] sm:$0xf] %vm1337, %v3681
      %3779 = vst.msk [vmem:[%s3775 + $0xc] sm:$0xf] %vm1337, %v3682
      %3780 = vst.msk [vmem:[%s3775 + $0x10] sm:$0xf] %vm1337, %v3683
      %3781 = vst.msk [vmem:[%s3775 + $0x14] sm:$0xf] %vm1337, %v3684
      %3782 = vst.msk [vmem:[%s3775 + $0x18] sm:$0xf] %vm1337, %v3685
      %3783 = vst.msk [vmem:[%s3775 + $0x1c] sm:$0xf] %vm1337, %v3686
      %3784 = vst.msk [vmem:[%s3775 + $0x20] sm:$0xf] %vm1337, %v3687
      %3785 = vst.msk [vmem:[%s3775 + $0x24] sm:$0xf] %vm1337, %v3688
      %3786 = vst.msk [vmem:[%s3775 + $0x28] sm:$0xf] %vm1337, %v3689
      %3787 = vst.msk [vmem:[%s3775 + $0x2c] sm:$0xf] %vm1337, %v3690
      %3788 = vst.msk [vmem:[%s3775 + $0x30] sm:$0xf] %vm1337, %v3691
      %3789 = vst.msk [vmem:[%s3775 + $0x34] sm:$0xf] %vm1337, %v3692
      %3790 = vst.msk [vmem:[%s3775 + $0x38] sm:$0xf] %vm1337, %v3693
      %3791 = vst.msk [vmem:[%s3775 + $0x3c] sm:$0xf] %vm1337, %v3694
      %3792 = vst.msk [vmem:[%s3775 + $0x40] sm:$0xf] %vm1337, %v3695
      %3793 = vst.msk [vmem:[%s3775 + $0x44] sm:$0xf] %vm1337, %v3696
      %3794 = vst.msk [vmem:[%s3775 + $0x48] sm:$0xf] %vm1337, %v3697
      %3795 = vst.msk [vmem:[%s3775 + $0x4c] sm:$0xf] %vm1337, %v3698
      %3796 = vst.msk [vmem:[%s3775 + $0x50] sm:$0xf] %vm1337, %v3699
      %3797 = vst.msk [vmem:[%s3775 + $0x54] sm:$0xf] %vm1337, %v3700
      %3798 = vst.msk [vmem:[%s3775 + $0x58] sm:$0xf] %vm1337, %v3701
      %3799 = vst.msk [vmem:[%s3775 + $0x5c] sm:$0xf] %vm1337, %v3702
      %3800 = vst.msk [vmem:[%s3775 + $0x60] sm:$0xf] %vm1337, %v3703
      %3801 = vst.msk [vmem:[%s3775 + $0x64] sm:$0xf] %vm1337, %v3704
      %3802 = vst.msk [vmem:[%s3775 + $0x68] sm:$0xf] %vm1337, %v3705
      %3803 = vst.msk [vmem:[%s3775 + $0x6c] sm:$0xf] %vm1337, %v3706
      %3804 = vst.msk [vmem:[%s3775 + $0x70] sm:$0xf] %vm1337, %v3707
      %3805 = vst.msk [vmem:[%s3775 + $0x74] sm:$0xf] %vm1337, %v3708
      %3806 = vst.msk [vmem:[%s3775 + $0x78] sm:$0xf] %vm1337, %v3709
      %3807 = vst.msk [vmem:[%s3775 + $0x7c] sm:$0xf] %vm1337, %v3710
      %3808 = vst.msk [vmem:[%s3775 + $0x80] sm:$0xf] %vm1337, %v3711
      %3809 = vst.msk [vmem:[%s3775 + $0x84] sm:$0xf] %vm1337, %v3712
      %3810 = vst.msk [vmem:[%s3775 + $0x88] sm:$0xf] %vm1337, %v3713
      %3811 = vst.msk [vmem:[%s3775 + $0x8c] sm:$0xf] %vm1337, %v3714
      %3812 = vst.msk [vmem:[%s3775 + $0x90] sm:$0xf] %vm1337, %v3715
      %3813 = vst.msk [vmem:[%s3775 + $0x94] sm:$0xf] %vm1337, %v3716
      %3814 = vst.msk [vmem:[%s3775 + $0x98] sm:$0xf] %vm1337, %v3717
      %3815 = vst.msk [vmem:[%s3775 + $0x9c] sm:$0xf] %vm1337, %v3718
      %3816 = vst.msk [vmem:[%s3775 + $0xa0] sm:$0xf] %vm1337, %v3719
      %3817 = vst.msk [vmem:[%s3775 + $0xa4] sm:$0xf] %vm1337, %v3720
      %3818 = vst.msk [vmem:[%s3775 + $0xa8] sm:$0xf] %vm1337, %v3721
      %3819 = vst.msk [vmem:[%s3775 + $0xac] sm:$0xf] %vm1337, %v3722
      %3820 = vst.msk [vmem:[%s3775 + $0xb0] sm:$0xf] %vm1337, %v3723
      %3821 = vst.msk [vmem:[%s3775 + $0xb4] sm:$0xf] %vm1337, %v3724
      %3822 = vst.msk [vmem:[%s3775 + $0xb8] sm:$0xf] %vm1337, %v3725
      %3823 = vst.msk [vmem:[%s3775 + $0xbc] sm:$0xf] %vm1337, %v3726
      %3824 = vst.msk [vmem:[%s3775 + $0xc0] sm:$0xf] %vm1337, %v3727
      %3825 = vst.msk [vmem:[%s3775 + $0xc4] sm:$0xf] %vm1337, %v3728
      %3826 = vst.msk [vmem:[%s3775 + $0xc8] sm:$0xf] %vm1337, %v3729
      %3827 = vst.msk [vmem:[%s3775 + $0xcc] sm:$0xf] %vm1337, %v3730
      %3828 = vst.msk [vmem:[%s3775 + $0xd0] sm:$0xf] %vm1337, %v3731
      %3829 = vst.msk [vmem:[%s3775 + $0xd4] sm:$0xf] %vm1337, %v3732
      %3830 = vst.msk [vmem:[%s3775 + $0xd8] sm:$0xf] %vm1337, %v3733
      %3831 = vst.msk [vmem:[%s3775 + $0xdc] sm:$0xf] %vm1337, %v3734
      %3832 = vst.msk [vmem:[%s3775 + $0xe0] sm:$0xf] %vm1337, %v3735
      %3833 = vst.msk [vmem:[%s3775 + $0xe4] sm:$0xf] %vm1337, %v3736
      %3834 = vst.msk [vmem:[%s3775 + $0xe8] sm:$0xf] %vm1337, %v3737
      %3835 = vst.msk [vmem:[%s3775 + $0xec] sm:$0xf] %vm1337, %v3738
      %3836 = vst.msk [vmem:[%s3775 + $0xf0] sm:$0xf] %vm1337, %v3739
      %3837 = vst.msk [vmem:[%s3775 + $0xf4] sm:$0xf] %vm1337, %v3740
      %3838 = vst.msk [vmem:[%s3775 + $0xf8] sm:$0xf] %vm1337, %v3741
      %3839 = vst.msk [vmem:[%s3775 + $0xfc] sm:$0xf] %vm1337, %v3742
      %3840 = vst.msk [vmem:[%s3775 + $0x100] sm:$0xf] %vm1337, %v3743
      %3841 = vst.msk [vmem:[%s3775 + $0x104] sm:$0xf] %vm1337, %v3744
      %3842 = vst.msk [vmem:[%s3775 + $0x108] sm:$0xf] %vm1337, %v3745
      %3843 = vst.msk [vmem:[%s3775 + $0x10c] sm:$0xf] %vm1337, %v3746
      %3844 = vst.msk [vmem:[%s3775 + $0x110] sm:$0xf] %vm1337, %v3747
      %3845 = vst.msk [vmem:[%s3775 + $0x114] sm:$0xf] %vm1337, %v3748
      %3846 = vst.msk [vmem:[%s3775 + $0x118] sm:$0xf] %vm1337, %v3749
      %3847 = vst.msk [vmem:[%s3775 + $0x11c] sm:$0xf] %vm1337, %v3750
      %3848 = vst.msk [vmem:[%s3775 + $0x120] sm:$0xf] %vm1337, %v3751
      %3849 = vst.msk [vmem:[%s3775 + $0x124] sm:$0xf] %vm1337, %v3752
      %3850 = vst.msk [vmem:[%s3775 + $0x128] sm:$0xf] %vm1337, %v3753
      %3851 = vst.msk [vmem:[%s3775 + $0x12c] sm:$0xf] %vm1337, %v3754
      %3852 = vst.msk [vmem:[%s3775 + $0x130] sm:$0xf] %vm1337, %v3755
      %3853 = vst.msk [vmem:[%s3775 + $0x134] sm:$0xf] %vm1337, %v3756
      %3854 = vst.msk [vmem:[%s3775 + $0x138] sm:$0xf] %vm1337, %v3757
      %3855 = vst.msk [vmem:[%s3775 + $0x13c] sm:$0xf] %vm1337, %v3758
      %3856 = vst.msk [vmem:[%s3775 + $0x140] sm:$0xf] %vm1337, %v3759
      %3857 = vst.msk [vmem:[%s3775 + $0x144] sm:$0xf] %vm1337, %v3760
      %3858 = vst.msk [vmem:[%s3775 + $0x148] sm:$0xf] %vm1337, %v3761
      %3859 = vst.msk [vmem:[%s3775 + $0x14c] sm:$0xf] %vm1337, %v3762
      %3860 = vst.msk [vmem:[%s3775 + $0x150] sm:$0xf] %vm1337, %v3763
      %3861 = vst.msk [vmem:[%s3775 + $0x154] sm:$0xf] %vm1337, %v3764
      %3862 = vst.msk [vmem:[%s3775 + $0x158] sm:$0xf] %vm1337, %v3765
      %3863 = vst.msk [vmem:[%s3775 + $0x15c] sm:$0xf] %vm1337, %v3766
      %3864 = vst.msk [vmem:[%s3775 + $0x160] sm:$0xf] %vm1337, %v3767
      %3865 = vst.msk [vmem:[%s3775 + $0x164] sm:$0xf] %vm1337, %v3768
      %3866 = vst.msk [vmem:[%s3775 + $0x168] sm:$0xf] %vm1337, %v3769
      %3867 = vst.msk [vmem:[%s3775 + $0x16c] sm:$0xf] %vm1337, %v3770
      %3868 = vst.msk [vmem:[%s3775 + $0x170] sm:$0xf] %vm1337, %v3771
      %3869 = vst.msk [vmem:[%s3775 + $0x174] sm:$0xf] %vm1337, %v3772
      %3870 = vst.msk [vmem:[%s3775 + $0x178] sm:$0xf] %vm1337, %v3773
      %3871 = vst.msk [vmem:[%s3775 + $0x17c] sm:$0xf] %vm1337, %v3774
      %p3872 = scmp.lt.s32.totalorder %s15, 1
      %s3873 = scalar_select %p3872, %s15, 1
      %s3874 = smul.addr %s3873, 288
      %s3875 = smul.addr %s3874, 4
      %s3876 = scalar_lea.vmem %s4, %s3875
      // Predicated region
      $region37: #{tpu_custom_call.1} parent=35 // pred_check
        %p3877 = pneg %p122
      $region38: #{tpu_custom_call.1} parent=35 // pred_check_branch
        %3879 = sbr.rel (%p3877) target = $region40
      $region39: #{tpu_custom_call.1} parent=35 // pred_region
        _
      $region40: #{tpu_custom_call.1} parent=35 // pred_fallthru
        _
    $region36: #{tpu_custom_call.1} parent=5 // pred_fallthru
      _
    %p3880 = scmp.le.s32.totalorder 2, %s10
    // Predicated region
    $region41: #{tpu_custom_call.1} parent=5 // pred_check
      %p3881 = pneg %p3880
    $region42: #{tpu_custom_call.1} parent=5 // pred_check_branch
      %3883 = sbr.rel (%p3881) target = $region44
    $region43: #{tpu_custom_call.1} parent=5 // pred_region
      %s3884 = ssub.s32 %s10, 2
      // Predicated region
      $region45: #{tpu_custom_call.1} parent=43 // pred_check
        %p3885 = pneg %p128
      $region46: #{tpu_custom_call.1} parent=43 // pred_check_branch
        %3887 = sbr.rel (%p3885) target = $region48
      $region47: #{tpu_custom_call.1} parent=43 // pred_region
        %p3888 = scmp.lt.s32.totalorder %s16, 1
        %s3889 = scalar_select %p3888, %s16, 1
        %s3890 = smul.addr %s3889, 288
        %s3891 = smul.addr %s3890, 4
        %s3892 = scalar_lea.vmem %s4, %s3891
      $region48: #{tpu_custom_call.1} parent=43 // pred_fallthru
        _
    $region44: #{tpu_custom_call.1} parent=5 // pred_fallthru
      _
  $region6: #{tpu_custom_call.1} parent=0 // loop_footer
    %s14 = sadd.s32 1, %s10
  $region7: #{tpu_custom_call.1} parent=0 // loop_footer_branch
    %9 = sbr.rel target = $region3
  $region8: #{tpu_custom_call.1} parent=0 // loop_exit
    _

</llo_original>
